<compile_context>
chip_gen: v7x
topology: tpu7x:2x2x1
jax: 0.10.0
libtpu: 0.0.40
codegen_flags: <defaults>
</compile_context>

<pallas_src>
import math
import jax
import jax.numpy as jnp
from jax import lax
from jax.experimental import pallas as pl
from jax.experimental.pallas import tpu as pltpu  # noqa: F401  (kept for TPU builds)

# ---------------- model config (small CLIP-ViT-style visual tower) ----------
B = 2               # batch
C_IN = 3            # image channels
IMG = 16            # image height/width
PATCH = 8           # patch size (== conv stride)
GRID = IMG // PATCH
N_PATCH = GRID * GRID            # 4
SEQ = N_PATCH + 1                # 5 real tokens (cls + patches)
SEQ_PAD = 8                      # padded to one 8-sublane group
SEQ_SHIFT = 3                    # log2(SEQ_PAD)
TOKP = B * SEQ_PAD               # 16 padded tokens total
PATCH_DIM = C_IN * PATCH * PATCH # 192
WIDTH = 32                       # transformer width
HEADS = 4
HEAD_DIM = WIDTH // HEADS
MLP_DIM = 4 * WIDTH
LAYERS = 2
EMBED = 32                       # visual projection dim
N_CLASSES = 8
EPS = 1e-5                       # torch.nn.LayerNorm default
ATTN_SCALE = 1.0 / math.sqrt(HEAD_DIM)


def _full_spec(shape):
    # whole-array block, single grid point (everything here is tiny)
    return pl.BlockSpec(shape, lambda: (0,) * len(shape))


# ------------------------------ fused kernel ---------------------------------
def _fused_forward_kernel(
    patches_ref, conv_w_ref, pos_ref,
    ln_pre_g_ref, ln_pre_b_ref,
    in_w_ref, in_b_ref, out_w_ref, out_b_ref,
    fc_w_ref, fc_b_ref, cproj_w_ref, cproj_b_ref,
    proj_ref, proj_b_ref, prompts_ref,
    o_ref,
):
    f32 = jnp.float32
    bf16 = jnp.bfloat16

    def _norm(x):
        # mean/var normalization only; affine is folded into consumer matmuls
        mu = jnp.mean(x, axis=-1, keepdims=True)
        var = jnp.mean((x - mu) ** 2, axis=-1, keepdims=True)
        return (x - mu) * lax.rsqrt(var + EPS)

    # ---- patch embedding (conv as matmul) + cls token + pos_emb -------------
    # cls and pad rows of `patches` are zero, so the matmul yields zero there;
    # `pos_ref` carries class_emb + pos_emb[0] on cls rows, pos_emb[1:] on
    # patch rows and zeros on pad rows -> one matmul + one add assembles x.
    x = jnp.dot(patches_ref[...], conv_w_ref[...],
                preferred_element_type=f32) + pos_ref[...]          # (TOKP, W)
    # ln_pre keeps its affine: it writes directly into the residual stream.
    x = _norm(x) * ln_pre_g_ref[...] + ln_pre_b_ref[...]

    # ---- per-image attention mask: block-diagonal, padded key cols masked ---
    row_i = lax.broadcasted_iota(jnp.int32, (TOKP, TOKP), 0)
    col_i = lax.broadcasted_iota(jnp.int32, (TOKP, TOKP), 1)
    mask = ((row_i >> SEQ_SHIFT) == (col_i >> SEQ_SHIFT)) & \
           ((col_i & (SEQ_PAD - 1)) < SEQ)                          # (TOKP, TOKP)

    # ---- transformer residual blocks ----------------------------------------
    for l in range(LAYERS):
        # attention branch (LN1 gamma/beta pre-folded into in_w / in_b)
        h = _norm(x).astype(bf16)
        qkv = jnp.dot(h, in_w_ref[l], preferred_element_type=f32) + in_b_ref[l]
        q = qkv[:, 0 * WIDTH:1 * WIDTH].reshape(TOKP, HEADS, HEAD_DIM)
        k = qkv[:, 1 * WIDTH:2 * WIDTH].reshape(TOKP, HEADS, HEAD_DIM)
        v = qkv[:, 2 * WIDTH:3 * WIDTH].reshape(TOKP, HEADS, HEAD_DIM)
        q = q.transpose(1, 0, 2).astype(bf16)                       # (H, T, D)
        k = k.transpose(1, 0, 2).astype(bf16)
        v = v.transpose(1, 0, 2).astype(bf16)
        s = jnp.einsum("hqd,hkd->hqk", q, k,
                       preferred_element_type=f32) * ATTN_SCALE     # (H, T, T)
        s = jnp.where(mask[None], s, -1e30)
        m = jnp.max(s, axis=-1, keepdims=True)
        p = jnp.exp(s - m)
        p = p * pl.reciprocal(jnp.sum(p, axis=-1, keepdims=True), approx=True)
        attn = jnp.einsum("hqk,hkd->hqd", p.astype(bf16), v,
                          preferred_element_type=f32)               # (H, T, D)
        attn = attn.transpose(1, 0, 2).reshape(TOKP, WIDTH)
        a = jnp.dot(attn.astype(bf16), out_w_ref[l],
                    preferred_element_type=f32) + out_b_ref[l]
        x = x + a

        # MLP branch (LN2 pre-folded into fc_w / fc_b; QuickGELU as in CLIP)
        h2 = _norm(x).astype(bf16)
        m1 = jnp.dot(h2, fc_w_ref[l], preferred_element_type=f32) + fc_b_ref[l]
        m1 = m1 * jax.nn.sigmoid(1.702 * m1)
        m2 = jnp.dot(m1.astype(bf16), cproj_w_ref[l],
                     preferred_element_type=f32) + cproj_b_ref[l]
        x = x + m2

    # ---- cls gather, ln_post (folded into proj), visual proj, zero-shot head
    cls = x.reshape(B, SEQ_PAD, WIDTH)[:, 0, :]                      # (B, W)
    feats = jnp.dot(_norm(cls).astype(bf16), proj_ref[...],
                    preferred_element_type=f32) + proj_b_ref[...]    # (B, E)
    inv_norm = lax.rsqrt(jnp.sum(feats * feats, axis=-1, keepdims=True))
    feats_n = (feats * inv_norm).astype(bf16)
    # logit_scale is pre-folded into prompts; single (B, N_CLASSES) store.
    o_ref[...] = jnp.dot(feats_n, prompts_ref[...],
                         preferred_element_type=f32)


# ------------------------------ model forward --------------------------------
@jax.jit
def myclip_forward(prep, images):
    assert images.shape == (B, C_IN, IMG, IMG)
    # patch conv (stride == kernel, bias=False) -> matmul over flat patches;
    # rows 0 (cls) and SEQ..SEQ_PAD-1 (pad) of each batch block are zero.
    patches = (
        images.reshape(B, C_IN, GRID, PATCH, GRID, PATCH)
        .transpose(0, 2, 4, 1, 3, 5)
        .reshape(B, N_PATCH, PATCH_DIM)
        .astype(jnp.float32)
    )
    padded = jnp.zeros((B, SEQ_PAD, PATCH_DIM), jnp.float32)
    padded = padded.at[:, 1:1 + N_PATCH, :].set(patches)
    padded = padded.reshape(TOKP, PATCH_DIM).astype(jnp.bfloat16)

    args = [
        padded, prep["conv_w"], prep["pos_full"],
        prep["ln_pre_g"], prep["ln_pre_b"],
        prep["in_w"], prep["in_b"], prep["out_w"], prep["out_b"],
        prep["fc_w"], prep["fc_b"], prep["cproj_w"], prep["cproj_b"],
        prep["proj"], prep["proj_b"], prep["prompts"],
    ]
    return pl.pallas_call(
        _fused_forward_kernel,
        out_shape=jax.ShapeDtypeStruct((B, N_CLASSES), jnp.float32),
        in_specs=[_full_spec(a.shape) for a in args],
        out_specs=_full_spec((B, N_CLASSES)),
    )(*args)


# ------------------------------ param prep (one-time) ------------------------
def prepare_params(p):
    """Fold LN affines / logit_scale into weights, cast MXU operands to bf16."""
    blk = p["blk"]
    bf = jnp.bfloat16

    # LN1 -> QKV in-proj : W' = diag(g) W, b' = b_in + beta @ W
    in_w = blk["in_w"] * jnp.swapaxes(blk["ln1_g"], 1, 2)
    in_b = blk["in_b"] + jnp.einsum("lij,ljk->lik", blk["ln1_b"], blk["in_w"])
    # LN2 -> MLP fc
    fc_w = blk["fc_w"] * jnp.swapaxes(blk["ln2_g"], 1, 2)
    fc_b = blk["fc_b"] + jnp.einsum("lij,ljk->lik", blk["ln2_b"], blk["fc_w"])
    # ln_post -> visual projection (proj has no bias, so it gains one)
    proj = p["proj"] * p["ln_post_g"].T
    proj_b = p["ln_post_b"] @ p["proj"]
    # logit_scale folded into the zero-shot prompt bank (no .exp(), as in forward)
    prompts = p["logit_scale"] * p["prompts_embedding"]

    # class-token + positional table on the padded token layout (pad rows = 0)
    pos = jnp.zeros((SEQ_PAD, WIDTH), jnp.float32)
    pos = pos.at[0].set((p["class_emb"] + p["pos_emb"][0:1])[0])
    pos = pos.at[1:SEQ].set(p["pos_emb"][1:SEQ])
    pos_full = jnp.tile(pos, (B, 1))                                 # (TOKP, W)

    return {
        "conv_w": p["conv_w"].astype(bf),
        "pos_full": pos_full,
        "ln_pre_g": p["ln_pre_g"], "ln_pre_b": p["ln_pre_b"],
        "in_w": in_w.astype(bf), "in_b": in_b,
        "out_w": blk["out_w"].astype(bf), "out_b": blk["out_b"],
        "fc_w": fc_w.astype(bf), "fc_b": fc_b,
        "cproj_w": blk["cproj_w"].astype(bf), "cproj_b": blk["cproj_b"],
        "proj": proj.astype(bf), "proj_b": proj_b,
        "prompts": prompts.astype(bf),
    }


# ------------------------------ init ----------------------------------------
def init_params(key):
    ks = list(jax.random.split(key, 16))
    it = iter(ks)

    def nrm(shape, std=0.02):
        return jax.random.normal(next(it), shape, jnp.float32) * std

    params = {
        "conv_w": nrm((PATCH_DIM, WIDTH)),
        "class_emb": nrm((1, WIDTH)),
        "pos_emb": nrm((SEQ, WIDTH)),
        "ln_pre_g": jnp.ones((1, WIDTH), jnp.float32),
        "ln_pre_b": jnp.zeros((1, WIDTH), jnp.float32),
        "ln_post_g": jnp.ones((1, WIDTH), jnp.float32),
        "ln_post_b": jnp.zeros((1, WIDTH), jnp.float32),
        "proj": nrm((WIDTH, EMBED)),
        # applied directly (no .exp()), exactly as in MyClip.forward
        "logit_scale": jnp.float32(math.log(1.0 / 0.07)),
        "blk": {
            "ln1_g": jnp.ones((LAYERS, 1, WIDTH), jnp.float32),
            "ln1_b": jnp.zeros((LAYERS, 1, WIDTH), jnp.float32),
            "in_w": nrm((LAYERS, WIDTH, 3 * WIDTH)),
            "in_b": nrm((LAYERS, 1, 3 * WIDTH)),
            "out_w": nrm((LAYERS, WIDTH, WIDTH)),
            "out_b": nrm((LAYERS, 1, WIDTH)),
            "ln2_g": jnp.ones((LAYERS, 1, WIDTH), jnp.float32),
            "ln2_b": jnp.zeros((LAYERS, 1, WIDTH), jnp.float32),
            "fc_w": nrm((LAYERS, WIDTH, MLP_DIM)),
            "fc_b": nrm((LAYERS, 1, MLP_DIM)),
            "cproj_w": nrm((LAYERS, MLP_DIM, WIDTH)),
            "cproj_b": nrm((LAYERS, 1, WIDTH)),
        },
    }
    # zero-shot prompt bank (embed_dim, n_classes), unit-norm columns — stands
    # in for zeroshot_classifier() output computed at __init__ time.
    pw = jax.random.normal(next(it), (EMBED, N_CLASSES), jnp.float32)
    pw = pw / jnp.linalg.norm(pw, axis=0, keepdims=True)
    params["prompts_embedding"] = pw
    return params


# ------------------------------ main -----------------------------------------
if __name__ == "__main__":
    key = jax.random.PRNGKey(0)
    pkey, xkey = jax.random.split(key)
    params = init_params(pkey)
    prep = prepare_params(params)
    images = jax.random.normal(xkey, (B, C_IN, IMG, IMG), jnp.float32)  # NCHW

    logits = myclip_forward(prep, images)
    logits = jax.block_until_ready(logits)

    assert logits.shape == (B, N_CLASSES), logits.shape
    assert bool(jnp.all(jnp.isfinite(logits)))
    print("KERNEL_OK")
</pallas_src>

<mosaic_0001>
module attributes {stable_mosaic.version = 11 : i64} {
  func.func @_fused_forward_kernel(%arg0: memref<16x192xbf16, #tpu.memory_space<vmem>>, %arg1: memref<192x32xbf16, #tpu.memory_space<vmem>>, %arg2: memref<16x32xf32, #tpu.memory_space<vmem>>, %arg3: memref<1x32xf32, #tpu.memory_space<vmem>>, %arg4: memref<1x32xf32, #tpu.memory_space<vmem>>, %arg5: memref<2x32x96xbf16, #tpu.memory_space<vmem>>, %arg6: memref<2x1x96xf32, #tpu.memory_space<vmem>>, %arg7: memref<2x32x32xbf16, #tpu.memory_space<vmem>>, %arg8: memref<2x1x32xf32, #tpu.memory_space<vmem>>, %arg9: memref<2x32x128xbf16, #tpu.memory_space<vmem>>, %arg10: memref<2x1x128xf32, #tpu.memory_space<vmem>>, %arg11: memref<2x128x32xbf16, #tpu.memory_space<vmem>>, %arg12: memref<2x1x32xf32, #tpu.memory_space<vmem>>, %arg13: memref<32x32xbf16, #tpu.memory_space<vmem>>, %arg14: memref<1x32xf32, #tpu.memory_space<vmem>>, %arg15: memref<32x8xbf16, #tpu.memory_space<vmem>>, %arg16: memref<2x8xf32, #tpu.memory_space<vmem>>) attributes {dimension_semantics = [], scalar_prefetch = 0 : i64, scratch_operands = 0 : i64, tpu.core_type = #tpu.core_type<tc>} {
    %c0 = arith.constant 0 : index
    %c0_0 = arith.constant 0 : index
    %0 = vector.load %arg0[%c0, %c0_0] : memref<16x192xbf16, #tpu.memory_space<vmem>>, vector<16x192xbf16>
    %c0_1 = arith.constant 0 : index
    %c0_2 = arith.constant 0 : index
    %1 = vector.load %arg1[%c0_1, %c0_2] : memref<192x32xbf16, #tpu.memory_space<vmem>>, vector<192x32xbf16>
    %cst = arith.constant dense<0.000000e+00> : vector<16x32xf32>
    %2 = tpu.matmul %0, %1, %cst {dimension_numbers = #tpu.dot_dimension_numbers<[1], [0], [0], [1], [0, 0, 1, 1], [], []>} : vector<16x192xbf16>, vector<192x32xbf16>, vector<16x32xf32> -> vector<16x32xf32>
    %c0_3 = arith.constant 0 : index
    %c0_4 = arith.constant 0 : index
    %3 = vector.load %arg2[%c0_3, %c0_4] : memref<16x32xf32, #tpu.memory_space<vmem>>, vector<16x32xf32>
    %4 = arith.addf %2, %3 : vector<16x32xf32>
    %cst_5 = arith.constant dense<0.000000e+00> : vector<16xf32>
    %5 = vector.multi_reduction <add>, %4, %cst_5 [1] : vector<16x32xf32> to vector<16xf32>
    %6 = vector.shape_cast %5 : vector<16xf32> to vector<16x1xf32>
    %cst_6 = arith.constant 3.200000e+01 : f32
    %7 = vector.broadcast %cst_6 : f32 to vector<16x1xf32>
    %8 = arith.divf %6, %7 : vector<16x1xf32>
    %9 = vector.broadcast %8 : vector<16x1xf32> to vector<16x32xf32>
    %10 = arith.subf %4, %9 : vector<16x32xf32>
    %11 = arith.mulf %10, %10 : vector<16x32xf32>
    %cst_7 = arith.constant dense<0.000000e+00> : vector<16xf32>
    %12 = vector.multi_reduction <add>, %11, %cst_7 [1] : vector<16x32xf32> to vector<16xf32>
    %13 = vector.shape_cast %12 : vector<16xf32> to vector<16x1xf32>
    %cst_8 = arith.constant 3.200000e+01 : f32
    %14 = vector.broadcast %cst_8 : f32 to vector<16x1xf32>
    %15 = arith.divf %13, %14 : vector<16x1xf32>
    %16 = vector.broadcast %8 : vector<16x1xf32> to vector<16x32xf32>
    %17 = arith.subf %4, %16 : vector<16x32xf32>
    %cst_9 = arith.constant 9.99999974E-6 : f32
    %18 = vector.broadcast %cst_9 : f32 to vector<16x1xf32>
    %19 = arith.addf %15, %18 : vector<16x1xf32>
    %20 = math.rsqrt %19 : vector<16x1xf32>
    %21 = vector.broadcast %20 : vector<16x1xf32> to vector<16x32xf32>
    %22 = arith.mulf %17, %21 : vector<16x32xf32>
    %c0_10 = arith.constant 0 : index
    %c0_11 = arith.constant 0 : index
    %23 = vector.load %arg3[%c0_10, %c0_11] : memref<1x32xf32, #tpu.memory_space<vmem>>, vector<1x32xf32>
    %24 = vector.broadcast %23 : vector<1x32xf32> to vector<16x32xf32>
    %25 = arith.mulf %22, %24 : vector<16x32xf32>
    %c0_12 = arith.constant 0 : index
    %c0_13 = arith.constant 0 : index
    %26 = vector.load %arg4[%c0_12, %c0_13] : memref<1x32xf32, #tpu.memory_space<vmem>>, vector<1x32xf32>
    %27 = vector.broadcast %26 : vector<1x32xf32> to vector<16x32xf32>
    %28 = arith.addf %25, %27 : vector<16x32xf32>
    %29 = tpu.iota {dimensions = array<i32: 0>} : vector<16x16xi32>
    %30 = tpu.iota {dimensions = array<i32: 1>} : vector<16x16xi32>
    %c3_i32 = arith.constant 3 : i32
    %31 = vector.broadcast %c3_i32 : i32 to vector<16x16xi32>
    %32 = arith.shrsi %29, %31 : vector<16x16xi32>
    %c3_i32_14 = arith.constant 3 : i32
    %33 = vector.broadcast %c3_i32_14 : i32 to vector<16x16xi32>
    %34 = arith.shrsi %30, %33 : vector<16x16xi32>
    %35 = arith.cmpi eq, %32, %34 : vector<16x16xi32>
    %c7_i32 = arith.constant 7 : i32
    %36 = vector.broadcast %c7_i32 : i32 to vector<16x16xi32>
    %37 = arith.andi %30, %36 : vector<16x16xi32>
    %c5_i32 = arith.constant 5 : i32
    %38 = vector.broadcast %c5_i32 : i32 to vector<16x16xi32>
    %39 = arith.cmpi slt, %37, %38 : vector<16x16xi32>
    %40 = arith.andi %35, %39 : vector<16x16xi1>
    %cst_15 = arith.constant dense<0.000000e+00> : vector<16xf32>
    %41 = vector.multi_reduction <add>, %28, %cst_15 [1] : vector<16x32xf32> to vector<16xf32>
    %42 = vector.shape_cast %41 : vector<16xf32> to vector<16x1xf32>
    %cst_16 = arith.constant 3.200000e+01 : f32
    %43 = vector.broadcast %cst_16 : f32 to vector<16x1xf32>
    %44 = arith.divf %42, %43 : vector<16x1xf32>
    %45 = vector.broadcast %44 : vector<16x1xf32> to vector<16x32xf32>
    %46 = arith.subf %28, %45 : vector<16x32xf32>
    %47 = arith.mulf %46, %46 : vector<16x32xf32>
    %cst_17 = arith.constant dense<0.000000e+00> : vector<16xf32>
    %48 = vector.multi_reduction <add>, %47, %cst_17 [1] : vector<16x32xf32> to vector<16xf32>
    %49 = vector.shape_cast %48 : vector<16xf32> to vector<16x1xf32>
    %cst_18 = arith.constant 3.200000e+01 : f32
    %50 = vector.broadcast %cst_18 : f32 to vector<16x1xf32>
    %51 = arith.divf %49, %50 : vector<16x1xf32>
    %52 = vector.broadcast %44 : vector<16x1xf32> to vector<16x32xf32>
    %53 = arith.subf %28, %52 : vector<16x32xf32>
    %cst_19 = arith.constant 9.99999974E-6 : f32
    %54 = vector.broadcast %cst_19 : f32 to vector<16x1xf32>
    %55 = arith.addf %51, %54 : vector<16x1xf32>
    %56 = math.rsqrt %55 : vector<16x1xf32>
    %57 = vector.broadcast %56 : vector<16x1xf32> to vector<16x32xf32>
    %58 = arith.mulf %53, %57 : vector<16x32xf32>
    %59 = arith.truncf %58 : vector<16x32xf32> to vector<16x32xbf16>
    %c0_20 = arith.constant 0 : index
    %c0_21 = arith.constant 0 : index
    %c0_22 = arith.constant 0 : index
    %60 = vector.load %arg5[%c0_20, %c0_21, %c0_22] : memref<2x32x96xbf16, #tpu.memory_space<vmem>>, vector<1x32x96xbf16>
    %61 = vector.shape_cast %60 : vector<1x32x96xbf16> to vector<32x96xbf16>
    %cst_23 = arith.constant dense<0.000000e+00> : vector<16x96xf32>
    %62 = tpu.matmul %59, %61, %cst_23 {dimension_numbers = #tpu.dot_dimension_numbers<[1], [0], [0], [1], [0, 0, 1, 1], [], []>} : vector<16x32xbf16>, vector<32x96xbf16>, vector<16x96xf32> -> vector<16x96xf32>
    %c0_24 = arith.constant 0 : index
    %c0_25 = arith.constant 0 : index
    %c0_26 = arith.constant 0 : index
    %63 = vector.load %arg6[%c0_24, %c0_25, %c0_26] : memref<2x1x96xf32, #tpu.memory_space<vmem>>, vector<1x1x96xf32>
    %64 = vector.shape_cast %63 : vector<1x1x96xf32> to vector<1x96xf32>
    %65 = vector.broadcast %64 : vector<1x96xf32> to vector<16x96xf32>
    %66 = arith.addf %62, %65 : vector<16x96xf32>
    %67 = vector.extract_strided_slice %66 {offsets = [0, 0], sizes = [16, 32], strides = [1, 1]} : vector<16x96xf32> to vector<16x32xf32>
    %68 = vector.shape_cast %67 : vector<16x32xf32> to vector<16x4x8xf32>
    %69 = vector.extract_strided_slice %66 {offsets = [0, 32], sizes = [16, 32], strides = [1, 1]} : vector<16x96xf32> to vector<16x32xf32>
    %70 = vector.shape_cast %69 : vector<16x32xf32> to vector<16x4x8xf32>
    %71 = vector.extract_strided_slice %66 {offsets = [0, 64], sizes = [16, 32], strides = [1, 1]} : vector<16x96xf32> to vector<16x32xf32>
    %72 = vector.shape_cast %71 : vector<16x32xf32> to vector<16x4x8xf32>
    %73 = tpu.transpose %68, [1, 0, 2] : vector<16x4x8xf32> -> vector<4x16x8xf32>
    %74 = arith.truncf %73 : vector<4x16x8xf32> to vector<4x16x8xbf16>
    %75 = tpu.transpose %70, [1, 0, 2] : vector<16x4x8xf32> -> vector<4x16x8xf32>
    %76 = arith.truncf %75 : vector<4x16x8xf32> to vector<4x16x8xbf16>
    %77 = tpu.transpose %72, [1, 0, 2] : vector<16x4x8xf32> -> vector<4x16x8xf32>
    %78 = arith.truncf %77 : vector<4x16x8xf32> to vector<4x16x8xbf16>
    "tpu.trace_start"() <{level = 10 : i32, message = "hqd,hkd->hqk"}> : () -> ()
    %cst_27 = arith.constant dense<0.000000e+00> : vector<4x16x16xf32>
    %79 = tpu.matmul %74, %76, %cst_27 {dimension_numbers = #tpu.dot_dimension_numbers<[2], [2], [1], [1], [0, 0, 0, 1, 1, 1], [0], [0]>} : vector<4x16x8xbf16>, vector<4x16x8xbf16>, vector<4x16x16xf32> -> vector<4x16x16xf32>
    "tpu.trace_stop"() : () -> ()
    %cst_28 = arith.constant 0.353553385 : f32
    %80 = vector.broadcast %cst_28 : f32 to vector<4x16x16xf32>
    %81 = arith.mulf %79, %80 : vector<4x16x16xf32>
    %82 = vector.shape_cast %40 : vector<16x16xi1> to vector<1x16x16xi1>
    %cst_29 = arith.constant -1.000000e+30 : f32
    %83 = vector.shape_cast %82 : vector<1x16x16xi1> to vector<1x16x16xi1>
    %84 = vector.broadcast %83 : vector<1x16x16xi1> to vector<4x16x16xi1>
    %85 = vector.broadcast %cst_29 : f32 to vector<4x16x16xf32>
    %86 = arith.select %84, %81, %85 : vector<4x16x16xi1>, vector<4x16x16xf32>
    %cst_30 = arith.constant dense<0xFF800000> : vector<4x16xf32>
    %87 = vector.multi_reduction <maximumf>, %86, %cst_30 [2] : vector<4x16x16xf32> to vector<4x16xf32>
    %88 = vector.shape_cast %87 : vector<4x16xf32> to vector<4x16x1xf32>
    %89 = vector.broadcast %88 : vector<4x16x1xf32> to vector<4x16x16xf32>
    %90 = arith.subf %86, %89 : vector<4x16x16xf32>
    %91 = math.exp %90 : vector<4x16x16xf32>
    %cst_31 = arith.constant dense<0.000000e+00> : vector<4x16xf32>
    %92 = vector.multi_reduction <add>, %91, %cst_31 [2] : vector<4x16x16xf32> to vector<4x16xf32>
    %93 = vector.shape_cast %92 : vector<4x16xf32> to vector<4x16x1xf32>
    %94 = tpu.reciprocal %93 {approx = true} : vector<4x16x1xf32> -> vector<4x16x1xf32>
    %95 = vector.broadcast %94 : vector<4x16x1xf32> to vector<4x16x16xf32>
    %96 = arith.mulf %91, %95 : vector<4x16x16xf32>
    %97 = arith.truncf %96 : vector<4x16x16xf32> to vector<4x16x16xbf16>
    "tpu.trace_start"() <{level = 10 : i32, message = "hqk,hkd->hqd"}> : () -> ()
    %cst_32 = arith.constant dense<0.000000e+00> : vector<4x16x8xf32>
    %98 = tpu.matmul %97, %78, %cst_32 {dimension_numbers = #tpu.dot_dimension_numbers<[2], [1], [1], [2], [0, 0, 0, 1, 1, 2], [0], [0]>} : vector<4x16x16xbf16>, vector<4x16x8xbf16>, vector<4x16x8xf32> -> vector<4x16x8xf32>
    "tpu.trace_stop"() : () -> ()
    %99 = tpu.transpose %98, [1, 0, 2] : vector<4x16x8xf32> -> vector<16x4x8xf32>
    %100 = vector.shape_cast %99 : vector<16x4x8xf32> to vector<16x32xf32>
    %101 = arith.truncf %100 : vector<16x32xf32> to vector<16x32xbf16>
    %c0_33 = arith.constant 0 : index
    %c0_34 = arith.constant 0 : index
    %c0_35 = arith.constant 0 : index
    %102 = vector.load %arg7[%c0_33, %c0_34, %c0_35] : memref<2x32x32xbf16, #tpu.memory_space<vmem>>, vector<1x32x32xbf16>
    %103 = vector.shape_cast %102 : vector<1x32x32xbf16> to vector<32x32xbf16>
    %cst_36 = arith.constant dense<0.000000e+00> : vector<16x32xf32>
    %104 = tpu.matmul %101, %103, %cst_36 {dimension_numbers = #tpu.dot_dimension_numbers<[1], [0], [0], [1], [0, 0, 1, 1], [], []>} : vector<16x32xbf16>, vector<32x32xbf16>, vector<16x32xf32> -> vector<16x32xf32>
    %c0_37 = arith.constant 0 : index
    %c0_38 = arith.constant 0 : index
    %c0_39 = arith.constant 0 : index
    %105 = vector.load %arg8[%c0_37, %c0_38, %c0_39] : memref<2x1x32xf32, #tpu.memory_space<vmem>>, vector<1x1x32xf32>
    %106 = vector.shape_cast %105 : vector<1x1x32xf32> to vector<1x32xf32>
    %107 = vector.broadcast %106 : vector<1x32xf32> to vector<16x32xf32>
    %108 = arith.addf %104, %107 : vector<16x32xf32>
    %109 = arith.addf %28, %108 : vector<16x32xf32>
    %cst_40 = arith.constant dense<0.000000e+00> : vector<16xf32>
    %110 = vector.multi_reduction <add>, %109, %cst_40 [1] : vector<16x32xf32> to vector<16xf32>
    %111 = vector.shape_cast %110 : vector<16xf32> to vector<16x1xf32>
    %cst_41 = arith.constant 3.200000e+01 : f32
    %112 = vector.broadcast %cst_41 : f32 to vector<16x1xf32>
    %113 = arith.divf %111, %112 : vector<16x1xf32>
    %114 = vector.broadcast %113 : vector<16x1xf32> to vector<16x32xf32>
    %115 = arith.subf %109, %114 : vector<16x32xf32>
    %116 = arith.mulf %115, %115 : vector<16x32xf32>
    %cst_42 = arith.constant dense<0.000000e+00> : vector<16xf32>
    %117 = vector.multi_reduction <add>, %116, %cst_42 [1] : vector<16x32xf32> to vector<16xf32>
    %118 = vector.shape_cast %117 : vector<16xf32> to vector<16x1xf32>
    %cst_43 = arith.constant 3.200000e+01 : f32
    %119 = vector.broadcast %cst_43 : f32 to vector<16x1xf32>
    %120 = arith.divf %118, %119 : vector<16x1xf32>
    %121 = vector.broadcast %113 : vector<16x1xf32> to vector<16x32xf32>
    %122 = arith.subf %109, %121 : vector<16x32xf32>
    %cst_44 = arith.constant 9.99999974E-6 : f32
    %123 = vector.broadcast %cst_44 : f32 to vector<16x1xf32>
    %124 = arith.addf %120, %123 : vector<16x1xf32>
    %125 = math.rsqrt %124 : vector<16x1xf32>
    %126 = vector.broadcast %125 : vector<16x1xf32> to vector<16x32xf32>
    %127 = arith.mulf %122, %126 : vector<16x32xf32>
    %128 = arith.truncf %127 : vector<16x32xf32> to vector<16x32xbf16>
    %c0_45 = arith.constant 0 : index
    %c0_46 = arith.constant 0 : index
    %c0_47 = arith.constant 0 : index
    %129 = vector.load %arg9[%c0_45, %c0_46, %c0_47] : memref<2x32x128xbf16, #tpu.memory_space<vmem>>, vector<1x32x128xbf16>
    %130 = vector.shape_cast %129 : vector<1x32x128xbf16> to vector<32x128xbf16>
    %cst_48 = arith.constant dense<0.000000e+00> : vector<16x128xf32>
    %131 = tpu.matmul %128, %130, %cst_48 {dimension_numbers = #tpu.dot_dimension_numbers<[1], [0], [0], [1], [0, 0, 1, 1], [], []>} : vector<16x32xbf16>, vector<32x128xbf16>, vector<16x128xf32> -> vector<16x128xf32>
    %c0_49 = arith.constant 0 : index
    %c0_50 = arith.constant 0 : index
    %c0_51 = arith.constant 0 : index
    %132 = vector.load %arg10[%c0_49, %c0_50, %c0_51] : memref<2x1x128xf32, #tpu.memory_space<vmem>>, vector<1x1x128xf32>
    %133 = vector.shape_cast %132 : vector<1x1x128xf32> to vector<1x128xf32>
    %134 = vector.broadcast %133 : vector<1x128xf32> to vector<16x128xf32>
    %135 = arith.addf %131, %134 : vector<16x128xf32>
    %cst_52 = arith.constant 1.702000e+00 : f32
    %136 = vector.broadcast %cst_52 : f32 to vector<16x128xf32>
    %137 = arith.mulf %136, %135 : vector<16x128xf32>
    %138 = arith.negf %137 : vector<16x128xf32>
    %139 = math.exp %138 : vector<16x128xf32>
    %cst_53 = arith.constant 1.000000e+00 : f32
    %140 = vector.broadcast %cst_53 : f32 to vector<16x128xf32>
    %141 = arith.addf %140, %139 : vector<16x128xf32>
    %142 = arith.divf %140, %141 : vector<16x128xf32>
    %143 = arith.mulf %135, %142 : vector<16x128xf32>
    %144 = arith.truncf %143 : vector<16x128xf32> to vector<16x128xbf16>
    %c0_54 = arith.constant 0 : index
    %c0_55 = arith.constant 0 : index
    %c0_56 = arith.constant 0 : index
    %145 = vector.load %arg11[%c0_54, %c0_55, %c0_56] : memref<2x128x32xbf16, #tpu.memory_space<vmem>>, vector<1x128x32xbf16>
    %146 = vector.shape_cast %145 : vector<1x128x32xbf16> to vector<128x32xbf16>
    %cst_57 = arith.constant dense<0.000000e+00> : vector<16x32xf32>
    %147 = tpu.matmul %144, %146, %cst_57 {dimension_numbers = #tpu.dot_dimension_numbers<[1], [0], [0], [1], [0, 0, 1, 1], [], []>} : vector<16x128xbf16>, vector<128x32xbf16>, vector<16x32xf32> -> vector<16x32xf32>
    %c0_58 = arith.constant 0 : index
    %c0_59 = arith.constant 0 : index
    %c0_60 = arith.constant 0 : index
    %148 = vector.load %arg12[%c0_58, %c0_59, %c0_60] : memref<2x1x32xf32, #tpu.memory_space<vmem>>, vector<1x1x32xf32>
    %149 = vector.shape_cast %148 : vector<1x1x32xf32> to vector<1x32xf32>
    %150 = vector.broadcast %149 : vector<1x32xf32> to vector<16x32xf32>
    %151 = arith.addf %147, %150 : vector<16x32xf32>
    %152 = arith.addf %109, %151 : vector<16x32xf32>
    %cst_61 = arith.constant dense<0.000000e+00> : vector<16xf32>
    %153 = vector.multi_reduction <add>, %152, %cst_61 [1] : vector<16x32xf32> to vector<16xf32>
    %154 = vector.shape_cast %153 : vector<16xf32> to vector<16x1xf32>
    %cst_62 = arith.constant 3.200000e+01 : f32
    %155 = vector.broadcast %cst_62 : f32 to vector<16x1xf32>
    %156 = arith.divf %154, %155 : vector<16x1xf32>
    %157 = vector.broadcast %156 : vector<16x1xf32> to vector<16x32xf32>
    %158 = arith.subf %152, %157 : vector<16x32xf32>
    %159 = arith.mulf %158, %158 : vector<16x32xf32>
    %cst_63 = arith.constant dense<0.000000e+00> : vector<16xf32>
    %160 = vector.multi_reduction <add>, %159, %cst_63 [1] : vector<16x32xf32> to vector<16xf32>
    %161 = vector.shape_cast %160 : vector<16xf32> to vector<16x1xf32>
    %cst_64 = arith.constant 3.200000e+01 : f32
    %162 = vector.broadcast %cst_64 : f32 to vector<16x1xf32>
    %163 = arith.divf %161, %162 : vector<16x1xf32>
    %164 = vector.broadcast %156 : vector<16x1xf32> to vector<16x32xf32>
    %165 = arith.subf %152, %164 : vector<16x32xf32>
    %cst_65 = arith.constant 9.99999974E-6 : f32
    %166 = vector.broadcast %cst_65 : f32 to vector<16x1xf32>
    %167 = arith.addf %163, %166 : vector<16x1xf32>
    %168 = math.rsqrt %167 : vector<16x1xf32>
    %169 = vector.broadcast %168 : vector<16x1xf32> to vector<16x32xf32>
    %170 = arith.mulf %165, %169 : vector<16x32xf32>
    %171 = arith.truncf %170 : vector<16x32xf32> to vector<16x32xbf16>
    %c1 = arith.constant 1 : index
    %c0_66 = arith.constant 0 : index
    %c0_67 = arith.constant 0 : index
    %172 = vector.load %arg5[%c1, %c0_66, %c0_67] : memref<2x32x96xbf16, #tpu.memory_space<vmem>>, vector<1x32x96xbf16>
    %173 = vector.shape_cast %172 : vector<1x32x96xbf16> to vector<32x96xbf16>
    %cst_68 = arith.constant dense<0.000000e+00> : vector<16x96xf32>
    %174 = tpu.matmul %171, %173, %cst_68 {dimension_numbers = #tpu.dot_dimension_numbers<[1], [0], [0], [1], [0, 0, 1, 1], [], []>} : vector<16x32xbf16>, vector<32x96xbf16>, vector<16x96xf32> -> vector<16x96xf32>
    %c1_69 = arith.constant 1 : index
    %c0_70 = arith.constant 0 : index
    %c0_71 = arith.constant 0 : index
    %175 = vector.load %arg6[%c1_69, %c0_70, %c0_71] : memref<2x1x96xf32, #tpu.memory_space<vmem>>, vector<1x1x96xf32>
    %176 = vector.shape_cast %175 : vector<1x1x96xf32> to vector<1x96xf32>
    %177 = vector.broadcast %176 : vector<1x96xf32> to vector<16x96xf32>
    %178 = arith.addf %174, %177 : vector<16x96xf32>
    %179 = vector.extract_strided_slice %178 {offsets = [0, 0], sizes = [16, 32], strides = [1, 1]} : vector<16x96xf32> to vector<16x32xf32>
    %180 = vector.shape_cast %179 : vector<16x32xf32> to vector<16x4x8xf32>
    %181 = vector.extract_strided_slice %178 {offsets = [0, 32], sizes = [16, 32], strides = [1, 1]} : vector<16x96xf32> to vector<16x32xf32>
    %182 = vector.shape_cast %181 : vector<16x32xf32> to vector<16x4x8xf32>
    %183 = vector.extract_strided_slice %178 {offsets = [0, 64], sizes = [16, 32], strides = [1, 1]} : vector<16x96xf32> to vector<16x32xf32>
    %184 = vector.shape_cast %183 : vector<16x32xf32> to vector<16x4x8xf32>
    %185 = tpu.transpose %180, [1, 0, 2] : vector<16x4x8xf32> -> vector<4x16x8xf32>
    %186 = arith.truncf %185 : vector<4x16x8xf32> to vector<4x16x8xbf16>
    %187 = tpu.transpose %182, [1, 0, 2] : vector<16x4x8xf32> -> vector<4x16x8xf32>
    %188 = arith.truncf %187 : vector<4x16x8xf32> to vector<4x16x8xbf16>
    %189 = tpu.transpose %184, [1, 0, 2] : vector<16x4x8xf32> -> vector<4x16x8xf32>
    %190 = arith.truncf %189 : vector<4x16x8xf32> to vector<4x16x8xbf16>
    "tpu.trace_start"() <{level = 10 : i32, message = "hqd,hkd->hqk"}> : () -> ()
    %cst_72 = arith.constant dense<0.000000e+00> : vector<4x16x16xf32>
    %191 = tpu.matmul %186, %188, %cst_72 {dimension_numbers = #tpu.dot_dimension_numbers<[2], [2], [1], [1], [0, 0, 0, 1, 1, 1], [0], [0]>} : vector<4x16x8xbf16>, vector<4x16x8xbf16>, vector<4x16x16xf32> -> vector<4x16x16xf32>
    "tpu.trace_stop"() : () -> ()
    %cst_73 = arith.constant 0.353553385 : f32
    %192 = vector.broadcast %cst_73 : f32 to vector<4x16x16xf32>
    %193 = arith.mulf %191, %192 : vector<4x16x16xf32>
    %194 = vector.shape_cast %40 : vector<16x16xi1> to vector<1x16x16xi1>
    %cst_74 = arith.constant -1.000000e+30 : f32
    %195 = vector.shape_cast %194 : vector<1x16x16xi1> to vector<1x16x16xi1>
    %196 = vector.broadcast %195 : vector<1x16x16xi1> to vector<4x16x16xi1>
    %197 = vector.broadcast %cst_74 : f32 to vector<4x16x16xf32>
    %198 = arith.select %196, %193, %197 : vector<4x16x16xi1>, vector<4x16x16xf32>
    %cst_75 = arith.constant dense<0xFF800000> : vector<4x16xf32>
    %199 = vector.multi_reduction <maximumf>, %198, %cst_75 [2] : vector<4x16x16xf32> to vector<4x16xf32>
    %200 = vector.shape_cast %199 : vector<4x16xf32> to vector<4x16x1xf32>
    %201 = vector.broadcast %200 : vector<4x16x1xf32> to vector<4x16x16xf32>
    %202 = arith.subf %198, %201 : vector<4x16x16xf32>
    %203 = math.exp %202 : vector<4x16x16xf32>
    %cst_76 = arith.constant dense<0.000000e+00> : vector<4x16xf32>
    %204 = vector.multi_reduction <add>, %203, %cst_76 [2] : vector<4x16x16xf32> to vector<4x16xf32>
    %205 = vector.shape_cast %204 : vector<4x16xf32> to vector<4x16x1xf32>
    %206 = tpu.reciprocal %205 {approx = true} : vector<4x16x1xf32> -> vector<4x16x1xf32>
    %207 = vector.broadcast %206 : vector<4x16x1xf32> to vector<4x16x16xf32>
    %208 = arith.mulf %203, %207 : vector<4x16x16xf32>
    %209 = arith.truncf %208 : vector<4x16x16xf32> to vector<4x16x16xbf16>
    "tpu.trace_start"() <{level = 10 : i32, message = "hqk,hkd->hqd"}> : () -> ()
    %cst_77 = arith.constant dense<0.000000e+00> : vector<4x16x8xf32>
    %210 = tpu.matmul %209, %190, %cst_77 {dimension_numbers = #tpu.dot_dimension_numbers<[2], [1], [1], [2], [0, 0, 0, 1, 1, 2], [0], [0]>} : vector<4x16x16xbf16>, vector<4x16x8xbf16>, vector<4x16x8xf32> -> vector<4x16x8xf32>
    "tpu.trace_stop"() : () -> ()
    %211 = tpu.transpose %210, [1, 0, 2] : vector<4x16x8xf32> -> vector<16x4x8xf32>
    %212 = vector.shape_cast %211 : vector<16x4x8xf32> to vector<16x32xf32>
    %213 = arith.truncf %212 : vector<16x32xf32> to vector<16x32xbf16>
    %c1_78 = arith.constant 1 : index
    %c0_79 = arith.constant 0 : index
    %c0_80 = arith.constant 0 : index
    %214 = vector.load %arg7[%c1_78, %c0_79, %c0_80] : memref<2x32x32xbf16, #tpu.memory_space<vmem>>, vector<1x32x32xbf16>
    %215 = vector.shape_cast %214 : vector<1x32x32xbf16> to vector<32x32xbf16>
    %cst_81 = arith.constant dense<0.000000e+00> : vector<16x32xf32>
    %216 = tpu.matmul %213, %215, %cst_81 {dimension_numbers = #tpu.dot_dimension_numbers<[1], [0], [0], [1], [0, 0, 1, 1], [], []>} : vector<16x32xbf16>, vector<32x32xbf16>, vector<16x32xf32> -> vector<16x32xf32>
    %c1_82 = arith.constant 1 : index
    %c0_83 = arith.constant 0 : index
    %c0_84 = arith.constant 0 : index
    %217 = vector.load %arg8[%c1_82, %c0_83, %c0_84] : memref<2x1x32xf32, #tpu.memory_space<vmem>>, vector<1x1x32xf32>
    %218 = vector.shape_cast %217 : vector<1x1x32xf32> to vector<1x32xf32>
    %219 = vector.broadcast %218 : vector<1x32xf32> to vector<16x32xf32>
    %220 = arith.addf %216, %219 : vector<16x32xf32>
    %221 = arith.addf %152, %220 : vector<16x32xf32>
    %cst_85 = arith.constant dense<0.000000e+00> : vector<16xf32>
    %222 = vector.multi_reduction <add>, %221, %cst_85 [1] : vector<16x32xf32> to vector<16xf32>
    %223 = vector.shape_cast %222 : vector<16xf32> to vector<16x1xf32>
    %cst_86 = arith.constant 3.200000e+01 : f32
    %224 = vector.broadcast %cst_86 : f32 to vector<16x1xf32>
    %225 = arith.divf %223, %224 : vector<16x1xf32>
    %226 = vector.broadcast %225 : vector<16x1xf32> to vector<16x32xf32>
    %227 = arith.subf %221, %226 : vector<16x32xf32>
    %228 = arith.mulf %227, %227 : vector<16x32xf32>
    %cst_87 = arith.constant dense<0.000000e+00> : vector<16xf32>
    %229 = vector.multi_reduction <add>, %228, %cst_87 [1] : vector<16x32xf32> to vector<16xf32>
    %230 = vector.shape_cast %229 : vector<16xf32> to vector<16x1xf32>
    %cst_88 = arith.constant 3.200000e+01 : f32
    %231 = vector.broadcast %cst_88 : f32 to vector<16x1xf32>
    %232 = arith.divf %230, %231 : vector<16x1xf32>
    %233 = vector.broadcast %225 : vector<16x1xf32> to vector<16x32xf32>
    %234 = arith.subf %221, %233 : vector<16x32xf32>
    %cst_89 = arith.constant 9.99999974E-6 : f32
    %235 = vector.broadcast %cst_89 : f32 to vector<16x1xf32>
    %236 = arith.addf %232, %235 : vector<16x1xf32>
    %237 = math.rsqrt %236 : vector<16x1xf32>
    %238 = vector.broadcast %237 : vector<16x1xf32> to vector<16x32xf32>
    %239 = arith.mulf %234, %238 : vector<16x32xf32>
    %240 = arith.truncf %239 : vector<16x32xf32> to vector<16x32xbf16>
    %c1_90 = arith.constant 1 : index
    %c0_91 = arith.constant 0 : index
    %c0_92 = arith.constant 0 : index
    %241 = vector.load %arg9[%c1_90, %c0_91, %c0_92] : memref<2x32x128xbf16, #tpu.memory_space<vmem>>, vector<1x32x128xbf16>
    %242 = vector.shape_cast %241 : vector<1x32x128xbf16> to vector<32x128xbf16>
    %cst_93 = arith.constant dense<0.000000e+00> : vector<16x128xf32>
    %243 = tpu.matmul %240, %242, %cst_93 {dimension_numbers = #tpu.dot_dimension_numbers<[1], [0], [0], [1], [0, 0, 1, 1], [], []>} : vector<16x32xbf16>, vector<32x128xbf16>, vector<16x128xf32> -> vector<16x128xf32>
    %c1_94 = arith.constant 1 : index
    %c0_95 = arith.constant 0 : index
    %c0_96 = arith.constant 0 : index
    %244 = vector.load %arg10[%c1_94, %c0_95, %c0_96] : memref<2x1x128xf32, #tpu.memory_space<vmem>>, vector<1x1x128xf32>
    %245 = vector.shape_cast %244 : vector<1x1x128xf32> to vector<1x128xf32>
    %246 = vector.broadcast %245 : vector<1x128xf32> to vector<16x128xf32>
    %247 = arith.addf %243, %246 : vector<16x128xf32>
    %cst_97 = arith.constant 1.702000e+00 : f32
    %248 = vector.broadcast %cst_97 : f32 to vector<16x128xf32>
    %249 = arith.mulf %248, %247 : vector<16x128xf32>
    %250 = arith.negf %249 : vector<16x128xf32>
    %251 = math.exp %250 : vector<16x128xf32>
    %cst_98 = arith.constant 1.000000e+00 : f32
    %252 = vector.broadcast %cst_98 : f32 to vector<16x128xf32>
    %253 = arith.addf %252, %251 : vector<16x128xf32>
    %254 = arith.divf %252, %253 : vector<16x128xf32>
    %255 = arith.mulf %247, %254 : vector<16x128xf32>
    %256 = arith.truncf %255 : vector<16x128xf32> to vector<16x128xbf16>
    %c1_99 = arith.constant 1 : index
    %c0_100 = arith.constant 0 : index
    %c0_101 = arith.constant 0 : index
    %257 = vector.load %arg11[%c1_99, %c0_100, %c0_101] : memref<2x128x32xbf16, #tpu.memory_space<vmem>>, vector<1x128x32xbf16>
    %258 = vector.shape_cast %257 : vector<1x128x32xbf16> to vector<128x32xbf16>
    %cst_102 = arith.constant dense<0.000000e+00> : vector<16x32xf32>
    %259 = tpu.matmul %256, %258, %cst_102 {dimension_numbers = #tpu.dot_dimension_numbers<[1], [0], [0], [1], [0, 0, 1, 1], [], []>} : vector<16x128xbf16>, vector<128x32xbf16>, vector<16x32xf32> -> vector<16x32xf32>
    %c1_103 = arith.constant 1 : index
    %c0_104 = arith.constant 0 : index
    %c0_105 = arith.constant 0 : index
    %260 = vector.load %arg12[%c1_103, %c0_104, %c0_105] : memref<2x1x32xf32, #tpu.memory_space<vmem>>, vector<1x1x32xf32>
    %261 = vector.shape_cast %260 : vector<1x1x32xf32> to vector<1x32xf32>
    %262 = vector.broadcast %261 : vector<1x32xf32> to vector<16x32xf32>
    %263 = arith.addf %259, %262 : vector<16x32xf32>
    %264 = arith.addf %221, %263 : vector<16x32xf32>
    %265 = vector.shape_cast %264 : vector<16x32xf32> to vector<2x8x32xf32>
    %266 = vector.extract_strided_slice %265 {offsets = [0, 0, 0], sizes = [2, 1, 32], strides = [1, 1, 1]} : vector<2x8x32xf32> to vector<2x1x32xf32>
    %267 = vector.shape_cast %266 : vector<2x1x32xf32> to vector<2x32xf32>
    %cst_106 = arith.constant dense<0.000000e+00> : vector<2xf32>
    %268 = vector.multi_reduction <add>, %267, %cst_106 [1] : vector<2x32xf32> to vector<2xf32>
    %269 = vector.shape_cast %268 : vector<2xf32> to vector<2x1xf32>
    %cst_107 = arith.constant 3.200000e+01 : f32
    %270 = vector.broadcast %cst_107 : f32 to vector<2x1xf32>
    %271 = arith.divf %269, %270 : vector<2x1xf32>
    %272 = vector.broadcast %271 : vector<2x1xf32> to vector<2x32xf32>
    %273 = arith.subf %267, %272 : vector<2x32xf32>
    %274 = arith.mulf %273, %273 : vector<2x32xf32>
    %cst_108 = arith.constant dense<0.000000e+00> : vector<2xf32>
    %275 = vector.multi_reduction <add>, %274, %cst_108 [1] : vector<2x32xf32> to vector<2xf32>
    %276 = vector.shape_cast %275 : vector<2xf32> to vector<2x1xf32>
    %cst_109 = arith.constant 3.200000e+01 : f32
    %277 = vector.broadcast %cst_109 : f32 to vector<2x1xf32>
    %278 = arith.divf %276, %277 : vector<2x1xf32>
    %279 = vector.broadcast %271 : vector<2x1xf32> to vector<2x32xf32>
    %280 = arith.subf %267, %279 : vector<2x32xf32>
    %cst_110 = arith.constant 9.99999974E-6 : f32
    %281 = vector.broadcast %cst_110 : f32 to vector<2x1xf32>
    %282 = arith.addf %278, %281 : vector<2x1xf32>
    %283 = math.rsqrt %282 : vector<2x1xf32>
    %284 = vector.broadcast %283 : vector<2x1xf32> to vector<2x32xf32>
    %285 = arith.mulf %280, %284 : vector<2x32xf32>
    %286 = arith.truncf %285 : vector<2x32xf32> to vector<2x32xbf16>
    %c0_111 = arith.constant 0 : index
    %c0_112 = arith.constant 0 : index
    %287 = vector.load %arg13[%c0_111, %c0_112] : memref<32x32xbf16, #tpu.memory_space<vmem>>, vector<32x32xbf16>
    %cst_113 = arith.constant dense<0.000000e+00> : vector<2x32xf32>
    %288 = tpu.matmul %286, %287, %cst_113 {dimension_numbers = #tpu.dot_dimension_numbers<[1], [0], [0], [1], [0, 0, 1, 1], [], []>} : vector<2x32xbf16>, vector<32x32xbf16>, vector<2x32xf32> -> vector<2x32xf32>
    %c0_114 = arith.constant 0 : index
    %c0_115 = arith.constant 0 : index
    %289 = vector.load %arg14[%c0_114, %c0_115] : memref<1x32xf32, #tpu.memory_space<vmem>>, vector<1x32xf32>
    %290 = vector.broadcast %289 : vector<1x32xf32> to vector<2x32xf32>
    %291 = arith.addf %288, %290 : vector<2x32xf32>
    %292 = arith.mulf %291, %291 : vector<2x32xf32>
    %cst_116 = arith.constant dense<0.000000e+00> : vector<2xf32>
    %293 = vector.multi_reduction <add>, %292, %cst_116 [1] : vector<2x32xf32> to vector<2xf32>
    %294 = vector.shape_cast %293 : vector<2xf32> to vector<2x1xf32>
    %295 = math.rsqrt %294 : vector<2x1xf32>
    %296 = vector.broadcast %295 : vector<2x1xf32> to vector<2x32xf32>
    %297 = arith.mulf %291, %296 : vector<2x32xf32>
    %298 = arith.truncf %297 : vector<2x32xf32> to vector<2x32xbf16>
    %c0_117 = arith.constant 0 : index
    %c0_118 = arith.constant 0 : index
    %299 = vector.load %arg15[%c0_117, %c0_118] : memref<32x8xbf16, #tpu.memory_space<vmem>>, vector<32x8xbf16>
    %cst_119 = arith.constant dense<0.000000e+00> : vector<2x8xf32>
    %300 = tpu.matmul %298, %299, %cst_119 {dimension_numbers = #tpu.dot_dimension_numbers<[1], [0], [0], [1], [0, 0, 1, 1], [], []>} : vector<2x32xbf16>, vector<32x8xbf16>, vector<2x8xf32> -> vector<2x8xf32>
    %c0_120 = arith.constant 0 : index
    %c0_121 = arith.constant 0 : index
    %301 = vector.load %arg16[%c0_120, %c0_121] : memref<2x8xf32, #tpu.memory_space<vmem>>, vector<2x8xf32>
    tpu.vector_store %arg16[%c0_120, %c0_121], %300 {strides = array<i32>} : memref<2x8xf32, #tpu.memory_space<vmem>>, vector<2x8xf32>,
    return
  }
}

</mosaic_0001>

<llo_original>
// kernel: myclip_forward.1
$region0: #{myclip_forward.1}
  #allocation0 [shape = 'u32[]', space=smem, size = 0x4, offset = 0x4, fixed_abs, tag = 'smem constant byte address 0x4 - core index']
  #allocation1 [shape = 'u32[144,128]{1,0:T(1,128)}', space=vmem, size = 0x12000, scoped, tag = 'internal scratch']
  %s0 = inlined_call_operand.vmem [shape: bf16[16,192], index: 0, kind: input, shape index: {}]
  %s1 = inlined_call_operand.vmem [shape: bf16[192,32], index: 1, kind: input, shape index: {}]
  %s2 = inlined_call_operand.vmem [shape: f32[16,32], index: 2, kind: input, shape index: {}]
  %s3 = inlined_call_operand.vmem [shape: f32[1,32], index: 3, kind: input, shape index: {}]
  %s4 = inlined_call_operand.vmem [shape: f32[1,32], index: 4, kind: input, shape index: {}]
  %s5 = inlined_call_operand.vmem [shape: bf16[2,32,96], index: 5, kind: input, shape index: {}]
  %s6 = inlined_call_operand.vmem [shape: f32[2,1,96], index: 6, kind: input, shape index: {}]
  %s7 = inlined_call_operand.vmem [shape: bf16[2,32,32], index: 7, kind: input, shape index: {}]
  %s8 = inlined_call_operand.vmem [shape: f32[2,1,32], index: 8, kind: input, shape index: {}]
  %s9 = inlined_call_operand.vmem [shape: bf16[2,32,128], index: 9, kind: input, shape index: {}]
  %s10 = inlined_call_operand.vmem [shape: f32[2,1,128], index: 10, kind: input, shape index: {}]
  %s11 = inlined_call_operand.vmem [shape: bf16[2,128,32], index: 11, kind: input, shape index: {}]
  %s12 = inlined_call_operand.vmem [shape: f32[2,1,32], index: 12, kind: input, shape index: {}]
  %s13 = inlined_call_operand.vmem [shape: bf16[32,32], index: 13, kind: input, shape index: {}]
  %s14 = inlined_call_operand.vmem [shape: f32[1,32], index: 14, kind: input, shape index: {}]
  %s15 = inlined_call_operand.vmem [shape: bf16[32,8], index: 15, kind: input, shape index: {}]
  %s16 = inlined_call_operand.hbm [shape: f32[2,8], index: 16, kind: output, shape index: {}]
  %s17 = sld [smem:[#allocation0]]
  $region74: #{myclip_forward.1} parent=0
    _
  %s19 = ssub.s32 1, %s17
  %s20 = scalar_select 0, %s19, %s17
  $region1: #{myclip_forward.1} parent=0
    #allocation2 [shape = 'u8[1024]{0}', space=vmem, size = 0x400, scoped, tag = 'output window, operand 0, single buffered']
    #allocation3 [shape = 's32[1]{0}', space=sflag, size = 0x4, scoped, tag = 'scoped memory for myclip_forward.1']
    %21 = vsyncpa [#allocation3], 0
    // Predicated region
    $region2: #{myclip_forward.1} parent=1 // pred_check
      _
    $region3: #{myclip_forward.1} parent=1 // pred_check_branch
      %23 = sbr.rel (0) target = $region5
    $region4: #{myclip_forward.1} parent=1 // pred_region
      _
    $region5: #{myclip_forward.1} parent=1 // pred_fallthru
      _
    // Predicated region
    $region6: #{myclip_forward.1} parent=1 // pred_check
      _
    $region7: #{myclip_forward.1} parent=1 // pred_check_branch
      %25 = sbr.rel (0) target = $region9
    $region8: #{myclip_forward.1} parent=1 // pred_region
      _
    $region9: #{myclip_forward.1} parent=1 // pred_fallthru
      _
    // Predicated region
    $region10: #{myclip_forward.1} parent=1 // pred_check
      _
    $region11: #{myclip_forward.1} parent=1 // pred_check_branch
      %27 = sbr.rel (0) target = $region13
    $region12: #{myclip_forward.1} parent=1 // pred_region
      _
    $region13: #{myclip_forward.1} parent=1 // pred_fallthru
      _
    // Predicated region
    $region14: #{myclip_forward.1} parent=1 // pred_check
      _
    $region15: #{myclip_forward.1} parent=1 // pred_check_branch
      %29 = sbr.rel (0) target = $region17
    $region16: #{myclip_forward.1} parent=1 // pred_region
      _
    $region17: #{myclip_forward.1} parent=1 // pred_fallthru
      _
    // Predicated region
    $region18: #{myclip_forward.1} parent=1 // pred_check
      _
    $region19: #{myclip_forward.1} parent=1 // pred_check_branch
      %31 = sbr.rel (0) target = $region21
    $region20: #{myclip_forward.1} parent=1 // pred_region
      _
    $region21: #{myclip_forward.1} parent=1 // pred_fallthru
      _
    // Predicated region
    $region22: #{myclip_forward.1} parent=1 // pred_check
      _
    $region23: #{myclip_forward.1} parent=1 // pred_check_branch
      %33 = sbr.rel (0) target = $region25
    $region24: #{myclip_forward.1} parent=1 // pred_region
      _
    $region25: #{myclip_forward.1} parent=1 // pred_fallthru
      _
    // Predicated region
    $region26: #{myclip_forward.1} parent=1 // pred_check
      _
    $region27: #{myclip_forward.1} parent=1 // pred_check_branch
      %35 = sbr.rel (0) target = $region29
    $region28: #{myclip_forward.1} parent=1 // pred_region
      _
    $region29: #{myclip_forward.1} parent=1 // pred_fallthru
      _
    // Predicated region
    $region30: #{myclip_forward.1} parent=1 // pred_check
      _
    $region31: #{myclip_forward.1} parent=1 // pred_check_branch
      %37 = sbr.rel (0) target = $region33
    $region32: #{myclip_forward.1} parent=1 // pred_region
      _
    $region33: #{myclip_forward.1} parent=1 // pred_fallthru
      _
    // Predicated region
    $region34: #{myclip_forward.1} parent=1 // pred_check
      _
    $region35: #{myclip_forward.1} parent=1 // pred_check_branch
      %39 = sbr.rel (0) target = $region37
    $region36: #{myclip_forward.1} parent=1 // pred_region
      _
    $region37: #{myclip_forward.1} parent=1 // pred_fallthru
      _
    // Predicated region
    $region38: #{myclip_forward.1} parent=1 // pred_check
      _
    $region39: #{myclip_forward.1} parent=1 // pred_check_branch
      %41 = sbr.rel (0) target = $region41
    $region40: #{myclip_forward.1} parent=1 // pred_region
      _
    $region41: #{myclip_forward.1} parent=1 // pred_fallthru
      _
    // Predicated region
    $region42: #{myclip_forward.1} parent=1 // pred_check
      _
    $region43: #{myclip_forward.1} parent=1 // pred_check_branch
      %43 = sbr.rel (0) target = $region45
    $region44: #{myclip_forward.1} parent=1 // pred_region
      _
    $region45: #{myclip_forward.1} parent=1 // pred_fallthru
      _
    // Predicated region
    $region46: #{myclip_forward.1} parent=1 // pred_check
      _
    $region47: #{myclip_forward.1} parent=1 // pred_check_branch
      %45 = sbr.rel (0) target = $region49
    $region48: #{myclip_forward.1} parent=1 // pred_region
      _
    $region49: #{myclip_forward.1} parent=1 // pred_fallthru
      _
    // Predicated region
    $region50: #{myclip_forward.1} parent=1 // pred_check
      _
    $region51: #{myclip_forward.1} parent=1 // pred_check_branch
      %47 = sbr.rel (0) target = $region53
    $region52: #{myclip_forward.1} parent=1 // pred_region
      _
    $region53: #{myclip_forward.1} parent=1 // pred_fallthru
      _
    // Predicated region
    $region54: #{myclip_forward.1} parent=1 // pred_check
      _
    $region55: #{myclip_forward.1} parent=1 // pred_check_branch
      %49 = sbr.rel (0) target = $region57
    $region56: #{myclip_forward.1} parent=1 // pred_region
      _
    $region57: #{myclip_forward.1} parent=1 // pred_fallthru
      _
    // Predicated region
    $region58: #{myclip_forward.1} parent=1 // pred_check
      _
    $region59: #{myclip_forward.1} parent=1 // pred_check_branch
      %51 = sbr.rel (0) target = $region61
    $region60: #{myclip_forward.1} parent=1 // pred_region
      _
    $region61: #{myclip_forward.1} parent=1 // pred_fallthru
      _
    // Predicated region
    $region62: #{myclip_forward.1} parent=1 // pred_check
      _
    $region63: #{myclip_forward.1} parent=1 // pred_check_branch
      %53 = sbr.rel (0) target = $region65
    $region64: #{myclip_forward.1} parent=1 // pred_region
      _
    $region65: #{myclip_forward.1} parent=1 // pred_fallthru
      _
    %v55 = vld [vmem:[%s0] sm:$0xff]
    %v56 = vld [vmem:[%s0 + $0x8] sm:$0xff]
    %v57 = vld [vmem:[%s1] sm:$0xf]
    %v58 = vld [vmem:[%s1 + $0x4] sm:$0xf]
    %v59 = vld [vmem:[%s1 + $0x8] sm:$0xf]
    %v60 = vld [vmem:[%s1 + $0xc] sm:$0xf]
    %v61 = vld [vmem:[%s1 + $0x10] sm:$0xf]
    %v62 = vld [vmem:[%s1 + $0x14] sm:$0xf]
    %v63 = vld [vmem:[%s1 + $0x18] sm:$0xf]
    %v64 = vld [vmem:[%s1 + $0x1c] sm:$0xf]
    %v65 = vld [vmem:[%s1 + $0x20] sm:$0xf]
    %v66 = vld [vmem:[%s1 + $0x24] sm:$0xf]
    %v67 = vld [vmem:[%s1 + $0x28] sm:$0xf]
    %v68 = vld [vmem:[%s1 + $0x2c] sm:$0xf]
    %v69 = vld [vmem:[%s1 + $0x30] sm:$0xf]
    %v70 = vld [vmem:[%s1 + $0x34] sm:$0xf]
    %v71 = vld [vmem:[%s1 + $0x38] sm:$0xf]
    %v72 = vld [vmem:[%s1 + $0x3c] sm:$0xf]
    %v73 = vld [vmem:[%s1 + $0x40] sm:$0xf]
    %v74 = vld [vmem:[%s1 + $0x44] sm:$0xf]
    %v75 = vld [vmem:[%s1 + $0x48] sm:$0xf]
    %v76 = vld [vmem:[%s1 + $0x4c] sm:$0xf]
    %v77 = vld [vmem:[%s1 + $0x50] sm:$0xf]
    %v78 = vld [vmem:[%s1 + $0x54] sm:$0xf]
    %v79 = vld [vmem:[%s1 + $0x58] sm:$0xf]
    %v80 = vld [vmem:[%s1 + $0x5c] sm:$0xf]
    %v81 = vld [vmem:[%s2] sm:$0xff]
    %v82 = vld [vmem:[%s2 + $0x8] sm:$0xff]
    %v85 = vunpack.c.l.b16 %v55
    %v86 = vunpack.c.h.b16 %v55
    %v87 = vunpack.c.l.b16 %v56
    %v88 = vunpack.c.h.b16 %v56
    %v89 = vpack.c.b16 %v87, %v85
    %v90 = vpack.c.b16 %v88, %v86
    %v116 = vunpack.c.l.b16 %v57
    %v117 = vunpack.c.l.b16 %v58
    %v118 = vunpack.c.l.b16 %v59
    %v119 = vunpack.c.l.b16 %v60
    %v120 = vunpack.c.l.b16 %v61
    %v121 = vunpack.c.l.b16 %v62
    %v122 = vunpack.c.l.b16 %v63
    %v123 = vunpack.c.l.b16 %v64
    %v124 = vunpack.c.l.b16 %v65
    %v125 = vunpack.c.l.b16 %v66
    %v126 = vunpack.c.l.b16 %v67
    %v127 = vunpack.c.l.b16 %v68
    %v128 = vunpack.c.l.b16 %v69
    %v129 = vunpack.c.l.b16 %v70
    %v130 = vunpack.c.l.b16 %v71
    %v131 = vunpack.c.l.b16 %v72
    %v132 = vunpack.c.l.b16 %v73
    %v133 = vunpack.c.l.b16 %v74
    %v134 = vunpack.c.l.b16 %v75
    %v135 = vunpack.c.l.b16 %v76
    %v136 = vunpack.c.l.b16 %v77
    %v137 = vunpack.c.l.b16 %v78
    %v138 = vunpack.c.l.b16 %v79
    %v139 = vunpack.c.l.b16 %v80
    %v140 = vpack.c.b16 %v117, %v116
    %v141 = vpack.c.b16 %v119, %v118
    %v142 = vpack.c.b16 %v121, %v120
    %v143 = vpack.c.b16 %v123, %v122
    %v144 = vpack.c.b16 %v125, %v124
    %v145 = vpack.c.b16 %v127, %v126
    %v146 = vpack.c.b16 %v129, %v128
    %v147 = vpack.c.b16 %v131, %v130
    %v148 = vpack.c.b16 %v133, %v132
    %v149 = vpack.c.b16 %v135, %v134
    %v150 = vpack.c.b16 %v137, %v136
    %v151 = vpack.c.b16 %v139, %v138
    %vm164 = vcmask 523264
    %v166 = vsel %vm164, %v90, 0
    %168 = vmatprep.subr.bf16.mxu0 0
    %169 = vmatpush1.bf16.msra.mxu0 %v140
    %170 = vmatprep.subr.bf16.mxu0 0
    %171 = vmatpush1.bf16.msra.mxu0 %v141
    %172 = vmatprep.subr.bf16.mxu0 0
    %173 = vmatpush1.bf16.msra.mxu0 %v142
    %174 = vmatprep.subr.bf16.mxu0 0
    %175 = vmatpush1.bf16.msra.mxu0 %v143
    %176 = vmatprep.subr.bf16.mxu0 0
    %177 = vmatpush1.bf16.msra.mxu0 %v144
    %178 = vmatprep.subr.bf16.mxu0 0
    %179 = vmatpush1.bf16.msra.mxu0 %v145
    %180 = vmatprep.subr.bf16.mxu0 0
    %181 = vmatpush1.bf16.msra.mxu0 %v146
    %182 = vmatprep.subr.bf16.mxu0 0
    %183 = vmatpush1.bf16.msra.mxu0 %v147
    %184 = vmatprep.subr.bf16.mxu0 0
    %185 = vmatpush1.bf16.msra.mxu0 %v148
    %186 = vmatprep.subr.bf16.mxu0 0
    %187 = vmatpush1.bf16.msra.mxu0 %v149
    %188 = vmatprep.subr.bf16.mxu0 0
    %189 = vmatpush1.bf16.msra.mxu0 %v150
    %190 = vmatprep.subr.bf16.mxu0 0
    %191 = vmatpush1.bf16.msra.mxu0 %v151
    %192 = vmatprep.subr.bf16.mxu0 0
    %193 = vmatpush1.bf16.msra.mxu0 0
    %194 = vmatprep.subr.bf16.mxu0 0
    %195 = vmatpush1.bf16.msra.mxu0 0
    %196 = vmatprep.subr.bf16.mxu0 0
    %197 = vmatpush1.bf16.msra.mxu0 0
    %198 = vmatprep.subr.bf16.mxu0 0
    %199 = vmatpush1.bf16.msra.mxu0 0
    %200 = vmatprep.mubr.bf16.mxu0 %v166
    %201 = vmatmul.mubr.bf16.gmra.mrb[0].mxu0 %v89
    %v202 = vpop.f32.mrb[0].mxu0
    %v203 = vadd.f32 %v81, %v202
    %v204 = vpop.f32.mrb[0].mxu0
    %v205 = vpop.f32.mrb[0].mxu0
    %v206 = vadd.f32 %v82, %v205
    %v207 = vpop.f32.mrb[0].mxu0
    %208 = vdwg.mxu0
    %vm209 = vcmask 261120
    %v210 = vsel %vm209, %v203, 0.0
    %211 = vadd.xlane.f32.xlu0 %v210
    %v212 = vpop.xlane.xlu0 %211
    %v213 = vsel %vm209, %v206, 0.0
    %214 = vadd.xlane.f32.xlu0 %v213
    %v215 = vpop.xlane.xlu0 %214
    %v216 = vrcp.pop 32.0
    %v217 = vmul.f32 %v212, %v216
    %v218 = vmul.f32 %v215, %v216
    %v219 = vsub.f32 %v203, %v217
    %v220 = vsub.f32 %v206, %v218
    %v221 = vmul.f32 %v219, %v219
    %v222 = vmul.f32 %v220, %v220
    %v223 = vsel %vm209, %v221, 0.0
    %224 = vadd.xlane.f32.xlu0 %v223
    %v225 = vpop.xlane.xlu0 %224
    %v226 = vsel %vm209, %v222, 0.0
    %227 = vadd.xlane.f32.xlu0 %v226
    %v228 = vpop.xlane.xlu0 %227
    %v229 = vmul.f32 %v225, %v216
    %v230 = vmul.f32 %v228, %v216
    %v231 = vadd.f32 %v229, 1e-05
    %v232 = vadd.f32 %v230, 1e-05
    %v233 = vrsqrt.pop %v231
    %v234 = vrsqrt.pop %v232
    %v235 = vmul.f32 %v219, %v233
    %v236 = vmul.f32 %v220, %v234
    %v237 = vld [vmem:[%s3] sm:$0x1]
    %v239 = vlaneseq
    %v240 = vshrl.u32 %v239, 7
    %v241 = vsub.s32 0, %v240
    %v242 = vrot.slane %v237, %v241
    %v244 = vmul.f32 %v235, %v242
    %v245 = vmul.f32 %v236, %v242
    %v246 = vld [vmem:[%s4] sm:$0x1]
    %v248 = vlaneseq
    %v249 = vshrl.u32 %v248, 7
    %v250 = vsub.s32 0, %v249
    %v251 = vrot.slane %v246, %v250
    %v253 = vadd.f32 %v244, %v251
    %v254 = vadd.f32 %v245, %v251
    %v255 = vlaneseq
    %v256 = vshrl.u32 %v255, 7
    %v257 = vadd.s32 %v256, 8
    %v258 = vlaneseq
    %v259 = vand.u32 %v258, 127
    %v260 = vshra.s32 %v256, 3
    %v261 = vshra.s32 %v257, 3
    %v262 = vshra.s32 %v259, 3
    %vm263 = vcmp.eq.s32.totalorder %v260, %v262
    %vm264 = vcmp.eq.s32.totalorder %v261, %v262
    %v265 = vand.u32 %v259, 7
    %vm266 = vcmp.lt.s32.totalorder %v265, 5
    %vm267 = vmand %vm263, %vm266
    %vm268 = vmand %vm264, %vm266
    %v269 = vsel %vm209, %v253, 0.0
    %270 = vadd.xlane.f32.xlu0 %v269
    %v271 = vpop.xlane.xlu0 %270
    %v272 = vsel %vm209, %v254, 0.0
    %273 = vadd.xlane.f32.xlu0 %v272
    %v274 = vpop.xlane.xlu0 %273
    %v275 = vmul.f32 %v271, %v216
    %v276 = vmul.f32 %v274, %v216
    %v277 = vsub.f32 %v253, %v275
    %v278 = vsub.f32 %v254, %v276
    %v279 = vmul.f32 %v277, %v277
    %v280 = vmul.f32 %v278, %v278
    %v281 = vsel %vm209, %v279, 0.0
    %282 = vadd.xlane.f32.xlu0 %v281
    %v283 = vpop.xlane.xlu0 %282
    %v284 = vsel %vm209, %v280, 0.0
    %285 = vadd.xlane.f32.xlu0 %v284
    %v286 = vpop.xlane.xlu0 %285
    %v287 = vmul.f32 %v283, %v216
    %v288 = vmul.f32 %v286, %v216
    %v289 = vadd.f32 %v287, 1e-05
    %v290 = vadd.f32 %v288, 1e-05
    %v291 = vrsqrt.pop %v289
    %v292 = vrsqrt.pop %v290
    %v293 = vmul.f32 %v277, %v291
    %v294 = vmul.f32 %v278, %v292
    %v295 = vpack.c.bf16 %v294, %v293
    %v296 = vld [vmem:[%s5] sm:$0xf]
    %v297 = vld [vmem:[%s5 + $0x4] sm:$0xf]
    %v298 = vld [vmem:[%s5 + $0x8] sm:$0xf]
    %v299 = vld [vmem:[%s5 + $0xc] sm:$0xf]
    %v300 = vld [vmem:[%s6] sm:$0x1]
    %v302 = vlaneseq
    %v303 = vshrl.u32 %v302, 7
    %v304 = vsub.s32 0, %v303
    %v305 = vrot.slane %v300, %v304
    %v311 = vunpack.c.l.b16 %v296
    %v312 = vunpack.c.l.b16 %v297
    %v313 = vunpack.c.l.b16 %v298
    %v314 = vunpack.c.l.b16 %v299
    %v315 = vpack.c.b16 %v312, %v311
    %v316 = vpack.c.b16 %v314, %v313
    %v320 = vsel %vm209, %v295, 0
    %322 = vmatprep.subr.bf16.mxu0 0
    %323 = vmatpush1.bf16.msra.mxu0 %v315
    %324 = vmatprep.subr.bf16.mxu0 0
    %325 = vmatpush1.bf16.msra.mxu0 %v316
    %326 = vmatprep.subr.bf16.mxu0 0
    %327 = vmatpush1.bf16.msra.mxu0 0
    %328 = vmatprep.subr.bf16.mxu0 0
    %329 = vmatpush1.bf16.msra.mxu0 0
    %330 = vmatprep.subr.bf16.mxu0 0
    %331 = vmatpush1.bf16.msra.mxu0 0
    %332 = vmatprep.subr.bf16.mxu0 0
    %333 = vmatpush1.bf16.msra.mxu0 0
    %334 = vmatprep.subr.bf16.mxu0 0
    %335 = vmatpush1.bf16.msra.mxu0 0
    %336 = vmatprep.subr.bf16.mxu0 0
    %337 = vmatpush1.bf16.msra.mxu0 0
    %338 = vmatprep.subr.bf16.mxu0 0
    %339 = vmatpush1.bf16.msra.mxu0 0
    %340 = vmatprep.subr.bf16.mxu0 0
    %341 = vmatpush1.bf16.msra.mxu0 0
    %342 = vmatprep.subr.bf16.mxu0 0
    %343 = vmatpush1.bf16.msra.mxu0 0
    %344 = vmatprep.subr.bf16.mxu0 0
    %345 = vmatpush1.bf16.msra.mxu0 0
    %346 = vmatprep.subr.bf16.mxu0 0
    %347 = vmatpush1.bf16.msra.mxu0 0
    %348 = vmatprep.subr.bf16.mxu0 0
    %349 = vmatpush1.bf16.msra.mxu0 0
    %350 = vmatprep.subr.bf16.mxu0 0
    %351 = vmatpush1.bf16.msra.mxu0 0
    %352 = vmatprep.subr.bf16.mxu0 0
    %353 = vmatpush1.bf16.msra.mxu0 0
    %354 = vmatprep.mubr.bf16.mxu0 0
    %355 = vmatmul.mubr.bf16.gmra.mrb[0].mxu0 %v320
    %v356 = vpop.f32.mrb[0].mxu0
    %v357 = vadd.f32 %v305, %v356
    %v358 = vpop.f32.mrb[0].mxu0
    %v359 = vpop.f32.mrb[0].mxu0
    %v360 = vadd.f32 %v305, %v359
    %v361 = vpop.f32.mrb[0].mxu0
    %362 = vdwg.mxu0
    %365 = vrot.lane.b32.xlu0 %v357, 120
    %v366 = vpop.permute.xlu0 %365
    %367 = vrot.lane.b32.xlu0 %v360, 120
    %v368 = vpop.permute.xlu0 %367
    %371 = vrot.lane.b32.xlu0 %v357, 112
    %v372 = vpop.permute.xlu0 %371
    %373 = vrot.lane.b32.xlu0 %v360, 112
    %v374 = vpop.permute.xlu0 %373
    %377 = vrot.lane.b32.xlu0 %v357, 104
    %v378 = vpop.permute.xlu0 %377
    %379 = vrot.lane.b32.xlu0 %v360, 104
    %v380 = vpop.permute.xlu0 %379
    %v383 = vcombine.low %v357, %v372
    %v384 = vcombine.high %v357, %v372
    %v386 = vunpack.c.l.s4 1983009808
    %v387 = vunpack.c.0.s8 %v386
    %v388 = vlaneseq
    %v389 = vshrl.u32 %v388, 7
    %v390 = vsub.s32 %v387, %v389
    %v391 = vrot.slane %v383, %v390
    %v393 = vunpack.c.l.s4 1983009808
    %v394 = vunpack.c.0.s8 %v393
    %v395 = vlaneseq
    %v396 = vshrl.u32 %v395, 7
    %v397 = vsub.s32 %v394, %v396
    %v398 = vrot.slane %v384, %v397
    %v399 = vcombine.low %v366, %v378
    %v400 = vcombine.high %v366, %v378
    %v402 = vunpack.c.l.s4 1983009808
    %v403 = vunpack.c.0.s8 %v402
    %v404 = vlaneseq
    %v405 = vshrl.u32 %v404, 7
    %v406 = vsub.s32 %v403, %v405
    %v407 = vrot.slane %v399, %v406
    %v409 = vunpack.c.l.s4 1983009808
    %v410 = vunpack.c.0.s8 %v409
    %v411 = vlaneseq
    %v412 = vshrl.u32 %v411, 7
    %v413 = vsub.s32 %v410, %v412
    %v414 = vrot.slane %v400, %v413
    %v415 = vcombine.low %v391, %v407
    %v416 = vcombine.high %v391, %v407
    %v418 = vunpack.c.l.s4 1934713408
    %v419 = vunpack.c.0.s8 %v418
    %v420 = vlaneseq
    %v421 = vshrl.u32 %v420, 7
    %v422 = vsub.s32 %v419, %v421
    %v423 = vrot.slane %v415, %v422
    %v425 = vunpack.c.l.s4 1934713408
    %v426 = vunpack.c.0.s8 %v425
    %v427 = vlaneseq
    %v428 = vshrl.u32 %v427, 7
    %v429 = vsub.s32 %v426, %v428
    %v430 = vrot.slane %v416, %v429
    %v431 = vcombine.low %v398, %v414
    %v432 = vcombine.high %v398, %v414
    %v434 = vunpack.c.l.s4 1934713408
    %v435 = vunpack.c.0.s8 %v434
    %v436 = vlaneseq
    %v437 = vshrl.u32 %v436, 7
    %v438 = vsub.s32 %v435, %v437
    %v439 = vrot.slane %v431, %v438
    %v441 = vunpack.c.l.s4 1934713408
    %v442 = vunpack.c.0.s8 %v441
    %v443 = vlaneseq
    %v444 = vshrl.u32 %v443, 7
    %v445 = vsub.s32 %v442, %v444
    %v446 = vrot.slane %v432, %v445
    %v447 = vcombine.high %v423, 0.0
    %v448 = vcombine.high %v430, 0.0
    %v449 = vcombine.high %v439, 0.0
    %v450 = vcombine.high %v446, 0.0
    %v451 = vcombine.low %v360, %v374
    %v452 = vcombine.high %v360, %v374
    %v454 = vunpack.c.l.s4 1983009808
    %v455 = vunpack.c.0.s8 %v454
    %v456 = vlaneseq
    %v457 = vshrl.u32 %v456, 7
    %v458 = vsub.s32 %v455, %v457
    %v459 = vrot.slane %v451, %v458
    %v461 = vunpack.c.l.s4 1983009808
    %v462 = vunpack.c.0.s8 %v461
    %v463 = vlaneseq
    %v464 = vshrl.u32 %v463, 7
    %v465 = vsub.s32 %v462, %v464
    %v466 = vrot.slane %v452, %v465
    %v467 = vcombine.low %v368, %v380
    %v468 = vcombine.high %v368, %v380
    %v470 = vunpack.c.l.s4 1983009808
    %v471 = vunpack.c.0.s8 %v470
    %v472 = vlaneseq
    %v473 = vshrl.u32 %v472, 7
    %v474 = vsub.s32 %v471, %v473
    %v475 = vrot.slane %v467, %v474
    %v477 = vunpack.c.l.s4 1983009808
    %v478 = vunpack.c.0.s8 %v477
    %v479 = vlaneseq
    %v480 = vshrl.u32 %v479, 7
    %v481 = vsub.s32 %v478, %v480
    %v482 = vrot.slane %v468, %v481
    %v483 = vcombine.low %v459, %v475
    %v484 = vcombine.high %v459, %v475
    %v486 = vunpack.c.l.s4 1934713408
    %v487 = vunpack.c.0.s8 %v486
    %v488 = vlaneseq
    %v489 = vshrl.u32 %v488, 7
    %v490 = vsub.s32 %v487, %v489
    %v491 = vrot.slane %v483, %v490
    %v493 = vunpack.c.l.s4 1934713408
    %v494 = vunpack.c.0.s8 %v493
    %v495 = vlaneseq
    %v496 = vshrl.u32 %v495, 7
    %v497 = vsub.s32 %v494, %v496
    %v498 = vrot.slane %v484, %v497
    %v499 = vcombine.low %v466, %v482
    %v500 = vcombine.high %v466, %v482
    %v502 = vunpack.c.l.s4 1934713408
    %v503 = vunpack.c.0.s8 %v502
    %v504 = vlaneseq
    %v505 = vshrl.u32 %v504, 7
    %v506 = vsub.s32 %v503, %v505
    %v507 = vrot.slane %v499, %v506
    %v509 = vunpack.c.l.s4 1934713408
    %v510 = vunpack.c.0.s8 %v509
    %v511 = vlaneseq
    %v512 = vshrl.u32 %v511, 7
    %v513 = vsub.s32 %v510, %v512
    %v514 = vrot.slane %v500, %v513
    %v515 = vcombine.high %v491, 0.0
    %v516 = vcombine.high %v498, 0.0
    %v517 = vcombine.high %v507, 0.0
    %v518 = vcombine.high %v514, 0.0
    %519 = vrot.lane.b32.xlu0 %v357, 96
    %v520 = vpop.permute.xlu0 %519
    %521 = vrot.lane.b32.xlu0 %v360, 96
    %v522 = vpop.permute.xlu0 %521
    %523 = vrot.lane.b32.xlu0 %v366, 96
    %v524 = vpop.permute.xlu0 %523
    %525 = vrot.lane.b32.xlu0 %v368, 96
    %v526 = vpop.permute.xlu0 %525
    %527 = vrot.lane.b32.xlu0 %v372, 96
    %v528 = vpop.permute.xlu0 %527
    %529 = vrot.lane.b32.xlu0 %v374, 96
    %v530 = vpop.permute.xlu0 %529
    %531 = vrot.lane.b32.xlu0 %v378, 96
    %v532 = vpop.permute.xlu0 %531
    %533 = vrot.lane.b32.xlu0 %v380, 96
    %v534 = vpop.permute.xlu0 %533
    %v543 = vcombine.low %v520, %v528
    %v544 = vcombine.high %v520, %v528
    %v546 = vunpack.c.l.s4 1983009808
    %v547 = vunpack.c.0.s8 %v546
    %v548 = vlaneseq
    %v549 = vshrl.u32 %v548, 7
    %v550 = vsub.s32 %v547, %v549
    %v551 = vrot.slane %v543, %v550
    %v553 = vunpack.c.l.s4 1983009808
    %v554 = vunpack.c.0.s8 %v553
    %v555 = vlaneseq
    %v556 = vshrl.u32 %v555, 7
    %v557 = vsub.s32 %v554, %v556
    %v558 = vrot.slane %v544, %v557
    %v559 = vcombine.low %v524, %v532
    %v560 = vcombine.high %v524, %v532
    %v562 = vunpack.c.l.s4 1983009808
    %v563 = vunpack.c.0.s8 %v562
    %v564 = vlaneseq
    %v565 = vshrl.u32 %v564, 7
    %v566 = vsub.s32 %v563, %v565
    %v567 = vrot.slane %v559, %v566
    %v569 = vunpack.c.l.s4 1983009808
    %v570 = vunpack.c.0.s8 %v569
    %v571 = vlaneseq
    %v572 = vshrl.u32 %v571, 7
    %v573 = vsub.s32 %v570, %v572
    %v574 = vrot.slane %v560, %v573
    %v575 = vcombine.low %v551, %v567
    %v576 = vcombine.high %v551, %v567
    %v578 = vunpack.c.l.s4 1934713408
    %v579 = vunpack.c.0.s8 %v578
    %v580 = vlaneseq
    %v581 = vshrl.u32 %v580, 7
    %v582 = vsub.s32 %v579, %v581
    %v583 = vrot.slane %v575, %v582
    %v585 = vunpack.c.l.s4 1934713408
    %v586 = vunpack.c.0.s8 %v585
    %v587 = vlaneseq
    %v588 = vshrl.u32 %v587, 7
    %v589 = vsub.s32 %v586, %v588
    %v590 = vrot.slane %v576, %v589
    %v591 = vcombine.low %v558, %v574
    %v592 = vcombine.high %v558, %v574
    %v594 = vunpack.c.l.s4 1934713408
    %v595 = vunpack.c.0.s8 %v594
    %v596 = vlaneseq
    %v597 = vshrl.u32 %v596, 7
    %v598 = vsub.s32 %v595, %v597
    %v599 = vrot.slane %v591, %v598
    %v601 = vunpack.c.l.s4 1934713408
    %v602 = vunpack.c.0.s8 %v601
    %v603 = vlaneseq
    %v604 = vshrl.u32 %v603, 7
    %v605 = vsub.s32 %v602, %v604
    %v606 = vrot.slane %v592, %v605
    %v607 = vcombine.high %v583, 0.0
    %v608 = vcombine.high %v590, 0.0
    %v609 = vcombine.high %v599, 0.0
    %v610 = vcombine.high %v606, 0.0
    %v611 = vcombine.low %v522, %v530
    %v612 = vcombine.high %v522, %v530
    %v614 = vunpack.c.l.s4 1983009808
    %v615 = vunpack.c.0.s8 %v614
    %v616 = vlaneseq
    %v617 = vshrl.u32 %v616, 7
    %v618 = vsub.s32 %v615, %v617
    %v619 = vrot.slane %v611, %v618
    %v621 = vunpack.c.l.s4 1983009808
    %v622 = vunpack.c.0.s8 %v621
    %v623 = vlaneseq
    %v624 = vshrl.u32 %v623, 7
    %v625 = vsub.s32 %v622, %v624
    %v626 = vrot.slane %v612, %v625
    %v627 = vcombine.low %v526, %v534
    %v628 = vcombine.high %v526, %v534
    %v630 = vunpack.c.l.s4 1983009808
    %v631 = vunpack.c.0.s8 %v630
    %v632 = vlaneseq
    %v633 = vshrl.u32 %v632, 7
    %v634 = vsub.s32 %v631, %v633
    %v635 = vrot.slane %v627, %v634
    %v637 = vunpack.c.l.s4 1983009808
    %v638 = vunpack.c.0.s8 %v637
    %v639 = vlaneseq
    %v640 = vshrl.u32 %v639, 7
    %v641 = vsub.s32 %v638, %v640
    %v642 = vrot.slane %v628, %v641
    %v643 = vcombine.low %v619, %v635
    %v644 = vcombine.high %v619, %v635
    %v646 = vunpack.c.l.s4 1934713408
    %v647 = vunpack.c.0.s8 %v646
    %v648 = vlaneseq
    %v649 = vshrl.u32 %v648, 7
    %v650 = vsub.s32 %v647, %v649
    %v651 = vrot.slane %v643, %v650
    %v653 = vunpack.c.l.s4 1934713408
    %v654 = vunpack.c.0.s8 %v653
    %v655 = vlaneseq
    %v656 = vshrl.u32 %v655, 7
    %v657 = vsub.s32 %v654, %v656
    %v658 = vrot.slane %v644, %v657
    %v659 = vcombine.low %v626, %v642
    %v660 = vcombine.high %v626, %v642
    %v662 = vunpack.c.l.s4 1934713408
    %v663 = vunpack.c.0.s8 %v662
    %v664 = vlaneseq
    %v665 = vshrl.u32 %v664, 7
    %v666 = vsub.s32 %v663, %v665
    %v667 = vrot.slane %v659, %v666
    %v669 = vunpack.c.l.s4 1934713408
    %v670 = vunpack.c.0.s8 %v669
    %v671 = vlaneseq
    %v672 = vshrl.u32 %v671, 7
    %v673 = vsub.s32 %v670, %v672
    %v674 = vrot.slane %v660, %v673
    %v675 = vcombine.high %v651, 0.0
    %v676 = vcombine.high %v658, 0.0
    %v677 = vcombine.high %v667, 0.0
    %v678 = vcombine.high %v674, 0.0
    %679 = vrot.lane.b32.xlu0 %v357, 64
    %v680 = vpop.permute.xlu0 %679
    %681 = vrot.lane.b32.xlu0 %v360, 64
    %v682 = vpop.permute.xlu0 %681
    %683 = vrot.lane.b32.xlu0 %v366, 64
    %v684 = vpop.permute.xlu0 %683
    %685 = vrot.lane.b32.xlu0 %v368, 64
    %v686 = vpop.permute.xlu0 %685
    %687 = vrot.lane.b32.xlu0 %v372, 64
    %v688 = vpop.permute.xlu0 %687
    %689 = vrot.lane.b32.xlu0 %v374, 64
    %v690 = vpop.permute.xlu0 %689
    %691 = vrot.lane.b32.xlu0 %v378, 64
    %v692 = vpop.permute.xlu0 %691
    %693 = vrot.lane.b32.xlu0 %v380, 64
    %v694 = vpop.permute.xlu0 %693
    %v703 = vcombine.low %v680, %v688
    %v704 = vcombine.high %v680, %v688
    %v706 = vunpack.c.l.s4 1983009808
    %v707 = vunpack.c.0.s8 %v706
    %v708 = vlaneseq
    %v709 = vshrl.u32 %v708, 7
    %v710 = vsub.s32 %v707, %v709
    %v711 = vrot.slane %v703, %v710
    %v713 = vunpack.c.l.s4 1983009808
    %v714 = vunpack.c.0.s8 %v713
    %v715 = vlaneseq
    %v716 = vshrl.u32 %v715, 7
    %v717 = vsub.s32 %v714, %v716
    %v718 = vrot.slane %v704, %v717
    %v719 = vcombine.low %v684, %v692
    %v720 = vcombine.high %v684, %v692
    %v722 = vunpack.c.l.s4 1983009808
    %v723 = vunpack.c.0.s8 %v722
    %v724 = vlaneseq
    %v725 = vshrl.u32 %v724, 7
    %v726 = vsub.s32 %v723, %v725
    %v727 = vrot.slane %v719, %v726
    %v729 = vunpack.c.l.s4 1983009808
    %v730 = vunpack.c.0.s8 %v729
    %v731 = vlaneseq
    %v732 = vshrl.u32 %v731, 7
    %v733 = vsub.s32 %v730, %v732
    %v734 = vrot.slane %v720, %v733
    %v735 = vcombine.low %v711, %v727
    %v736 = vcombine.high %v711, %v727
    %v738 = vunpack.c.l.s4 1934713408
    %v739 = vunpack.c.0.s8 %v738
    %v740 = vlaneseq
    %v741 = vshrl.u32 %v740, 7
    %v742 = vsub.s32 %v739, %v741
    %v743 = vrot.slane %v735, %v742
    %v745 = vunpack.c.l.s4 1934713408
    %v746 = vunpack.c.0.s8 %v745
    %v747 = vlaneseq
    %v748 = vshrl.u32 %v747, 7
    %v749 = vsub.s32 %v746, %v748
    %v750 = vrot.slane %v736, %v749
    %v751 = vcombine.low %v718, %v734
    %v752 = vcombine.high %v718, %v734
    %v754 = vunpack.c.l.s4 1934713408
    %v755 = vunpack.c.0.s8 %v754
    %v756 = vlaneseq
    %v757 = vshrl.u32 %v756, 7
    %v758 = vsub.s32 %v755, %v757
    %v759 = vrot.slane %v751, %v758
    %v761 = vunpack.c.l.s4 1934713408
    %v762 = vunpack.c.0.s8 %v761
    %v763 = vlaneseq
    %v764 = vshrl.u32 %v763, 7
    %v765 = vsub.s32 %v762, %v764
    %v766 = vrot.slane %v752, %v765
    %v767 = vcombine.high %v743, 0.0
    %v768 = vcombine.high %v750, 0.0
    %v769 = vcombine.high %v759, 0.0
    %v770 = vcombine.high %v766, 0.0
    %v771 = vcombine.low %v682, %v690
    %v772 = vcombine.high %v682, %v690
    %v774 = vunpack.c.l.s4 1983009808
    %v775 = vunpack.c.0.s8 %v774
    %v776 = vlaneseq
    %v777 = vshrl.u32 %v776, 7
    %v778 = vsub.s32 %v775, %v777
    %v779 = vrot.slane %v771, %v778
    %v781 = vunpack.c.l.s4 1983009808
    %v782 = vunpack.c.0.s8 %v781
    %v783 = vlaneseq
    %v784 = vshrl.u32 %v783, 7
    %v785 = vsub.s32 %v782, %v784
    %v786 = vrot.slane %v772, %v785
    %v787 = vcombine.low %v686, %v694
    %v788 = vcombine.high %v686, %v694
    %v790 = vunpack.c.l.s4 1983009808
    %v791 = vunpack.c.0.s8 %v790
    %v792 = vlaneseq
    %v793 = vshrl.u32 %v792, 7
    %v794 = vsub.s32 %v791, %v793
    %v795 = vrot.slane %v787, %v794
    %v797 = vunpack.c.l.s4 1983009808
    %v798 = vunpack.c.0.s8 %v797
    %v799 = vlaneseq
    %v800 = vshrl.u32 %v799, 7
    %v801 = vsub.s32 %v798, %v800
    %v802 = vrot.slane %v788, %v801
    %v803 = vcombine.low %v779, %v795
    %v804 = vcombine.high %v779, %v795
    %v806 = vunpack.c.l.s4 1934713408
    %v807 = vunpack.c.0.s8 %v806
    %v808 = vlaneseq
    %v809 = vshrl.u32 %v808, 7
    %v810 = vsub.s32 %v807, %v809
    %v811 = vrot.slane %v803, %v810
    %v813 = vunpack.c.l.s4 1934713408
    %v814 = vunpack.c.0.s8 %v813
    %v815 = vlaneseq
    %v816 = vshrl.u32 %v815, 7
    %v817 = vsub.s32 %v814, %v816
    %v818 = vrot.slane %v804, %v817
    %v819 = vcombine.low %v786, %v802
    %v820 = vcombine.high %v786, %v802
    %v822 = vunpack.c.l.s4 1934713408
    %v823 = vunpack.c.0.s8 %v822
    %v824 = vlaneseq
    %v825 = vshrl.u32 %v824, 7
    %v826 = vsub.s32 %v823, %v825
    %v827 = vrot.slane %v819, %v826
    %v829 = vunpack.c.l.s4 1934713408
    %v830 = vunpack.c.0.s8 %v829
    %v831 = vlaneseq
    %v832 = vshrl.u32 %v831, 7
    %v833 = vsub.s32 %v830, %v832
    %v834 = vrot.slane %v820, %v833
    %v835 = vcombine.high %v811, 0.0
    %v836 = vcombine.high %v818, 0.0
    %v837 = vcombine.high %v827, 0.0
    %v838 = vcombine.high %v834, 0.0
    %v839 = vcombine.low %v423, %v430
    %v841 = vunpack.c.l.s4 1983009808
    %v842 = vunpack.c.0.s8 %v841
    %v843 = vlaneseq
    %v844 = vshrl.u32 %v843, 7
    %v845 = vsub.s32 %v842, %v844
    %v846 = vrot.slane %v839, %v845
    %v847 = vcombine.low %v447, %v448
    %v849 = vunpack.c.l.s4 1983009808
    %v850 = vunpack.c.0.s8 %v849
    %v851 = vlaneseq
    %v852 = vshrl.u32 %v851, 7
    %v853 = vsub.s32 %v850, %v852
    %v854 = vrot.slane %v847, %v853
    %v855 = vcombine.low %v439, %v446
    %v857 = vunpack.c.l.s4 1983009808
    %v858 = vunpack.c.0.s8 %v857
    %v859 = vlaneseq
    %v860 = vshrl.u32 %v859, 7
    %v861 = vsub.s32 %v858, %v860
    %v862 = vrot.slane %v855, %v861
    %v863 = vcombine.low %v449, %v450
    %v865 = vunpack.c.l.s4 1983009808
    %v866 = vunpack.c.0.s8 %v865
    %v867 = vlaneseq
    %v868 = vshrl.u32 %v867, 7
    %v869 = vsub.s32 %v866, %v868
    %v870 = vrot.slane %v863, %v869
    %v871 = vcombine.low %v846, %v854
    %v872 = vcombine.high %v846, %v854
    %v874 = vunpack.c.l.s4 1934713408
    %v875 = vunpack.c.0.s8 %v874
    %v876 = vlaneseq
    %v877 = vshrl.u32 %v876, 7
    %v878 = vsub.s32 %v875, %v877
    %v879 = vrot.slane %v871, %v878
    %v881 = vunpack.c.l.s4 1934713408
    %v882 = vunpack.c.0.s8 %v881
    %v883 = vlaneseq
    %v884 = vshrl.u32 %v883, 7
    %v885 = vsub.s32 %v882, %v884
    %v886 = vrot.slane %v872, %v885
    %v887 = vcombine.low %v862, %v870
    %v888 = vcombine.high %v862, %v870
    %v890 = vunpack.c.l.s4 1934713408
    %v891 = vunpack.c.0.s8 %v890
    %v892 = vlaneseq
    %v893 = vshrl.u32 %v892, 7
    %v894 = vsub.s32 %v891, %v893
    %v895 = vrot.slane %v887, %v894
    %v897 = vunpack.c.l.s4 1934713408
    %v898 = vunpack.c.0.s8 %v897
    %v899 = vlaneseq
    %v900 = vshrl.u32 %v899, 7
    %v901 = vsub.s32 %v898, %v900
    %v902 = vrot.slane %v888, %v901
    %v903 = vcombine.low %v879, %v895
    %v904 = vcombine.high %v879, %v895
    %v905 = vcombine.low %v886, %v902
    %v906 = vcombine.high %v886, %v902
    %v907 = vcombine.low %v491, %v498
    %v909 = vunpack.c.l.s4 1983009808
    %v910 = vunpack.c.0.s8 %v909
    %v911 = vlaneseq
    %v912 = vshrl.u32 %v911, 7
    %v913 = vsub.s32 %v910, %v912
    %v914 = vrot.slane %v907, %v913
    %v915 = vcombine.low %v515, %v516
    %v917 = vunpack.c.l.s4 1983009808
    %v918 = vunpack.c.0.s8 %v917
    %v919 = vlaneseq
    %v920 = vshrl.u32 %v919, 7
    %v921 = vsub.s32 %v918, %v920
    %v922 = vrot.slane %v915, %v921
    %v923 = vcombine.low %v507, %v514
    %v925 = vunpack.c.l.s4 1983009808
    %v926 = vunpack.c.0.s8 %v925
    %v927 = vlaneseq
    %v928 = vshrl.u32 %v927, 7
    %v929 = vsub.s32 %v926, %v928
    %v930 = vrot.slane %v923, %v929
    %v931 = vcombine.low %v517, %v518
    %v933 = vunpack.c.l.s4 1983009808
    %v934 = vunpack.c.0.s8 %v933
    %v935 = vlaneseq
    %v936 = vshrl.u32 %v935, 7
    %v937 = vsub.s32 %v934, %v936
    %v938 = vrot.slane %v931, %v937
    %v939 = vcombine.low %v914, %v922
    %v940 = vcombine.high %v914, %v922
    %v942 = vunpack.c.l.s4 1934713408
    %v943 = vunpack.c.0.s8 %v942
    %v944 = vlaneseq
    %v945 = vshrl.u32 %v944, 7
    %v946 = vsub.s32 %v943, %v945
    %v947 = vrot.slane %v939, %v946
    %v949 = vunpack.c.l.s4 1934713408
    %v950 = vunpack.c.0.s8 %v949
    %v951 = vlaneseq
    %v952 = vshrl.u32 %v951, 7
    %v953 = vsub.s32 %v950, %v952
    %v954 = vrot.slane %v940, %v953
    %v955 = vcombine.low %v930, %v938
    %v956 = vcombine.high %v930, %v938
    %v958 = vunpack.c.l.s4 1934713408
    %v959 = vunpack.c.0.s8 %v958
    %v960 = vlaneseq
    %v961 = vshrl.u32 %v960, 7
    %v962 = vsub.s32 %v959, %v961
    %v963 = vrot.slane %v955, %v962
    %v965 = vunpack.c.l.s4 1934713408
    %v966 = vunpack.c.0.s8 %v965
    %v967 = vlaneseq
    %v968 = vshrl.u32 %v967, 7
    %v969 = vsub.s32 %v966, %v968
    %v970 = vrot.slane %v956, %v969
    %v971 = vcombine.low %v947, %v963
    %v972 = vcombine.high %v947, %v963
    %v973 = vcombine.low %v954, %v970
    %v974 = vcombine.high %v954, %v970
    %v975 = vpack.c.bf16 %v971, %v903
    %v976 = vpack.c.bf16 %v972, %v904
    %v977 = vpack.c.bf16 %v973, %v905
    %v978 = vpack.c.bf16 %v974, %v906
    %v979 = vcombine.low %v583, %v590
    %v981 = vunpack.c.l.s4 1983009808
    %v982 = vunpack.c.0.s8 %v981
    %v983 = vlaneseq
    %v984 = vshrl.u32 %v983, 7
    %v985 = vsub.s32 %v982, %v984
    %v986 = vrot.slane %v979, %v985
    %v987 = vcombine.low %v607, %v608
    %v989 = vunpack.c.l.s4 1983009808
    %v990 = vunpack.c.0.s8 %v989
    %v991 = vlaneseq
    %v992 = vshrl.u32 %v991, 7
    %v993 = vsub.s32 %v990, %v992
    %v994 = vrot.slane %v987, %v993
    %v995 = vcombine.low %v599, %v606
    %v997 = vunpack.c.l.s4 1983009808
    %v998 = vunpack.c.0.s8 %v997
    %v999 = vlaneseq
    %v1000 = vshrl.u32 %v999, 7
    %v1001 = vsub.s32 %v998, %v1000
    %v1002 = vrot.slane %v995, %v1001
    %v1003 = vcombine.low %v609, %v610
    %v1005 = vunpack.c.l.s4 1983009808
    %v1006 = vunpack.c.0.s8 %v1005
    %v1007 = vlaneseq
    %v1008 = vshrl.u32 %v1007, 7
    %v1009 = vsub.s32 %v1006, %v1008
    %v1010 = vrot.slane %v1003, %v1009
    %v1011 = vcombine.low %v986, %v994
    %v1012 = vcombine.high %v986, %v994
    %v1014 = vunpack.c.l.s4 1934713408
    %v1015 = vunpack.c.0.s8 %v1014
    %v1016 = vlaneseq
    %v1017 = vshrl.u32 %v1016, 7
    %v1018 = vsub.s32 %v1015, %v1017
    %v1019 = vrot.slane %v1011, %v1018
    %v1021 = vunpack.c.l.s4 1934713408
    %v1022 = vunpack.c.0.s8 %v1021
    %v1023 = vlaneseq
    %v1024 = vshrl.u32 %v1023, 7
    %v1025 = vsub.s32 %v1022, %v1024
    %v1026 = vrot.slane %v1012, %v1025
    %v1027 = vcombine.low %v1002, %v1010
    %v1028 = vcombine.high %v1002, %v1010
    %v1030 = vunpack.c.l.s4 1934713408
    %v1031 = vunpack.c.0.s8 %v1030
    %v1032 = vlaneseq
    %v1033 = vshrl.u32 %v1032, 7
    %v1034 = vsub.s32 %v1031, %v1033
    %v1035 = vrot.slane %v1027, %v1034
    %v1037 = vunpack.c.l.s4 1934713408
    %v1038 = vunpack.c.0.s8 %v1037
    %v1039 = vlaneseq
    %v1040 = vshrl.u32 %v1039, 7
    %v1041 = vsub.s32 %v1038, %v1040
    %v1042 = vrot.slane %v1028, %v1041
    %v1043 = vcombine.low %v1019, %v1035
    %v1044 = vcombine.high %v1019, %v1035
    %v1045 = vcombine.low %v1026, %v1042
    %v1046 = vcombine.high %v1026, %v1042
    %v1047 = vcombine.low %v651, %v658
    %v1049 = vunpack.c.l.s4 1983009808
    %v1050 = vunpack.c.0.s8 %v1049
    %v1051 = vlaneseq
    %v1052 = vshrl.u32 %v1051, 7
    %v1053 = vsub.s32 %v1050, %v1052
    %v1054 = vrot.slane %v1047, %v1053
    %v1055 = vcombine.low %v675, %v676
    %v1057 = vunpack.c.l.s4 1983009808
    %v1058 = vunpack.c.0.s8 %v1057
    %v1059 = vlaneseq
    %v1060 = vshrl.u32 %v1059, 7
    %v1061 = vsub.s32 %v1058, %v1060
    %v1062 = vrot.slane %v1055, %v1061
    %v1063 = vcombine.low %v667, %v674
    %v1065 = vunpack.c.l.s4 1983009808
    %v1066 = vunpack.c.0.s8 %v1065
    %v1067 = vlaneseq
    %v1068 = vshrl.u32 %v1067, 7
    %v1069 = vsub.s32 %v1066, %v1068
    %v1070 = vrot.slane %v1063, %v1069
    %v1071 = vcombine.low %v677, %v678
    %v1073 = vunpack.c.l.s4 1983009808
    %v1074 = vunpack.c.0.s8 %v1073
    %v1075 = vlaneseq
    %v1076 = vshrl.u32 %v1075, 7
    %v1077 = vsub.s32 %v1074, %v1076
    %v1078 = vrot.slane %v1071, %v1077
    %v1079 = vcombine.low %v1054, %v1062
    %v1080 = vcombine.high %v1054, %v1062
    %v1082 = vunpack.c.l.s4 1934713408
    %v1083 = vunpack.c.0.s8 %v1082
    %v1084 = vlaneseq
    %v1085 = vshrl.u32 %v1084, 7
    %v1086 = vsub.s32 %v1083, %v1085
    %v1087 = vrot.slane %v1079, %v1086
    %v1089 = vunpack.c.l.s4 1934713408
    %v1090 = vunpack.c.0.s8 %v1089
    %v1091 = vlaneseq
    %v1092 = vshrl.u32 %v1091, 7
    %v1093 = vsub.s32 %v1090, %v1092
    %v1094 = vrot.slane %v1080, %v1093
    %v1095 = vcombine.low %v1070, %v1078
    %v1096 = vcombine.high %v1070, %v1078
    %v1098 = vunpack.c.l.s4 1934713408
    %v1099 = vunpack.c.0.s8 %v1098
    %v1100 = vlaneseq
    %v1101 = vshrl.u32 %v1100, 7
    %v1102 = vsub.s32 %v1099, %v1101
    %v1103 = vrot.slane %v1095, %v1102
    %v1105 = vunpack.c.l.s4 1934713408
    %v1106 = vunpack.c.0.s8 %v1105
    %v1107 = vlaneseq
    %v1108 = vshrl.u32 %v1107, 7
    %v1109 = vsub.s32 %v1106, %v1108
    %v1110 = vrot.slane %v1096, %v1109
    %v1111 = vcombine.low %v1087, %v1103
    %v1112 = vcombine.high %v1087, %v1103
    %v1113 = vcombine.low %v1094, %v1110
    %v1114 = vcombine.high %v1094, %v1110
    %v1115 = vpack.c.bf16 %v1111, %v1043
    %v1116 = vpack.c.bf16 %v1112, %v1044
    %v1117 = vpack.c.bf16 %v1113, %v1045
    %v1118 = vpack.c.bf16 %v1114, %v1046
    %v1119 = vcombine.low %v743, %v750
    %v1121 = vunpack.c.l.s4 1983009808
    %v1122 = vunpack.c.0.s8 %v1121
    %v1123 = vlaneseq
    %v1124 = vshrl.u32 %v1123, 7
    %v1125 = vsub.s32 %v1122, %v1124
    %v1126 = vrot.slane %v1119, %v1125
    %v1127 = vcombine.low %v767, %v768
    %v1129 = vunpack.c.l.s4 1983009808
    %v1130 = vunpack.c.0.s8 %v1129
    %v1131 = vlaneseq
    %v1132 = vshrl.u32 %v1131, 7
    %v1133 = vsub.s32 %v1130, %v1132
    %v1134 = vrot.slane %v1127, %v1133
    %v1135 = vcombine.low %v759, %v766
    %v1137 = vunpack.c.l.s4 1983009808
    %v1138 = vunpack.c.0.s8 %v1137
    %v1139 = vlaneseq
    %v1140 = vshrl.u32 %v1139, 7
    %v1141 = vsub.s32 %v1138, %v1140
    %v1142 = vrot.slane %v1135, %v1141
    %v1143 = vcombine.low %v769, %v770
    %v1145 = vunpack.c.l.s4 1983009808
    %v1146 = vunpack.c.0.s8 %v1145
    %v1147 = vlaneseq
    %v1148 = vshrl.u32 %v1147, 7
    %v1149 = vsub.s32 %v1146, %v1148
    %v1150 = vrot.slane %v1143, %v1149
    %v1151 = vcombine.low %v1126, %v1134
    %v1152 = vcombine.high %v1126, %v1134
    %v1154 = vunpack.c.l.s4 1934713408
    %v1155 = vunpack.c.0.s8 %v1154
    %v1156 = vlaneseq
    %v1157 = vshrl.u32 %v1156, 7
    %v1158 = vsub.s32 %v1155, %v1157
    %v1159 = vrot.slane %v1151, %v1158
    %v1161 = vunpack.c.l.s4 1934713408
    %v1162 = vunpack.c.0.s8 %v1161
    %v1163 = vlaneseq
    %v1164 = vshrl.u32 %v1163, 7
    %v1165 = vsub.s32 %v1162, %v1164
    %v1166 = vrot.slane %v1152, %v1165
    %v1167 = vcombine.low %v1142, %v1150
    %v1168 = vcombine.high %v1142, %v1150
    %v1170 = vunpack.c.l.s4 1934713408
    %v1171 = vunpack.c.0.s8 %v1170
    %v1172 = vlaneseq
    %v1173 = vshrl.u32 %v1172, 7
    %v1174 = vsub.s32 %v1171, %v1173
    %v1175 = vrot.slane %v1167, %v1174
    %v1177 = vunpack.c.l.s4 1934713408
    %v1178 = vunpack.c.0.s8 %v1177
    %v1179 = vlaneseq
    %v1180 = vshrl.u32 %v1179, 7
    %v1181 = vsub.s32 %v1178, %v1180
    %v1182 = vrot.slane %v1168, %v1181
    %v1183 = vcombine.low %v1159, %v1175
    %v1184 = vcombine.high %v1159, %v1175
    %v1185 = vcombine.low %v1166, %v1182
    %v1186 = vcombine.high %v1166, %v1182
    %v1187 = vcombine.low %v811, %v818
    %v1189 = vunpack.c.l.s4 1983009808
    %v1190 = vunpack.c.0.s8 %v1189
    %v1191 = vlaneseq
    %v1192 = vshrl.u32 %v1191, 7
    %v1193 = vsub.s32 %v1190, %v1192
    %v1194 = vrot.slane %v1187, %v1193
    %v1195 = vcombine.low %v835, %v836
    %v1197 = vunpack.c.l.s4 1983009808
    %v1198 = vunpack.c.0.s8 %v1197
    %v1199 = vlaneseq
    %v1200 = vshrl.u32 %v1199, 7
    %v1201 = vsub.s32 %v1198, %v1200
    %v1202 = vrot.slane %v1195, %v1201
    %v1203 = vcombine.low %v827, %v834
    %v1205 = vunpack.c.l.s4 1983009808
    %v1206 = vunpack.c.0.s8 %v1205
    %v1207 = vlaneseq
    %v1208 = vshrl.u32 %v1207, 7
    %v1209 = vsub.s32 %v1206, %v1208
    %v1210 = vrot.slane %v1203, %v1209
    %v1211 = vcombine.low %v837, %v838
    %v1213 = vunpack.c.l.s4 1983009808
    %v1214 = vunpack.c.0.s8 %v1213
    %v1215 = vlaneseq
    %v1216 = vshrl.u32 %v1215, 7
    %v1217 = vsub.s32 %v1214, %v1216
    %v1218 = vrot.slane %v1211, %v1217
    %v1219 = vcombine.low %v1194, %v1202
    %v1220 = vcombine.high %v1194, %v1202
    %v1222 = vunpack.c.l.s4 1934713408
    %v1223 = vunpack.c.0.s8 %v1222
    %v1224 = vlaneseq
    %v1225 = vshrl.u32 %v1224, 7
    %v1226 = vsub.s32 %v1223, %v1225
    %v1227 = vrot.slane %v1219, %v1226
    %v1229 = vunpack.c.l.s4 1934713408
    %v1230 = vunpack.c.0.s8 %v1229
    %v1231 = vlaneseq
    %v1232 = vshrl.u32 %v1231, 7
    %v1233 = vsub.s32 %v1230, %v1232
    %v1234 = vrot.slane %v1220, %v1233
    %v1235 = vcombine.low %v1210, %v1218
    %v1236 = vcombine.high %v1210, %v1218
    %v1238 = vunpack.c.l.s4 1934713408
    %v1239 = vunpack.c.0.s8 %v1238
    %v1240 = vlaneseq
    %v1241 = vshrl.u32 %v1240, 7
    %v1242 = vsub.s32 %v1239, %v1241
    %v1243 = vrot.slane %v1235, %v1242
    %v1245 = vunpack.c.l.s4 1934713408
    %v1246 = vunpack.c.0.s8 %v1245
    %v1247 = vlaneseq
    %v1248 = vshrl.u32 %v1247, 7
    %v1249 = vsub.s32 %v1246, %v1248
    %v1250 = vrot.slane %v1236, %v1249
    %v1251 = vcombine.low %v1227, %v1243
    %v1252 = vcombine.high %v1227, %v1243
    %v1253 = vcombine.low %v1234, %v1250
    %v1254 = vcombine.high %v1234, %v1250
    %v1255 = vpack.c.bf16 %v1251, %v1183
    %v1256 = vpack.c.bf16 %v1252, %v1184
    %v1257 = vpack.c.bf16 %v1253, %v1185
    %v1258 = vpack.c.bf16 %v1254, %v1186
    %vm1259 = vcmask 64512
    %v1261 = vsel %vm1259, %v975, 0
    %v1264 = vsel %vm1259, %v1115, 0
    %1266 = vmatprep.subr.bf16.mxu0 0
    %1267 = vmatpush1.bf16.xpose.msra.mxu0 %v1264
    %1268 = vmatprep.subr.bf16.mxu0 0
    %1269 = vmatpush1.bf16.xpose.msra.mxu0 0
    %1270 = vmatprep.subr.bf16.mxu0 0
    %1271 = vmatpush1.bf16.xpose.msra.mxu0 0
    %1272 = vmatprep.subr.bf16.mxu0 0
    %1273 = vmatpush1.bf16.xpose.msra.mxu0 0
    %1274 = vmatprep.subr.bf16.mxu0 0
    %1275 = vmatpush1.bf16.xpose.msra.mxu0 0
    %1276 = vmatprep.subr.bf16.mxu0 0
    %1277 = vmatpush1.bf16.xpose.msra.mxu0 0
    %1278 = vmatprep.subr.bf16.mxu0 0
    %1279 = vmatpush1.bf16.xpose.msra.mxu0 0
    %1280 = vmatprep.subr.bf16.mxu0 0
    %1281 = vmatpush1.bf16.xpose.msra.mxu0 0
    %1282 = vmatprep.subr.bf16.mxu0 0
    %1283 = vmatpush1.bf16.xpose.msra.mxu0 0
    %1284 = vmatprep.subr.bf16.mxu0 0
    %1285 = vmatpush1.bf16.xpose.msra.mxu0 0
    %1286 = vmatprep.subr.bf16.mxu0 0
    %1287 = vmatpush1.bf16.xpose.msra.mxu0 0
    %1288 = vmatprep.subr.bf16.mxu0 0
    %1289 = vmatpush1.bf16.xpose.msra.mxu0 0
    %1290 = vmatprep.subr.bf16.mxu0 0
    %1291 = vmatpush1.bf16.xpose.msra.mxu0 0
    %1292 = vmatprep.subr.bf16.mxu0 0
    %1293 = vmatpush1.bf16.xpose.msra.mxu0 0
    %1294 = vmatprep.subr.bf16.mxu0 0
    %1295 = vmatpush1.bf16.xpose.msra.mxu0 0
    %1296 = vmatprep.subr.bf16.mxu0 0
    %1297 = vmatpush1.bf16.xpose.msra.mxu0 0
    %1298 = vmatprep.mubr.bf16.mxu0 0
    %1299 = vmatmul.mubr.bf16.gmra.mrb[0].mxu0 %v1261
    %v1300 = vpop.f32.mrb[0].mxu0
    %v1301 = vadd.f32 0.0, %v1300
    %v1302 = vpop.f32.mrb[0].mxu0
    %v1303 = vpop.f32.mrb[0].mxu0
    %v1304 = vadd.f32 0.0, %v1303
    %v1305 = vpop.f32.mrb[0].mxu0
    %1306 = vdwg.mxu0
    %v1308 = vsel %vm1259, %v976, 0
    %v1311 = vsel %vm1259, %v1116, 0
    %1313 = vmatprep.subr.bf16.mxu0 0
    %1314 = vmatpush1.bf16.xpose.msra.mxu0 %v1311
    %1315 = vmatprep.subr.bf16.mxu0 0
    %1316 = vmatpush1.bf16.xpose.msra.mxu0 0
    %1317 = vmatprep.subr.bf16.mxu0 0
    %1318 = vmatpush1.bf16.xpose.msra.mxu0 0
    %1319 = vmatprep.subr.bf16.mxu0 0
    %1320 = vmatpush1.bf16.xpose.msra.mxu0 0
    %1321 = vmatprep.subr.bf16.mxu0 0
    %1322 = vmatpush1.bf16.xpose.msra.mxu0 0
    %1323 = vmatprep.subr.bf16.mxu0 0
    %1324 = vmatpush1.bf16.xpose.msra.mxu0 0
    %1325 = vmatprep.subr.bf16.mxu0 0
    %1326 = vmatpush1.bf16.xpose.msra.mxu0 0
    %1327 = vmatprep.subr.bf16.mxu0 0
    %1328 = vmatpush1.bf16.xpose.msra.mxu0 0
    %1329 = vmatprep.subr.bf16.mxu0 0
    %1330 = vmatpush1.bf16.xpose.msra.mxu0 0
    %1331 = vmatprep.subr.bf16.mxu0 0
    %1332 = vmatpush1.bf16.xpose.msra.mxu0 0
    %1333 = vmatprep.subr.bf16.mxu0 0
    %1334 = vmatpush1.bf16.xpose.msra.mxu0 0
    %1335 = vmatprep.subr.bf16.mxu0 0
    %1336 = vmatpush1.bf16.xpose.msra.mxu0 0
    %1337 = vmatprep.subr.bf16.mxu0 0
    %1338 = vmatpush1.bf16.xpose.msra.mxu0 0
    %1339 = vmatprep.subr.bf16.mxu0 0
    %1340 = vmatpush1.bf16.xpose.msra.mxu0 0
    %1341 = vmatprep.subr.bf16.mxu0 0
    %1342 = vmatpush1.bf16.xpose.msra.mxu0 0
    %1343 = vmatprep.subr.bf16.mxu0 0
    %1344 = vmatpush1.bf16.xpose.msra.mxu0 0
    %1345 = vmatprep.mubr.bf16.mxu0 0
    %1346 = vmatmul.mubr.bf16.gmra.mrb[0].mxu0 %v1308
    %v1347 = vpop.f32.mrb[0].mxu0
    %v1348 = vadd.f32 0.0, %v1347
    %v1349 = vpop.f32.mrb[0].mxu0
    %v1350 = vpop.f32.mrb[0].mxu0
    %v1351 = vadd.f32 0.0, %v1350
    %v1352 = vpop.f32.mrb[0].mxu0
    %1353 = vdwg.mxu0
    %v1355 = vsel %vm1259, %v977, 0
    %v1358 = vsel %vm1259, %v1117, 0
    %1360 = vmatprep.subr.bf16.mxu0 0
    %1361 = vmatpush1.bf16.xpose.msra.mxu0 %v1358
    %1362 = vmatprep.subr.bf16.mxu0 0
    %1363 = vmatpush1.bf16.xpose.msra.mxu0 0
    %1364 = vmatprep.subr.bf16.mxu0 0
    %1365 = vmatpush1.bf16.xpose.msra.mxu0 0
    %1366 = vmatprep.subr.bf16.mxu0 0
    %1367 = vmatpush1.bf16.xpose.msra.mxu0 0
    %1368 = vmatprep.subr.bf16.mxu0 0
    %1369 = vmatpush1.bf16.xpose.msra.mxu0 0
    %1370 = vmatprep.subr.bf16.mxu0 0
    %1371 = vmatpush1.bf16.xpose.msra.mxu0 0
    %1372 = vmatprep.subr.bf16.mxu0 0
    %1373 = vmatpush1.bf16.xpose.msra.mxu0 0
    %1374 = vmatprep.subr.bf16.mxu0 0
    %1375 = vmatpush1.bf16.xpose.msra.mxu0 0
    %1376 = vmatprep.subr.bf16.mxu0 0
    %1377 = vmatpush1.bf16.xpose.msra.mxu0 0
    %1378 = vmatprep.subr.bf16.mxu0 0
    %1379 = vmatpush1.bf16.xpose.msra.mxu0 0
    %1380 = vmatprep.subr.bf16.mxu0 0
    %1381 = vmatpush1.bf16.xpose.msra.mxu0 0
    %1382 = vmatprep.subr.bf16.mxu0 0
    %1383 = vmatpush1.bf16.xpose.msra.mxu0 0
    %1384 = vmatprep.subr.bf16.mxu0 0
    %1385 = vmatpush1.bf16.xpose.msra.mxu0 0
    %1386 = vmatprep.subr.bf16.mxu0 0
    %1387 = vmatpush1.bf16.xpose.msra.mxu0 0
    %1388 = vmatprep.subr.bf16.mxu0 0
    %1389 = vmatpush1.bf16.xpose.msra.mxu0 0
    %1390 = vmatprep.subr.bf16.mxu0 0
    %1391 = vmatpush1.bf16.xpose.msra.mxu0 0
    %1392 = vmatprep.mubr.bf16.mxu0 0
    %1393 = vmatmul.mubr.bf16.gmra.mrb[0].mxu0 %v1355
    %v1394 = vpop.f32.mrb[0].mxu0
    %v1395 = vadd.f32 0.0, %v1394
    %v1396 = vpop.f32.mrb[0].mxu0
    %v1397 = vpop.f32.mrb[0].mxu0
    %v1398 = vadd.f32 0.0, %v1397
    %v1399 = vpop.f32.mrb[0].mxu0
    %1400 = vdwg.mxu0
    %v1402 = vsel %vm1259, %v978, 0
    %v1405 = vsel %vm1259, %v1118, 0
    %1407 = vmatprep.subr.bf16.mxu0 0
    %1408 = vmatpush1.bf16.xpose.msra.mxu0 %v1405
    %1409 = vmatprep.subr.bf16.mxu0 0
    %1410 = vmatpush1.bf16.xpose.msra.mxu0 0
    %1411 = vmatprep.subr.bf16.mxu0 0
    %1412 = vmatpush1.bf16.xpose.msra.mxu0 0
    %1413 = vmatprep.subr.bf16.mxu0 0
    %1414 = vmatpush1.bf16.xpose.msra.mxu0 0
    %1415 = vmatprep.subr.bf16.mxu0 0
    %1416 = vmatpush1.bf16.xpose.msra.mxu0 0
    %1417 = vmatprep.subr.bf16.mxu0 0
    %1418 = vmatpush1.bf16.xpose.msra.mxu0 0
    %1419 = vmatprep.subr.bf16.mxu0 0
    %1420 = vmatpush1.bf16.xpose.msra.mxu0 0
    %1421 = vmatprep.subr.bf16.mxu0 0
    %1422 = vmatpush1.bf16.xpose.msra.mxu0 0
    %1423 = vmatprep.subr.bf16.mxu0 0
    %1424 = vmatpush1.bf16.xpose.msra.mxu0 0
    %1425 = vmatprep.subr.bf16.mxu0 0
    %1426 = vmatpush1.bf16.xpose.msra.mxu0 0
    %1427 = vmatprep.subr.bf16.mxu0 0
    %1428 = vmatpush1.bf16.xpose.msra.mxu0 0
    %1429 = vmatprep.subr.bf16.mxu0 0
    %1430 = vmatpush1.bf16.xpose.msra.mxu0 0
    %1431 = vmatprep.subr.bf16.mxu0 0
    %1432 = vmatpush1.bf16.xpose.msra.mxu0 0
    %1433 = vmatprep.subr.bf16.mxu0 0
    %1434 = vmatpush1.bf16.xpose.msra.mxu0 0
    %1435 = vmatprep.subr.bf16.mxu0 0
    %1436 = vmatpush1.bf16.xpose.msra.mxu0 0
    %1437 = vmatprep.subr.bf16.mxu0 0
    %1438 = vmatpush1.bf16.xpose.msra.mxu0 0
    %1439 = vmatprep.mubr.bf16.mxu0 0
    %1440 = vmatmul.mubr.bf16.gmra.mrb[0].mxu0 %v1402
    %v1441 = vpop.f32.mrb[0].mxu0
    %v1442 = vadd.f32 0.0, %v1441
    %v1443 = vpop.f32.mrb[0].mxu0
    %v1444 = vpop.f32.mrb[0].mxu0
    %v1445 = vadd.f32 0.0, %v1444
    %v1446 = vpop.f32.mrb[0].mxu0
    %1447 = vdwg.mxu0
    %v1448 = vmul.f32 %v1301, 0.35355338
    %v1449 = vmul.f32 %v1304, 0.35355338
    %v1450 = vmul.f32 %v1348, 0.35355338
    %v1451 = vmul.f32 %v1351, 0.35355338
    %v1452 = vmul.f32 %v1395, 0.35355338
    %v1453 = vmul.f32 %v1398, 0.35355338
    %v1454 = vmul.f32 %v1442, 0.35355338
    %v1455 = vmul.f32 %v1445, 0.35355338
    %v1456 = vsel %vm267, 1, 0
    %v1457 = vsel %vm268, 1, 0
    %vm1458 = vcmp.eq.s32.totalorder %v1456, 1
    %vm1459 = vcmp.eq.s32.totalorder %v1457, 1
    %v1460 = vsel %vm1458, %v1448, -1e+30
    %v1461 = vsel %vm1459, %v1449, -1e+30
    %v1462 = vsel %vm1458, %v1450, -1e+30
    %v1463 = vsel %vm1459, %v1451, -1e+30
    %v1464 = vsel %vm1458, %v1452, -1e+30
    %v1465 = vsel %vm1459, %v1453, -1e+30
    %v1466 = vsel %vm1458, %v1454, -1e+30
    %v1467 = vsel %vm1459, %v1455, -1e+30
    %vm1468 = vcmask 130048
    %v1469 = vsel %vm1468, %v1460, -inf
    %1470 = vmax.xlane.f32.xlu0 %v1469
    %v1471 = vpop.xlane.xlu0 %1470
    %v1472 = vsel %vm1468, %v1461, -inf
    %1473 = vmax.xlane.f32.xlu0 %v1472
    %v1474 = vpop.xlane.xlu0 %1473
    %v1475 = vsel %vm1468, %v1462, -inf
    %1476 = vmax.xlane.f32.xlu0 %v1475
    %v1477 = vpop.xlane.xlu0 %1476
    %v1478 = vsel %vm1468, %v1463, -inf
    %1479 = vmax.xlane.f32.xlu0 %v1478
    %v1480 = vpop.xlane.xlu0 %1479
    %v1481 = vsel %vm1468, %v1464, -inf
    %1482 = vmax.xlane.f32.xlu0 %v1481
    %v1483 = vpop.xlane.xlu0 %1482
    %v1484 = vsel %vm1468, %v1465, -inf
    %1485 = vmax.xlane.f32.xlu0 %v1484
    %v1486 = vpop.xlane.xlu0 %1485
    %v1487 = vsel %vm1468, %v1466, -inf
    %1488 = vmax.xlane.f32.xlu0 %v1487
    %v1489 = vpop.xlane.xlu0 %1488
    %v1490 = vsel %vm1468, %v1467, -inf
    %1491 = vmax.xlane.f32.xlu0 %v1490
    %v1492 = vpop.xlane.xlu0 %1491
    %v1493 = vsub.f32 %v1460, %v1471
    %v1494 = vsub.f32 %v1461, %v1474
    %v1495 = vsub.f32 %v1462, %v1477
    %v1496 = vsub.f32 %v1463, %v1480
    %v1497 = vsub.f32 %v1464, %v1483
    %v1498 = vsub.f32 %v1465, %v1486
    %v1499 = vsub.f32 %v1466, %v1489
    %v1500 = vsub.f32 %v1467, %v1492
    %v1501 = vmul.f32 %v1493, 1.442695
    %v1502 = vpow.pop %v1501
    %v1503 = vmul.f32 %v1494, 1.442695
    %v1504 = vpow.pop %v1503
    %v1505 = vmul.f32 %v1495, 1.442695
    %v1506 = vpow.pop %v1505
    %v1507 = vmul.f32 %v1496, 1.442695
    %v1508 = vpow.pop %v1507
    %v1509 = vmul.f32 %v1497, 1.442695
    %v1510 = vpow.pop %v1509
    %v1511 = vmul.f32 %v1498, 1.442695
    %v1512 = vpow.pop %v1511
    %v1513 = vmul.f32 %v1499, 1.442695
    %v1514 = vpow.pop %v1513
    %v1515 = vmul.f32 %v1500, 1.442695
    %v1516 = vpow.pop %v1515
    %v1517 = vsel %vm1468, %v1502, 0.0
    %1518 = vadd.xlane.f32.xlu0 %v1517
    %v1519 = vpop.xlane.xlu0 %1518
    %v1520 = vsel %vm1468, %v1504, 0.0
    %1521 = vadd.xlane.f32.xlu0 %v1520
    %v1522 = vpop.xlane.xlu0 %1521
    %v1523 = vsel %vm1468, %v1506, 0.0
    %1524 = vadd.xlane.f32.xlu0 %v1523
    %v1525 = vpop.xlane.xlu0 %1524
    %v1526 = vsel %vm1468, %v1508, 0.0
    %1527 = vadd.xlane.f32.xlu0 %v1526
    %v1528 = vpop.xlane.xlu0 %1527
    %v1529 = vsel %vm1468, %v1510, 0.0
    %1530 = vadd.xlane.f32.xlu0 %v1529
    %v1531 = vpop.xlane.xlu0 %1530
    %v1532 = vsel %vm1468, %v1512, 0.0
    %1533 = vadd.xlane.f32.xlu0 %v1532
    %v1534 = vpop.xlane.xlu0 %1533
    %v1535 = vsel %vm1468, %v1514, 0.0
    %1536 = vadd.xlane.f32.xlu0 %v1535
    %v1537 = vpop.xlane.xlu0 %1536
    %v1538 = vsel %vm1468, %v1516, 0.0
    %1539 = vadd.xlane.f32.xlu0 %v1538
    %v1540 = vpop.xlane.xlu0 %1539
    %v1541 = vrcp.pop %v1519
    %v1542 = vrcp.pop %v1522
    %v1543 = vrcp.pop %v1525
    %v1544 = vrcp.pop %v1528
    %v1545 = vrcp.pop %v1531
    %v1546 = vrcp.pop %v1534
    %v1547 = vrcp.pop %v1537
    %v1548 = vrcp.pop %v1540
    %v1549 = vmul.f32 %v1502, %v1541
    %v1550 = vmul.f32 %v1504, %v1542
    %v1551 = vmul.f32 %v1506, %v1543
    %v1552 = vmul.f32 %v1508, %v1544
    %v1553 = vmul.f32 %v1510, %v1545
    %v1554 = vmul.f32 %v1512, %v1546
    %v1555 = vmul.f32 %v1514, %v1547
    %v1556 = vmul.f32 %v1516, %v1548
    %v1557 = vpack.c.bf16 %v1550, %v1549
    %v1558 = vpack.c.bf16 %v1552, %v1551
    %v1559 = vpack.c.bf16 %v1554, %v1553
    %v1560 = vpack.c.bf16 %v1556, %v1555
    %v1562 = vsel %vm1468, %v1557, 0
    %1564 = vmatprep.subr.bf16.mxu0 0
    %1565 = vmatpush1.bf16.msra.mxu0 %v1255
    %1566 = vmatprep.subr.bf16.mxu0 0
    %1567 = vmatpush1.bf16.msra.mxu0 0
    %1568 = vmatprep.subr.bf16.mxu0 0
    %1569 = vmatpush1.bf16.msra.mxu0 0
    %1570 = vmatprep.subr.bf16.mxu0 0
    %1571 = vmatpush1.bf16.msra.mxu0 0
    %1572 = vmatprep.subr.bf16.mxu0 0
    %1573 = vmatpush1.bf16.msra.mxu0 0
    %1574 = vmatprep.subr.bf16.mxu0 0
    %1575 = vmatpush1.bf16.msra.mxu0 0
    %1576 = vmatprep.subr.bf16.mxu0 0
    %1577 = vmatpush1.bf16.msra.mxu0 0
    %1578 = vmatprep.subr.bf16.mxu0 0
    %1579 = vmatpush1.bf16.msra.mxu0 0
    %1580 = vmatprep.subr.bf16.mxu0 0
    %1581 = vmatpush1.bf16.msra.mxu0 0
    %1582 = vmatprep.subr.bf16.mxu0 0
    %1583 = vmatpush1.bf16.msra.mxu0 0
    %1584 = vmatprep.subr.bf16.mxu0 0
    %1585 = vmatpush1.bf16.msra.mxu0 0
    %1586 = vmatprep.subr.bf16.mxu0 0
    %1587 = vmatpush1.bf16.msra.mxu0 0
    %1588 = vmatprep.subr.bf16.mxu0 0
    %1589 = vmatpush1.bf16.msra.mxu0 0
    %1590 = vmatprep.subr.bf16.mxu0 0
    %1591 = vmatpush1.bf16.msra.mxu0 0
    %1592 = vmatprep.subr.bf16.mxu0 0
    %1593 = vmatpush1.bf16.msra.mxu0 0
    %1594 = vmatprep.subr.bf16.mxu0 0
    %1595 = vmatpush1.bf16.msra.mxu0 0
    %1596 = vmatprep.mubr.bf16.mxu0 0
    %1597 = vmatmul.mubr.bf16.gmra.mrb[0].mxu0 %v1562
    %v1598 = vpop.f32.mrb[0].mxu0
    %v1599 = vadd.f32 0.0, %v1598
    %v1600 = vpop.f32.mrb[0].mxu0
    %v1601 = vpop.f32.mrb[0].mxu0
    %v1602 = vadd.f32 0.0, %v1601
    %v1603 = vpop.f32.mrb[0].mxu0
    %1604 = vdwg.mxu0
    %v1606 = vsel %vm1468, %v1558, 0
    %1608 = vmatprep.subr.bf16.mxu0 0
    %1609 = vmatpush1.bf16.msra.mxu0 %v1256
    %1610 = vmatprep.subr.bf16.mxu0 0
    %1611 = vmatpush1.bf16.msra.mxu0 0
    %1612 = vmatprep.subr.bf16.mxu0 0
    %1613 = vmatpush1.bf16.msra.mxu0 0
    %1614 = vmatprep.subr.bf16.mxu0 0
    %1615 = vmatpush1.bf16.msra.mxu0 0
    %1616 = vmatprep.subr.bf16.mxu0 0
    %1617 = vmatpush1.bf16.msra.mxu0 0
    %1618 = vmatprep.subr.bf16.mxu0 0
    %1619 = vmatpush1.bf16.msra.mxu0 0
    %1620 = vmatprep.subr.bf16.mxu0 0
    %1621 = vmatpush1.bf16.msra.mxu0 0
    %1622 = vmatprep.subr.bf16.mxu0 0
    %1623 = vmatpush1.bf16.msra.mxu0 0
    %1624 = vmatprep.subr.bf16.mxu0 0
    %1625 = vmatpush1.bf16.msra.mxu0 0
    %1626 = vmatprep.subr.bf16.mxu0 0
    %1627 = vmatpush1.bf16.msra.mxu0 0
    %1628 = vmatprep.subr.bf16.mxu0 0
    %1629 = vmatpush1.bf16.msra.mxu0 0
    %1630 = vmatprep.subr.bf16.mxu0 0
    %1631 = vmatpush1.bf16.msra.mxu0 0
    %1632 = vmatprep.subr.bf16.mxu0 0
    %1633 = vmatpush1.bf16.msra.mxu0 0
    %1634 = vmatprep.subr.bf16.mxu0 0
    %1635 = vmatpush1.bf16.msra.mxu0 0
    %1636 = vmatprep.subr.bf16.mxu0 0
    %1637 = vmatpush1.bf16.msra.mxu0 0
    %1638 = vmatprep.subr.bf16.mxu0 0
    %1639 = vmatpush1.bf16.msra.mxu0 0
    %1640 = vmatprep.mubr.bf16.mxu0 0
    %1641 = vmatmul.mubr.bf16.gmra.mrb[0].mxu0 %v1606
    %v1642 = vpop.f32.mrb[0].mxu0
    %v1643 = vadd.f32 0.0, %v1642
    %v1644 = vpop.f32.mrb[0].mxu0
    %v1645 = vpop.f32.mrb[0].mxu0
    %v1646 = vadd.f32 0.0, %v1645
    %v1647 = vpop.f32.mrb[0].mxu0
    %1648 = vdwg.mxu0
    %v1650 = vsel %vm1468, %v1559, 0
    %1652 = vmatprep.subr.bf16.mxu0 0
    %1653 = vmatpush1.bf16.msra.mxu0 %v1257
    %1654 = vmatprep.subr.bf16.mxu0 0
    %1655 = vmatpush1.bf16.msra.mxu0 0
    %1656 = vmatprep.subr.bf16.mxu0 0
    %1657 = vmatpush1.bf16.msra.mxu0 0
    %1658 = vmatprep.subr.bf16.mxu0 0
    %1659 = vmatpush1.bf16.msra.mxu0 0
    %1660 = vmatprep.subr.bf16.mxu0 0
    %1661 = vmatpush1.bf16.msra.mxu0 0
    %1662 = vmatprep.subr.bf16.mxu0 0
    %1663 = vmatpush1.bf16.msra.mxu0 0
    %1664 = vmatprep.subr.bf16.mxu0 0
    %1665 = vmatpush1.bf16.msra.mxu0 0
    %1666 = vmatprep.subr.bf16.mxu0 0
    %1667 = vmatpush1.bf16.msra.mxu0 0
    %1668 = vmatprep.subr.bf16.mxu0 0
    %1669 = vmatpush1.bf16.msra.mxu0 0
    %1670 = vmatprep.subr.bf16.mxu0 0
    %1671 = vmatpush1.bf16.msra.mxu0 0
    %1672 = vmatprep.subr.bf16.mxu0 0
    %1673 = vmatpush1.bf16.msra.mxu0 0
    %1674 = vmatprep.subr.bf16.mxu0 0
    %1675 = vmatpush1.bf16.msra.mxu0 0
    %1676 = vmatprep.subr.bf16.mxu0 0
    %1677 = vmatpush1.bf16.msra.mxu0 0
    %1678 = vmatprep.subr.bf16.mxu0 0
    %1679 = vmatpush1.bf16.msra.mxu0 0
    %1680 = vmatprep.subr.bf16.mxu0 0
    %1681 = vmatpush1.bf16.msra.mxu0 0
    %1682 = vmatprep.subr.bf16.mxu0 0
    %1683 = vmatpush1.bf16.msra.mxu0 0
    %1684 = vmatprep.mubr.bf16.mxu0 0
    %1685 = vmatmul.mubr.bf16.gmra.mrb[0].mxu0 %v1650
    %v1686 = vpop.f32.mrb[0].mxu0
    %v1687 = vadd.f32 0.0, %v1686
    %v1688 = vpop.f32.mrb[0].mxu0
    %v1689 = vpop.f32.mrb[0].mxu0
    %v1690 = vadd.f32 0.0, %v1689
    %v1691 = vpop.f32.mrb[0].mxu0
    %1692 = vdwg.mxu0
    %v1694 = vsel %vm1468, %v1560, 0
    %1696 = vmatprep.subr.bf16.mxu0 0
    %1697 = vmatpush1.bf16.msra.mxu0 %v1258
    %1698 = vmatprep.subr.bf16.mxu0 0
    %1699 = vmatpush1.bf16.msra.mxu0 0
    %1700 = vmatprep.subr.bf16.mxu0 0
    %1701 = vmatpush1.bf16.msra.mxu0 0
    %1702 = vmatprep.subr.bf16.mxu0 0
    %1703 = vmatpush1.bf16.msra.mxu0 0
    %1704 = vmatprep.subr.bf16.mxu0 0
    %1705 = vmatpush1.bf16.msra.mxu0 0
    %1706 = vmatprep.subr.bf16.mxu0 0
    %1707 = vmatpush1.bf16.msra.mxu0 0
    %1708 = vmatprep.subr.bf16.mxu0 0
    %1709 = vmatpush1.bf16.msra.mxu0 0
    %1710 = vmatprep.subr.bf16.mxu0 0
    %1711 = vmatpush1.bf16.msra.mxu0 0
    %1712 = vmatprep.subr.bf16.mxu0 0
    %1713 = vmatpush1.bf16.msra.mxu0 0
    %1714 = vmatprep.subr.bf16.mxu0 0
    %1715 = vmatpush1.bf16.msra.mxu0 0
    %1716 = vmatprep.subr.bf16.mxu0 0
    %1717 = vmatpush1.bf16.msra.mxu0 0
    %1718 = vmatprep.subr.bf16.mxu0 0
    %1719 = vmatpush1.bf16.msra.mxu0 0
    %1720 = vmatprep.subr.bf16.mxu0 0
    %1721 = vmatpush1.bf16.msra.mxu0 0
    %1722 = vmatprep.subr.bf16.mxu0 0
    %1723 = vmatpush1.bf16.msra.mxu0 0
    %1724 = vmatprep.subr.bf16.mxu0 0
    %1725 = vmatpush1.bf16.msra.mxu0 0
    %1726 = vmatprep.subr.bf16.mxu0 0
    %1727 = vmatpush1.bf16.msra.mxu0 0
    %1728 = vmatprep.mubr.bf16.mxu0 0
    %1729 = vmatmul.mubr.bf16.gmra.mrb[0].mxu0 %v1694
    %v1730 = vpop.f32.mrb[0].mxu0
    %v1731 = vadd.f32 0.0, %v1730
    %v1732 = vpop.f32.mrb[0].mxu0
    %v1733 = vpop.f32.mrb[0].mxu0
    %v1734 = vadd.f32 0.0, %v1733
    %v1735 = vpop.f32.mrb[0].mxu0
    %1736 = vdwg.mxu0
    %v1737 = vcombine.low %v1599, %v1687
    %v1738 = vcombine.high %v1599, %v1687
    %v1740 = vunpack.c.l.s4 1983009808
    %v1741 = vunpack.c.0.s8 %v1740
    %v1742 = vlaneseq
    %v1743 = vshrl.u32 %v1742, 7
    %v1744 = vsub.s32 %v1741, %v1743
    %v1745 = vrot.slane %v1737, %v1744
    %v1747 = vunpack.c.l.s4 1983009808
    %v1748 = vunpack.c.0.s8 %v1747
    %v1749 = vlaneseq
    %v1750 = vshrl.u32 %v1749, 7
    %v1751 = vsub.s32 %v1748, %v1750
    %v1752 = vrot.slane %v1738, %v1751
    %v1753 = vcombine.low %v1643, %v1731
    %v1754 = vcombine.high %v1643, %v1731
    %v1756 = vunpack.c.l.s4 1983009808
    %v1757 = vunpack.c.0.s8 %v1756
    %v1758 = vlaneseq
    %v1759 = vshrl.u32 %v1758, 7
    %v1760 = vsub.s32 %v1757, %v1759
    %v1761 = vrot.slane %v1753, %v1760
    %v1763 = vunpack.c.l.s4 1983009808
    %v1764 = vunpack.c.0.s8 %v1763
    %v1765 = vlaneseq
    %v1766 = vshrl.u32 %v1765, 7
    %v1767 = vsub.s32 %v1764, %v1766
    %v1768 = vrot.slane %v1754, %v1767
    %v1769 = vcombine.low %v1745, %v1761
    %v1770 = vcombine.high %v1745, %v1761
    %v1772 = vunpack.c.l.s4 1934713408
    %v1773 = vunpack.c.0.s8 %v1772
    %v1774 = vlaneseq
    %v1775 = vshrl.u32 %v1774, 7
    %v1776 = vsub.s32 %v1773, %v1775
    %v1777 = vrot.slane %v1769, %v1776
    %v1779 = vunpack.c.l.s4 1934713408
    %v1780 = vunpack.c.0.s8 %v1779
    %v1781 = vlaneseq
    %v1782 = vshrl.u32 %v1781, 7
    %v1783 = vsub.s32 %v1780, %v1782
    %v1784 = vrot.slane %v1770, %v1783
    %v1785 = vcombine.low %v1752, %v1768
    %v1786 = vcombine.high %v1752, %v1768
    %v1788 = vunpack.c.l.s4 1934713408
    %v1789 = vunpack.c.0.s8 %v1788
    %v1790 = vlaneseq
    %v1791 = vshrl.u32 %v1790, 7
    %v1792 = vsub.s32 %v1789, %v1791
    %v1793 = vrot.slane %v1785, %v1792
    %v1795 = vunpack.c.l.s4 1934713408
    %v1796 = vunpack.c.0.s8 %v1795
    %v1797 = vlaneseq
    %v1798 = vshrl.u32 %v1797, 7
    %v1799 = vsub.s32 %v1796, %v1798
    %v1800 = vrot.slane %v1786, %v1799
    %v1801 = vcombine.high %v1777, 0.0
    %v1802 = vcombine.high %v1784, 0.0
    %v1803 = vcombine.high %v1793, 0.0
    %v1804 = vcombine.high %v1800, 0.0
    %v1805 = vcombine.low %v1602, %v1690
    %v1806 = vcombine.high %v1602, %v1690
    %v1808 = vunpack.c.l.s4 1983009808
    %v1809 = vunpack.c.0.s8 %v1808
    %v1810 = vlaneseq
    %v1811 = vshrl.u32 %v1810, 7
    %v1812 = vsub.s32 %v1809, %v1811
    %v1813 = vrot.slane %v1805, %v1812
    %v1815 = vunpack.c.l.s4 1983009808
    %v1816 = vunpack.c.0.s8 %v1815
    %v1817 = vlaneseq
    %v1818 = vshrl.u32 %v1817, 7
    %v1819 = vsub.s32 %v1816, %v1818
    %v1820 = vrot.slane %v1806, %v1819
    %v1821 = vcombine.low %v1646, %v1734
    %v1822 = vcombine.high %v1646, %v1734
    %v1824 = vunpack.c.l.s4 1983009808
    %v1825 = vunpack.c.0.s8 %v1824
    %v1826 = vlaneseq
    %v1827 = vshrl.u32 %v1826, 7
    %v1828 = vsub.s32 %v1825, %v1827
    %v1829 = vrot.slane %v1821, %v1828
    %v1831 = vunpack.c.l.s4 1983009808
    %v1832 = vunpack.c.0.s8 %v1831
    %v1833 = vlaneseq
    %v1834 = vshrl.u32 %v1833, 7
    %v1835 = vsub.s32 %v1832, %v1834
    %v1836 = vrot.slane %v1822, %v1835
    %v1837 = vcombine.low %v1813, %v1829
    %v1838 = vcombine.high %v1813, %v1829
    %v1840 = vunpack.c.l.s4 1934713408
    %v1841 = vunpack.c.0.s8 %v1840
    %v1842 = vlaneseq
    %v1843 = vshrl.u32 %v1842, 7
    %v1844 = vsub.s32 %v1841, %v1843
    %v1845 = vrot.slane %v1837, %v1844
    %v1847 = vunpack.c.l.s4 1934713408
    %v1848 = vunpack.c.0.s8 %v1847
    %v1849 = vlaneseq
    %v1850 = vshrl.u32 %v1849, 7
    %v1851 = vsub.s32 %v1848, %v1850
    %v1852 = vrot.slane %v1838, %v1851
    %v1853 = vcombine.low %v1820, %v1836
    %v1854 = vcombine.high %v1820, %v1836
    %v1856 = vunpack.c.l.s4 1934713408
    %v1857 = vunpack.c.0.s8 %v1856
    %v1858 = vlaneseq
    %v1859 = vshrl.u32 %v1858, 7
    %v1860 = vsub.s32 %v1857, %v1859
    %v1861 = vrot.slane %v1853, %v1860
    %v1863 = vunpack.c.l.s4 1934713408
    %v1864 = vunpack.c.0.s8 %v1863
    %v1865 = vlaneseq
    %v1866 = vshrl.u32 %v1865, 7
    %v1867 = vsub.s32 %v1864, %v1866
    %v1868 = vrot.slane %v1854, %v1867
    %v1869 = vcombine.high %v1845, 0.0
    %v1870 = vcombine.high %v1852, 0.0
    %v1871 = vcombine.high %v1861, 0.0
    %v1872 = vcombine.high %v1868, 0.0
    %v1873 = vcombine.low %v1777, %v1784
    %v1875 = vunpack.c.l.s4 1983009808
    %v1876 = vunpack.c.0.s8 %v1875
    %v1877 = vlaneseq
    %v1878 = vshrl.u32 %v1877, 7
    %v1879 = vsub.s32 %v1876, %v1878
    %v1880 = vrot.slane %v1873, %v1879
    %v1881 = vcombine.low %v1801, %v1802
    %v1883 = vunpack.c.l.s4 1983009808
    %v1884 = vunpack.c.0.s8 %v1883
    %v1885 = vlaneseq
    %v1886 = vshrl.u32 %v1885, 7
    %v1887 = vsub.s32 %v1884, %v1886
    %v1888 = vrot.slane %v1881, %v1887
    %v1889 = vcombine.low %v1793, %v1800
    %v1891 = vunpack.c.l.s4 1983009808
    %v1892 = vunpack.c.0.s8 %v1891
    %v1893 = vlaneseq
    %v1894 = vshrl.u32 %v1893, 7
    %v1895 = vsub.s32 %v1892, %v1894
    %v1896 = vrot.slane %v1889, %v1895
    %v1897 = vcombine.low %v1803, %v1804
    %v1899 = vunpack.c.l.s4 1983009808
    %v1900 = vunpack.c.0.s8 %v1899
    %v1901 = vlaneseq
    %v1902 = vshrl.u32 %v1901, 7
    %v1903 = vsub.s32 %v1900, %v1902
    %v1904 = vrot.slane %v1897, %v1903
    %v1905 = vcombine.low %v1880, %v1888
    %v1906 = vcombine.high %v1880, %v1888
    %v1908 = vunpack.c.l.s4 1934713408
    %v1909 = vunpack.c.0.s8 %v1908
    %v1910 = vlaneseq
    %v1911 = vshrl.u32 %v1910, 7
    %v1912 = vsub.s32 %v1909, %v1911
    %v1913 = vrot.slane %v1905, %v1912
    %v1915 = vunpack.c.l.s4 1934713408
    %v1916 = vunpack.c.0.s8 %v1915
    %v1917 = vlaneseq
    %v1918 = vshrl.u32 %v1917, 7
    %v1919 = vsub.s32 %v1916, %v1918
    %v1920 = vrot.slane %v1906, %v1919
    %v1921 = vcombine.low %v1896, %v1904
    %v1922 = vcombine.high %v1896, %v1904
    %v1924 = vunpack.c.l.s4 1934713408
    %v1925 = vunpack.c.0.s8 %v1924
    %v1926 = vlaneseq
    %v1927 = vshrl.u32 %v1926, 7
    %v1928 = vsub.s32 %v1925, %v1927
    %v1929 = vrot.slane %v1921, %v1928
    %v1931 = vunpack.c.l.s4 1934713408
    %v1932 = vunpack.c.0.s8 %v1931
    %v1933 = vlaneseq
    %v1934 = vshrl.u32 %v1933, 7
    %v1935 = vsub.s32 %v1932, %v1934
    %v1936 = vrot.slane %v1922, %v1935
    %v1937 = vcombine.low %v1913, %v1929
    %v1938 = vcombine.high %v1913, %v1929
    %v1939 = vcombine.low %v1920, %v1936
    %v1940 = vcombine.high %v1920, %v1936
    %v1941 = vcombine.low %v1845, %v1852
    %v1943 = vunpack.c.l.s4 1983009808
    %v1944 = vunpack.c.0.s8 %v1943
    %v1945 = vlaneseq
    %v1946 = vshrl.u32 %v1945, 7
    %v1947 = vsub.s32 %v1944, %v1946
    %v1948 = vrot.slane %v1941, %v1947
    %v1949 = vcombine.low %v1869, %v1870
    %v1951 = vunpack.c.l.s4 1983009808
    %v1952 = vunpack.c.0.s8 %v1951
    %v1953 = vlaneseq
    %v1954 = vshrl.u32 %v1953, 7
    %v1955 = vsub.s32 %v1952, %v1954
    %v1956 = vrot.slane %v1949, %v1955
    %v1957 = vcombine.low %v1861, %v1868
    %v1959 = vunpack.c.l.s4 1983009808
    %v1960 = vunpack.c.0.s8 %v1959
    %v1961 = vlaneseq
    %v1962 = vshrl.u32 %v1961, 7
    %v1963 = vsub.s32 %v1960, %v1962
    %v1964 = vrot.slane %v1957, %v1963
    %v1965 = vcombine.low %v1871, %v1872
    %v1967 = vunpack.c.l.s4 1983009808
    %v1968 = vunpack.c.0.s8 %v1967
    %v1969 = vlaneseq
    %v1970 = vshrl.u32 %v1969, 7
    %v1971 = vsub.s32 %v1968, %v1970
    %v1972 = vrot.slane %v1965, %v1971
    %v1973 = vcombine.low %v1948, %v1956
    %v1974 = vcombine.high %v1948, %v1956
    %v1976 = vunpack.c.l.s4 1934713408
    %v1977 = vunpack.c.0.s8 %v1976
    %v1978 = vlaneseq
    %v1979 = vshrl.u32 %v1978, 7
    %v1980 = vsub.s32 %v1977, %v1979
    %v1981 = vrot.slane %v1973, %v1980
    %v1983 = vunpack.c.l.s4 1934713408
    %v1984 = vunpack.c.0.s8 %v1983
    %v1985 = vlaneseq
    %v1986 = vshrl.u32 %v1985, 7
    %v1987 = vsub.s32 %v1984, %v1986
    %v1988 = vrot.slane %v1974, %v1987
    %v1989 = vcombine.low %v1964, %v1972
    %v1990 = vcombine.high %v1964, %v1972
    %v1992 = vunpack.c.l.s4 1934713408
    %v1993 = vunpack.c.0.s8 %v1992
    %v1994 = vlaneseq
    %v1995 = vshrl.u32 %v1994, 7
    %v1996 = vsub.s32 %v1993, %v1995
    %v1997 = vrot.slane %v1989, %v1996
    %v1999 = vunpack.c.l.s4 1934713408
    %v2000 = vunpack.c.0.s8 %v1999
    %v2001 = vlaneseq
    %v2002 = vshrl.u32 %v2001, 7
    %v2003 = vsub.s32 %v2000, %v2002
    %v2004 = vrot.slane %v1990, %v2003
    %v2005 = vcombine.low %v1981, %v1997
    %v2006 = vcombine.high %v1981, %v1997
    %v2007 = vcombine.low %v1988, %v2004
    %v2008 = vcombine.high %v1988, %v2004
    %2011 = vrot.lane.b32.xlu0 %v1938, 8
    %v2012 = vpop.permute.xlu0 %2011
    %2013 = vrot.lane.b32.xlu0 %v2006, 8
    %v2014 = vpop.permute.xlu0 %2013
    %2019 = vrot.lane.b32.xlu0 %v1939, 16
    %v2020 = vpop.permute.xlu0 %2019
    %2021 = vrot.lane.b32.xlu0 %v2007, 16
    %v2022 = vpop.permute.xlu0 %2021
    %2027 = vrot.lane.b32.xlu0 %v1940, 24
    %v2028 = vpop.permute.xlu0 %2027
    %2029 = vrot.lane.b32.xlu0 %v2008, 24
    %v2030 = vpop.permute.xlu0 %2029
    %v2033 = vsel %vm1259, %v1937, %v2012
    %v2034 = vsel %vm1259, %v2005, %v2014
    %v2035 = vsel %vm1468, %v2033, %v2020
    %v2036 = vsel %vm1468, %v2034, %v2022
    %vm2037 = vcmask 195584
    %v2038 = vsel %vm2037, %v2035, %v2028
    %v2039 = vsel %vm2037, %v2036, %v2030
    %v2040 = vpack.c.bf16 %v2039, %v2038
    %v2041 = vld [vmem:[%s7] sm:$0xf]
    %v2042 = vld [vmem:[%s7 + $0x4] sm:$0xf]
    %v2043 = vld [vmem:[%s7 + $0x8] sm:$0xf]
    %v2044 = vld [vmem:[%s7 + $0xc] sm:$0xf]
    %v2045 = vld [vmem:[%s8] sm:$0x1]
    %v2047 = vlaneseq
    %v2048 = vshrl.u32 %v2047, 7
    %v2049 = vsub.s32 0, %v2048
    %v2050 = vrot.slane %v2045, %v2049
    %v2056 = vunpack.c.l.b16 %v2041
    %v2057 = vunpack.c.l.b16 %v2042
    %v2058 = vunpack.c.l.b16 %v2043
    %v2059 = vunpack.c.l.b16 %v2044
    %v2060 = vpack.c.b16 %v2057, %v2056
    %v2061 = vpack.c.b16 %v2059, %v2058
    %v2065 = vsel %vm209, %v2040, 0
    %2067 = vmatprep.subr.bf16.mxu0 0
    %2068 = vmatpush1.bf16.msra.mxu0 %v2060
    %2069 = vmatprep.subr.bf16.mxu0 0
    %2070 = vmatpush1.bf16.msra.mxu0 %v2061
    %2071 = vmatprep.subr.bf16.mxu0 0
    %2072 = vmatpush1.bf16.msra.mxu0 0
    %2073 = vmatprep.subr.bf16.mxu0 0
    %2074 = vmatpush1.bf16.msra.mxu0 0
    %2075 = vmatprep.subr.bf16.mxu0 0
    %2076 = vmatpush1.bf16.msra.mxu0 0
    %2077 = vmatprep.subr.bf16.mxu0 0
    %2078 = vmatpush1.bf16.msra.mxu0 0
    %2079 = vmatprep.subr.bf16.mxu0 0
    %2080 = vmatpush1.bf16.msra.mxu0 0
    %2081 = vmatprep.subr.bf16.mxu0 0
    %2082 = vmatpush1.bf16.msra.mxu0 0
    %2083 = vmatprep.subr.bf16.mxu0 0
    %2084 = vmatpush1.bf16.msra.mxu0 0
    %2085 = vmatprep.subr.bf16.mxu0 0
    %2086 = vmatpush1.bf16.msra.mxu0 0
    %2087 = vmatprep.subr.bf16.mxu0 0
    %2088 = vmatpush1.bf16.msra.mxu0 0
    %2089 = vmatprep.subr.bf16.mxu0 0
    %2090 = vmatpush1.bf16.msra.mxu0 0
    %2091 = vmatprep.subr.bf16.mxu0 0
    %2092 = vmatpush1.bf16.msra.mxu0 0
    %2093 = vmatprep.subr.bf16.mxu0 0
    %2094 = vmatpush1.bf16.msra.mxu0 0
    %2095 = vmatprep.subr.bf16.mxu0 0
    %2096 = vmatpush1.bf16.msra.mxu0 0
    %2097 = vmatprep.subr.bf16.mxu0 0
    %2098 = vmatpush1.bf16.msra.mxu0 0
    %2099 = vmatprep.mubr.bf16.mxu0 0
    %2100 = vmatmul.mubr.bf16.gmra.mrb[0].mxu0 %v2065
    %v2101 = vpop.f32.mrb[0].mxu0
    %v2102 = vadd.f32 %v2050, %v2101
    %v2103 = vpop.f32.mrb[0].mxu0
    %v2104 = vpop.f32.mrb[0].mxu0
    %v2105 = vadd.f32 %v2050, %v2104
    %v2106 = vpop.f32.mrb[0].mxu0
    %2107 = vdwg.mxu0
    %v2108 = vadd.f32 %v253, %v2102
    %v2109 = vadd.f32 %v254, %v2105
    %v2110 = vsel %vm209, %v2108, 0.0
    %2111 = vadd.xlane.f32.xlu0 %v2110
    %v2112 = vpop.xlane.xlu0 %2111
    %v2113 = vsel %vm209, %v2109, 0.0
    %2114 = vadd.xlane.f32.xlu0 %v2113
    %v2115 = vpop.xlane.xlu0 %2114
    %v2116 = vmul.f32 %v2112, %v216
    %v2117 = vmul.f32 %v2115, %v216
    %v2118 = vsub.f32 %v2108, %v2116
    %v2119 = vsub.f32 %v2109, %v2117
    %v2120 = vmul.f32 %v2118, %v2118
    %v2121 = vmul.f32 %v2119, %v2119
    %v2122 = vsel %vm209, %v2120, 0.0
    %2123 = vadd.xlane.f32.xlu0 %v2122
    %v2124 = vpop.xlane.xlu0 %2123
    %v2125 = vsel %vm209, %v2121, 0.0
    %2126 = vadd.xlane.f32.xlu0 %v2125
    %v2127 = vpop.xlane.xlu0 %2126
    %v2128 = vmul.f32 %v2124, %v216
    %v2129 = vmul.f32 %v2127, %v216
    %v2130 = vadd.f32 %v2128, 1e-05
    %v2131 = vadd.f32 %v2129, 1e-05
    %v2132 = vrsqrt.pop %v2130
    %v2133 = vrsqrt.pop %v2131
    %v2134 = vmul.f32 %v2118, %v2132
    %v2135 = vmul.f32 %v2119, %v2133
    %v2136 = vpack.c.bf16 %v2135, %v2134
    %v2137 = vld [vmem:[%s9] sm:$0xf]
    %v2138 = vld [vmem:[%s9 + $0x4] sm:$0xf]
    %v2139 = vld [vmem:[%s9 + $0x8] sm:$0xf]
    %v2140 = vld [vmem:[%s9 + $0xc] sm:$0xf]
    %v2141 = vld [vmem:[%s10] sm:$0x1]
    %v2143 = vlaneseq
    %v2144 = vshrl.u32 %v2143, 7
    %v2145 = vsub.s32 0, %v2144
    %v2146 = vrot.slane %v2141, %v2145
    %v2152 = vunpack.c.l.b16 %v2137
    %v2153 = vunpack.c.l.b16 %v2138
    %v2154 = vunpack.c.l.b16 %v2139
    %v2155 = vunpack.c.l.b16 %v2140
    %v2156 = vpack.c.b16 %v2153, %v2152
    %v2157 = vpack.c.b16 %v2155, %v2154
    %v2161 = vsel %vm209, %v2136, 0
    %2163 = vmatprep.subr.bf16.mxu0 0
    %2164 = vmatpush1.bf16.msra.mxu0 %v2156
    %2165 = vmatprep.subr.bf16.mxu0 0
    %2166 = vmatpush1.bf16.msra.mxu0 %v2157
    %2167 = vmatprep.subr.bf16.mxu0 0
    %2168 = vmatpush1.bf16.msra.mxu0 0
    %2169 = vmatprep.subr.bf16.mxu0 0
    %2170 = vmatpush1.bf16.msra.mxu0 0
    %2171 = vmatprep.subr.bf16.mxu0 0
    %2172 = vmatpush1.bf16.msra.mxu0 0
    %2173 = vmatprep.subr.bf16.mxu0 0
    %2174 = vmatpush1.bf16.msra.mxu0 0
    %2175 = vmatprep.subr.bf16.mxu0 0
    %2176 = vmatpush1.bf16.msra.mxu0 0
    %2177 = vmatprep.subr.bf16.mxu0 0
    %2178 = vmatpush1.bf16.msra.mxu0 0
    %2179 = vmatprep.subr.bf16.mxu0 0
    %2180 = vmatpush1.bf16.msra.mxu0 0
    %2181 = vmatprep.subr.bf16.mxu0 0
    %2182 = vmatpush1.bf16.msra.mxu0 0
    %2183 = vmatprep.subr.bf16.mxu0 0
    %2184 = vmatpush1.bf16.msra.mxu0 0
    %2185 = vmatprep.subr.bf16.mxu0 0
    %2186 = vmatpush1.bf16.msra.mxu0 0
    %2187 = vmatprep.subr.bf16.mxu0 0
    %2188 = vmatpush1.bf16.msra.mxu0 0
    %2189 = vmatprep.subr.bf16.mxu0 0
    %2190 = vmatpush1.bf16.msra.mxu0 0
    %2191 = vmatprep.subr.bf16.mxu0 0
    %2192 = vmatpush1.bf16.msra.mxu0 0
    %2193 = vmatprep.subr.bf16.mxu0 0
    %2194 = vmatpush1.bf16.msra.mxu0 0
    %2195 = vmatprep.mubr.bf16.mxu0 0
    %2196 = vmatmul.mubr.bf16.gmra.mrb[0].mxu0 %v2161
    %v2197 = vpop.f32.mrb[0].mxu0
    %v2198 = vadd.f32 %v2146, %v2197
    %v2199 = vpop.f32.mrb[0].mxu0
    %v2200 = vpop.f32.mrb[0].mxu0
    %v2201 = vadd.f32 %v2146, %v2200
    %v2202 = vpop.f32.mrb[0].mxu0
    %2203 = vdwg.mxu0
    %v2204 = vmul.f32 %v2198, 1.702
    %v2205 = vmul.f32 %v2201, 1.702
    %v2206 = vxor.u32 %v2204, 2147483648
    %v2207 = vxor.u32 %v2205, 2147483648
    %v2208 = vmul.f32 %v2206, 1.442695
    %v2209 = vpow.pop %v2208
    %v2210 = vmul.f32 %v2207, 1.442695
    %v2211 = vpow.pop %v2210
    %v2212 = vadd.f32 %v2209, 1.0
    %v2213 = vadd.f32 %v2211, 1.0
    %v2214 = vrcp.pop %v2212
    %v2215 = vmul.f32 1.0, %v2214
    %v2216 = vrcp.pop %v2213
    %v2217 = vmul.f32 1.0, %v2216
    %v2218 = vmul.f32 %v2198, %v2215
    %v2219 = vmul.f32 %v2201, %v2217
    %v2220 = vpack.c.bf16 %v2219, %v2218
    %v2221 = vld [vmem:[%s11] sm:$0xf]
    %v2222 = vld [vmem:[%s11 + $0x4] sm:$0xf]
    %v2223 = vld [vmem:[%s11 + $0x8] sm:$0xf]
    %v2224 = vld [vmem:[%s11 + $0xc] sm:$0xf]
    %v2225 = vld [vmem:[%s11 + $0x10] sm:$0xf]
    %v2226 = vld [vmem:[%s11 + $0x14] sm:$0xf]
    %v2227 = vld [vmem:[%s11 + $0x18] sm:$0xf]
    %v2228 = vld [vmem:[%s11 + $0x1c] sm:$0xf]
    %v2229 = vld [vmem:[%s11 + $0x20] sm:$0xf]
    %v2230 = vld [vmem:[%s11 + $0x24] sm:$0xf]
    %v2231 = vld [vmem:[%s11 + $0x28] sm:$0xf]
    %v2232 = vld [vmem:[%s11 + $0x2c] sm:$0xf]
    %v2233 = vld [vmem:[%s11 + $0x30] sm:$0xf]
    %v2234 = vld [vmem:[%s11 + $0x34] sm:$0xf]
    %v2235 = vld [vmem:[%s11 + $0x38] sm:$0xf]
    %v2236 = vld [vmem:[%s11 + $0x3c] sm:$0xf]
    %v2237 = vld [vmem:[%s12] sm:$0x1]
    %v2239 = vlaneseq
    %v2240 = vshrl.u32 %v2239, 7
    %v2241 = vsub.s32 0, %v2240
    %v2242 = vrot.slane %v2237, %v2241
    %v2260 = vunpack.c.l.b16 %v2221
    %v2261 = vunpack.c.l.b16 %v2222
    %v2262 = vunpack.c.l.b16 %v2223
    %v2263 = vunpack.c.l.b16 %v2224
    %v2264 = vunpack.c.l.b16 %v2225
    %v2265 = vunpack.c.l.b16 %v2226
    %v2266 = vunpack.c.l.b16 %v2227
    %v2267 = vunpack.c.l.b16 %v2228
    %v2268 = vunpack.c.l.b16 %v2229
    %v2269 = vunpack.c.l.b16 %v2230
    %v2270 = vunpack.c.l.b16 %v2231
    %v2271 = vunpack.c.l.b16 %v2232
    %v2272 = vunpack.c.l.b16 %v2233
    %v2273 = vunpack.c.l.b16 %v2234
    %v2274 = vunpack.c.l.b16 %v2235
    %v2275 = vunpack.c.l.b16 %v2236
    %v2276 = vpack.c.b16 %v2261, %v2260
    %v2277 = vpack.c.b16 %v2263, %v2262
    %v2278 = vpack.c.b16 %v2265, %v2264
    %v2279 = vpack.c.b16 %v2267, %v2266
    %v2280 = vpack.c.b16 %v2269, %v2268
    %v2281 = vpack.c.b16 %v2271, %v2270
    %v2282 = vpack.c.b16 %v2273, %v2272
    %v2283 = vpack.c.b16 %v2275, %v2274
    %2292 = vmatprep.subr.bf16.mxu0 0
    %2293 = vmatpush1.bf16.msra.mxu0 %v2276
    %2294 = vmatprep.subr.bf16.mxu0 0
    %2295 = vmatpush1.bf16.msra.mxu0 %v2277
    %2296 = vmatprep.subr.bf16.mxu0 0
    %2297 = vmatpush1.bf16.msra.mxu0 %v2278
    %2298 = vmatprep.subr.bf16.mxu0 0
    %2299 = vmatpush1.bf16.msra.mxu0 %v2279
    %2300 = vmatprep.subr.bf16.mxu0 0
    %2301 = vmatpush1.bf16.msra.mxu0 %v2280
    %2302 = vmatprep.subr.bf16.mxu0 0
    %2303 = vmatpush1.bf16.msra.mxu0 %v2281
    %2304 = vmatprep.subr.bf16.mxu0 0
    %2305 = vmatpush1.bf16.msra.mxu0 %v2282
    %2306 = vmatprep.subr.bf16.mxu0 0
    %2307 = vmatpush1.bf16.msra.mxu0 %v2283
    %2308 = vmatprep.subr.bf16.mxu0 0
    %2309 = vmatpush1.bf16.msra.mxu0 0
    %2310 = vmatprep.subr.bf16.mxu0 0
    %2311 = vmatpush1.bf16.msra.mxu0 0
    %2312 = vmatprep.subr.bf16.mxu0 0
    %2313 = vmatpush1.bf16.msra.mxu0 0
    %2314 = vmatprep.subr.bf16.mxu0 0
    %2315 = vmatpush1.bf16.msra.mxu0 0
    %2316 = vmatprep.subr.bf16.mxu0 0
    %2317 = vmatpush1.bf16.msra.mxu0 0
    %2318 = vmatprep.subr.bf16.mxu0 0
    %2319 = vmatpush1.bf16.msra.mxu0 0
    %2320 = vmatprep.subr.bf16.mxu0 0
    %2321 = vmatpush1.bf16.msra.mxu0 0
    %2322 = vmatprep.subr.bf16.mxu0 0
    %2323 = vmatpush1.bf16.msra.mxu0 0
    %2324 = vmatprep.mubr.bf16.mxu0 0
    %2325 = vmatmul.mubr.bf16.gmra.mrb[0].mxu0 %v2220
    %v2326 = vpop.f32.mrb[0].mxu0
    %v2327 = vadd.f32 %v2242, %v2326
    %v2328 = vpop.f32.mrb[0].mxu0
    %v2329 = vpop.f32.mrb[0].mxu0
    %v2330 = vadd.f32 %v2242, %v2329
    %v2331 = vpop.f32.mrb[0].mxu0
    %2332 = vdwg.mxu0
    %v2333 = vadd.f32 %v2108, %v2327
    %v2334 = vadd.f32 %v2109, %v2330
    %v2335 = vsel %vm209, %v2333, 0.0
    %2336 = vadd.xlane.f32.xlu0 %v2335
    %v2337 = vpop.xlane.xlu0 %2336
    %v2338 = vsel %vm209, %v2334, 0.0
    %2339 = vadd.xlane.f32.xlu0 %v2338
    %v2340 = vpop.xlane.xlu0 %2339
    %v2341 = vmul.f32 %v2337, %v216
    %v2342 = vmul.f32 %v2340, %v216
    %v2343 = vsub.f32 %v2333, %v2341
    %v2344 = vsub.f32 %v2334, %v2342
    %v2345 = vmul.f32 %v2343, %v2343
    %v2346 = vmul.f32 %v2344, %v2344
    %v2347 = vsel %vm209, %v2345, 0.0
    %2348 = vadd.xlane.f32.xlu0 %v2347
    %v2349 = vpop.xlane.xlu0 %2348
    %v2350 = vsel %vm209, %v2346, 0.0
    %2351 = vadd.xlane.f32.xlu0 %v2350
    %v2352 = vpop.xlane.xlu0 %2351
    %v2353 = vmul.f32 %v2349, %v216
    %v2354 = vmul.f32 %v2352, %v216
    %v2355 = vadd.f32 %v2353, 1e-05
    %v2356 = vadd.f32 %v2354, 1e-05
    %v2357 = vrsqrt.pop %v2355
    %v2358 = vrsqrt.pop %v2356
    %v2359 = vmul.f32 %v2343, %v2357
    %v2360 = vmul.f32 %v2344, %v2358
    %v2361 = vpack.c.bf16 %v2360, %v2359
    %s2362 = scalar_lea.vmem %s5, 16
    %v2363 = vld [vmem:[%s2362] sm:$0xf]
    %v2364 = vld [vmem:[%s2362 + $0x4] sm:$0xf]
    %v2365 = vld [vmem:[%s2362 + $0x8] sm:$0xf]
    %v2366 = vld [vmem:[%s2362 + $0xc] sm:$0xf]
    %s2367 = scalar_lea.vmem %s6, 1
    %v2368 = vld [vmem:[%s2367] sm:$0x1]
    %v2370 = vlaneseq
    %v2371 = vshrl.u32 %v2370, 7
    %v2372 = vsub.s32 0, %v2371
    %v2373 = vrot.slane %v2368, %v2372
    %v2379 = vunpack.c.l.b16 %v2363
    %v2380 = vunpack.c.l.b16 %v2364
    %v2381 = vunpack.c.l.b16 %v2365
    %v2382 = vunpack.c.l.b16 %v2366
    %v2383 = vpack.c.b16 %v2380, %v2379
    %v2384 = vpack.c.b16 %v2382, %v2381
    %v2388 = vsel %vm209, %v2361, 0
    %2390 = vmatprep.subr.bf16.mxu0 0
    %2391 = vmatpush1.bf16.msra.mxu0 %v2383
    %2392 = vmatprep.subr.bf16.mxu0 0
    %2393 = vmatpush1.bf16.msra.mxu0 %v2384
    %2394 = vmatprep.subr.bf16.mxu0 0
    %2395 = vmatpush1.bf16.msra.mxu0 0
    %2396 = vmatprep.subr.bf16.mxu0 0
    %2397 = vmatpush1.bf16.msra.mxu0 0
    %2398 = vmatprep.subr.bf16.mxu0 0
    %2399 = vmatpush1.bf16.msra.mxu0 0
    %2400 = vmatprep.subr.bf16.mxu0 0
    %2401 = vmatpush1.bf16.msra.mxu0 0
    %2402 = vmatprep.subr.bf16.mxu0 0
    %2403 = vmatpush1.bf16.msra.mxu0 0
    %2404 = vmatprep.subr.bf16.mxu0 0
    %2405 = vmatpush1.bf16.msra.mxu0 0
    %2406 = vmatprep.subr.bf16.mxu0 0
    %2407 = vmatpush1.bf16.msra.mxu0 0
    %2408 = vmatprep.subr.bf16.mxu0 0
    %2409 = vmatpush1.bf16.msra.mxu0 0
    %2410 = vmatprep.subr.bf16.mxu0 0
    %2411 = vmatpush1.bf16.msra.mxu0 0
    %2412 = vmatprep.subr.bf16.mxu0 0
    %2413 = vmatpush1.bf16.msra.mxu0 0
    %2414 = vmatprep.subr.bf16.mxu0 0
    %2415 = vmatpush1.bf16.msra.mxu0 0
    %2416 = vmatprep.subr.bf16.mxu0 0
    %2417 = vmatpush1.bf16.msra.mxu0 0
    %2418 = vmatprep.subr.bf16.mxu0 0
    %2419 = vmatpush1.bf16.msra.mxu0 0
    %2420 = vmatprep.subr.bf16.mxu0 0
    %2421 = vmatpush1.bf16.msra.mxu0 0
    %2422 = vmatprep.mubr.bf16.mxu0 0
    %2423 = vmatmul.mubr.bf16.gmra.mrb[0].mxu0 %v2388
    %v2424 = vpop.f32.mrb[0].mxu0
    %v2425 = vadd.f32 %v2373, %v2424
    %v2426 = vpop.f32.mrb[0].mxu0
    %v2427 = vpop.f32.mrb[0].mxu0
    %v2428 = vadd.f32 %v2373, %v2427
    %v2429 = vpop.f32.mrb[0].mxu0
    %2430 = vdwg.mxu0
    %2433 = vrot.lane.b32.xlu0 %v2425, 120
    %v2434 = vpop.permute.xlu0 %2433
    %2435 = vrot.lane.b32.xlu0 %v2428, 120
    %v2436 = vpop.permute.xlu0 %2435
    %2439 = vrot.lane.b32.xlu0 %v2425, 112
    %v2440 = vpop.permute.xlu0 %2439
    %2441 = vrot.lane.b32.xlu0 %v2428, 112
    %v2442 = vpop.permute.xlu0 %2441
    %2445 = vrot.lane.b32.xlu0 %v2425, 104
    %v2446 = vpop.permute.xlu0 %2445
    %2447 = vrot.lane.b32.xlu0 %v2428, 104
    %v2448 = vpop.permute.xlu0 %2447
    %v2451 = vcombine.low %v2425, %v2440
    %v2452 = vcombine.high %v2425, %v2440
    %v2454 = vunpack.c.l.s4 1983009808
    %v2455 = vunpack.c.0.s8 %v2454
    %v2456 = vlaneseq
    %v2457 = vshrl.u32 %v2456, 7
    %v2458 = vsub.s32 %v2455, %v2457
    %v2459 = vrot.slane %v2451, %v2458
    %v2461 = vunpack.c.l.s4 1983009808
    %v2462 = vunpack.c.0.s8 %v2461
    %v2463 = vlaneseq
    %v2464 = vshrl.u32 %v2463, 7
    %v2465 = vsub.s32 %v2462, %v2464
    %v2466 = vrot.slane %v2452, %v2465
    %v2467 = vcombine.low %v2434, %v2446
    %v2468 = vcombine.high %v2434, %v2446
    %v2470 = vunpack.c.l.s4 1983009808
    %v2471 = vunpack.c.0.s8 %v2470
    %v2472 = vlaneseq
    %v2473 = vshrl.u32 %v2472, 7
    %v2474 = vsub.s32 %v2471, %v2473
    %v2475 = vrot.slane %v2467, %v2474
    %v2477 = vunpack.c.l.s4 1983009808
    %v2478 = vunpack.c.0.s8 %v2477
    %v2479 = vlaneseq
    %v2480 = vshrl.u32 %v2479, 7
    %v2481 = vsub.s32 %v2478, %v2480
    %v2482 = vrot.slane %v2468, %v2481
    %v2483 = vcombine.low %v2459, %v2475
    %v2484 = vcombine.high %v2459, %v2475
    %v2486 = vunpack.c.l.s4 1934713408
    %v2487 = vunpack.c.0.s8 %v2486
    %v2488 = vlaneseq
    %v2489 = vshrl.u32 %v2488, 7
    %v2490 = vsub.s32 %v2487, %v2489
    %v2491 = vrot.slane %v2483, %v2490
    %v2493 = vunpack.c.l.s4 1934713408
    %v2494 = vunpack.c.0.s8 %v2493
    %v2495 = vlaneseq
    %v2496 = vshrl.u32 %v2495, 7
    %v2497 = vsub.s32 %v2494, %v2496
    %v2498 = vrot.slane %v2484, %v2497
    %v2499 = vcombine.low %v2466, %v2482
    %v2500 = vcombine.high %v2466, %v2482
    %v2502 = vunpack.c.l.s4 1934713408
    %v2503 = vunpack.c.0.s8 %v2502
    %v2504 = vlaneseq
    %v2505 = vshrl.u32 %v2504, 7
    %v2506 = vsub.s32 %v2503, %v2505
    %v2507 = vrot.slane %v2499, %v2506
    %v2509 = vunpack.c.l.s4 1934713408
    %v2510 = vunpack.c.0.s8 %v2509
    %v2511 = vlaneseq
    %v2512 = vshrl.u32 %v2511, 7
    %v2513 = vsub.s32 %v2510, %v2512
    %v2514 = vrot.slane %v2500, %v2513
    %v2515 = vcombine.high %v2491, 0.0
    %v2516 = vcombine.high %v2498, 0.0
    %v2517 = vcombine.high %v2507, 0.0
    %v2518 = vcombine.high %v2514, 0.0
    %v2519 = vcombine.low %v2428, %v2442
    %v2520 = vcombine.high %v2428, %v2442
    %v2522 = vunpack.c.l.s4 1983009808
    %v2523 = vunpack.c.0.s8 %v2522
    %v2524 = vlaneseq
    %v2525 = vshrl.u32 %v2524, 7
    %v2526 = vsub.s32 %v2523, %v2525
    %v2527 = vrot.slane %v2519, %v2526
    %v2529 = vunpack.c.l.s4 1983009808
    %v2530 = vunpack.c.0.s8 %v2529
    %v2531 = vlaneseq
    %v2532 = vshrl.u32 %v2531, 7
    %v2533 = vsub.s32 %v2530, %v2532
    %v2534 = vrot.slane %v2520, %v2533
    %v2535 = vcombine.low %v2436, %v2448
    %v2536 = vcombine.high %v2436, %v2448
    %v2538 = vunpack.c.l.s4 1983009808
    %v2539 = vunpack.c.0.s8 %v2538
    %v2540 = vlaneseq
    %v2541 = vshrl.u32 %v2540, 7
    %v2542 = vsub.s32 %v2539, %v2541
    %v2543 = vrot.slane %v2535, %v2542
    %v2545 = vunpack.c.l.s4 1983009808
    %v2546 = vunpack.c.0.s8 %v2545
    %v2547 = vlaneseq
    %v2548 = vshrl.u32 %v2547, 7
    %v2549 = vsub.s32 %v2546, %v2548
    %v2550 = vrot.slane %v2536, %v2549
    %v2551 = vcombine.low %v2527, %v2543
    %v2552 = vcombine.high %v2527, %v2543
    %v2554 = vunpack.c.l.s4 1934713408
    %v2555 = vunpack.c.0.s8 %v2554
    %v2556 = vlaneseq
    %v2557 = vshrl.u32 %v2556, 7
    %v2558 = vsub.s32 %v2555, %v2557
    %v2559 = vrot.slane %v2551, %v2558
    %v2561 = vunpack.c.l.s4 1934713408
    %v2562 = vunpack.c.0.s8 %v2561
    %v2563 = vlaneseq
    %v2564 = vshrl.u32 %v2563, 7
    %v2565 = vsub.s32 %v2562, %v2564
    %v2566 = vrot.slane %v2552, %v2565
    %v2567 = vcombine.low %v2534, %v2550
    %v2568 = vcombine.high %v2534, %v2550
    %v2570 = vunpack.c.l.s4 1934713408
    %v2571 = vunpack.c.0.s8 %v2570
    %v2572 = vlaneseq
    %v2573 = vshrl.u32 %v2572, 7
    %v2574 = vsub.s32 %v2571, %v2573
    %v2575 = vrot.slane %v2567, %v2574
    %v2577 = vunpack.c.l.s4 1934713408
    %v2578 = vunpack.c.0.s8 %v2577
    %v2579 = vlaneseq
    %v2580 = vshrl.u32 %v2579, 7
    %v2581 = vsub.s32 %v2578, %v2580
    %v2582 = vrot.slane %v2568, %v2581
    %v2583 = vcombine.high %v2559, 0.0
    %v2584 = vcombine.high %v2566, 0.0
    %v2585 = vcombine.high %v2575, 0.0
    %v2586 = vcombine.high %v2582, 0.0
    %2587 = vrot.lane.b32.xlu0 %v2425, 96
    %v2588 = vpop.permute.xlu0 %2587
    %2589 = vrot.lane.b32.xlu0 %v2428, 96
    %v2590 = vpop.permute.xlu0 %2589
    %2591 = vrot.lane.b32.xlu0 %v2434, 96
    %v2592 = vpop.permute.xlu0 %2591
    %2593 = vrot.lane.b32.xlu0 %v2436, 96
    %v2594 = vpop.permute.xlu0 %2593
    %2595 = vrot.lane.b32.xlu0 %v2440, 96
    %v2596 = vpop.permute.xlu0 %2595
    %2597 = vrot.lane.b32.xlu0 %v2442, 96
    %v2598 = vpop.permute.xlu0 %2597
    %2599 = vrot.lane.b32.xlu0 %v2446, 96
    %v2600 = vpop.permute.xlu0 %2599
    %2601 = vrot.lane.b32.xlu0 %v2448, 96
    %v2602 = vpop.permute.xlu0 %2601
    %v2611 = vcombine.low %v2588, %v2596
    %v2612 = vcombine.high %v2588, %v2596
    %v2614 = vunpack.c.l.s4 1983009808
    %v2615 = vunpack.c.0.s8 %v2614
    %v2616 = vlaneseq
    %v2617 = vshrl.u32 %v2616, 7
    %v2618 = vsub.s32 %v2615, %v2617
    %v2619 = vrot.slane %v2611, %v2618
    %v2621 = vunpack.c.l.s4 1983009808
    %v2622 = vunpack.c.0.s8 %v2621
    %v2623 = vlaneseq
    %v2624 = vshrl.u32 %v2623, 7
    %v2625 = vsub.s32 %v2622, %v2624
    %v2626 = vrot.slane %v2612, %v2625
    %v2627 = vcombine.low %v2592, %v2600
    %v2628 = vcombine.high %v2592, %v2600
    %v2630 = vunpack.c.l.s4 1983009808
    %v2631 = vunpack.c.0.s8 %v2630
    %v2632 = vlaneseq
    %v2633 = vshrl.u32 %v2632, 7
    %v2634 = vsub.s32 %v2631, %v2633
    %v2635 = vrot.slane %v2627, %v2634
    %v2637 = vunpack.c.l.s4 1983009808
    %v2638 = vunpack.c.0.s8 %v2637
    %v2639 = vlaneseq
    %v2640 = vshrl.u32 %v2639, 7
    %v2641 = vsub.s32 %v2638, %v2640
    %v2642 = vrot.slane %v2628, %v2641
    %v2643 = vcombine.low %v2619, %v2635
    %v2644 = vcombine.high %v2619, %v2635
    %v2646 = vunpack.c.l.s4 1934713408
    %v2647 = vunpack.c.0.s8 %v2646
    %v2648 = vlaneseq
    %v2649 = vshrl.u32 %v2648, 7
    %v2650 = vsub.s32 %v2647, %v2649
    %v2651 = vrot.slane %v2643, %v2650
    %v2653 = vunpack.c.l.s4 1934713408
    %v2654 = vunpack.c.0.s8 %v2653
    %v2655 = vlaneseq
    %v2656 = vshrl.u32 %v2655, 7
    %v2657 = vsub.s32 %v2654, %v2656
    %v2658 = vrot.slane %v2644, %v2657
    %v2659 = vcombine.low %v2626, %v2642
    %v2660 = vcombine.high %v2626, %v2642
    %v2662 = vunpack.c.l.s4 1934713408
    %v2663 = vunpack.c.0.s8 %v2662
    %v2664 = vlaneseq
    %v2665 = vshrl.u32 %v2664, 7
    %v2666 = vsub.s32 %v2663, %v2665
    %v2667 = vrot.slane %v2659, %v2666
    %v2669 = vunpack.c.l.s4 1934713408
    %v2670 = vunpack.c.0.s8 %v2669
    %v2671 = vlaneseq
    %v2672 = vshrl.u32 %v2671, 7
    %v2673 = vsub.s32 %v2670, %v2672
    %v2674 = vrot.slane %v2660, %v2673
    %v2675 = vcombine.high %v2651, 0.0
    %v2676 = vcombine.high %v2658, 0.0
    %v2677 = vcombine.high %v2667, 0.0
    %v2678 = vcombine.high %v2674, 0.0
    %v2679 = vcombine.low %v2590, %v2598
    %v2680 = vcombine.high %v2590, %v2598
    %v2682 = vunpack.c.l.s4 1983009808
    %v2683 = vunpack.c.0.s8 %v2682
    %v2684 = vlaneseq
    %v2685 = vshrl.u32 %v2684, 7
    %v2686 = vsub.s32 %v2683, %v2685
    %v2687 = vrot.slane %v2679, %v2686
    %v2689 = vunpack.c.l.s4 1983009808
    %v2690 = vunpack.c.0.s8 %v2689
    %v2691 = vlaneseq
    %v2692 = vshrl.u32 %v2691, 7
    %v2693 = vsub.s32 %v2690, %v2692
    %v2694 = vrot.slane %v2680, %v2693
    %v2695 = vcombine.low %v2594, %v2602
    %v2696 = vcombine.high %v2594, %v2602
    %v2698 = vunpack.c.l.s4 1983009808
    %v2699 = vunpack.c.0.s8 %v2698
    %v2700 = vlaneseq
    %v2701 = vshrl.u32 %v2700, 7
    %v2702 = vsub.s32 %v2699, %v2701
    %v2703 = vrot.slane %v2695, %v2702
    %v2705 = vunpack.c.l.s4 1983009808
    %v2706 = vunpack.c.0.s8 %v2705
    %v2707 = vlaneseq
    %v2708 = vshrl.u32 %v2707, 7
    %v2709 = vsub.s32 %v2706, %v2708
    %v2710 = vrot.slane %v2696, %v2709
    %v2711 = vcombine.low %v2687, %v2703
    %v2712 = vcombine.high %v2687, %v2703
    %v2714 = vunpack.c.l.s4 1934713408
    %v2715 = vunpack.c.0.s8 %v2714
    %v2716 = vlaneseq
    %v2717 = vshrl.u32 %v2716, 7
    %v2718 = vsub.s32 %v2715, %v2717
    %v2719 = vrot.slane %v2711, %v2718
    %v2721 = vunpack.c.l.s4 1934713408
    %v2722 = vunpack.c.0.s8 %v2721
    %v2723 = vlaneseq
    %v2724 = vshrl.u32 %v2723, 7
    %v2725 = vsub.s32 %v2722, %v2724
    %v2726 = vrot.slane %v2712, %v2725
    %v2727 = vcombine.low %v2694, %v2710
    %v2728 = vcombine.high %v2694, %v2710
    %v2730 = vunpack.c.l.s4 1934713408
    %v2731 = vunpack.c.0.s8 %v2730
    %v2732 = vlaneseq
    %v2733 = vshrl.u32 %v2732, 7
    %v2734 = vsub.s32 %v2731, %v2733
    %v2735 = vrot.slane %v2727, %v2734
    %v2737 = vunpack.c.l.s4 1934713408
    %v2738 = vunpack.c.0.s8 %v2737
    %v2739 = vlaneseq
    %v2740 = vshrl.u32 %v2739, 7
    %v2741 = vsub.s32 %v2738, %v2740
    %v2742 = vrot.slane %v2728, %v2741
    %v2743 = vcombine.high %v2719, 0.0
    %v2744 = vcombine.high %v2726, 0.0
    %v2745 = vcombine.high %v2735, 0.0
    %v2746 = vcombine.high %v2742, 0.0
    %2747 = vrot.lane.b32.xlu0 %v2425, 64
    %v2748 = vpop.permute.xlu0 %2747
    %2749 = vrot.lane.b32.xlu0 %v2428, 64
    %v2750 = vpop.permute.xlu0 %2749
    %2751 = vrot.lane.b32.xlu0 %v2434, 64
    %v2752 = vpop.permute.xlu0 %2751
    %2753 = vrot.lane.b32.xlu0 %v2436, 64
    %v2754 = vpop.permute.xlu0 %2753
    %2755 = vrot.lane.b32.xlu0 %v2440, 64
    %v2756 = vpop.permute.xlu0 %2755
    %2757 = vrot.lane.b32.xlu0 %v2442, 64
    %v2758 = vpop.permute.xlu0 %2757
    %2759 = vrot.lane.b32.xlu0 %v2446, 64
    %v2760 = vpop.permute.xlu0 %2759
    %2761 = vrot.lane.b32.xlu0 %v2448, 64
    %v2762 = vpop.permute.xlu0 %2761
    %v2771 = vcombine.low %v2748, %v2756
    %v2772 = vcombine.high %v2748, %v2756
    %v2774 = vunpack.c.l.s4 1983009808
    %v2775 = vunpack.c.0.s8 %v2774
    %v2776 = vlaneseq
    %v2777 = vshrl.u32 %v2776, 7
    %v2778 = vsub.s32 %v2775, %v2777
    %v2779 = vrot.slane %v2771, %v2778
    %v2781 = vunpack.c.l.s4 1983009808
    %v2782 = vunpack.c.0.s8 %v2781
    %v2783 = vlaneseq
    %v2784 = vshrl.u32 %v2783, 7
    %v2785 = vsub.s32 %v2782, %v2784
    %v2786 = vrot.slane %v2772, %v2785
    %v2787 = vcombine.low %v2752, %v2760
    %v2788 = vcombine.high %v2752, %v2760
    %v2790 = vunpack.c.l.s4 1983009808
    %v2791 = vunpack.c.0.s8 %v2790
    %v2792 = vlaneseq
    %v2793 = vshrl.u32 %v2792, 7
    %v2794 = vsub.s32 %v2791, %v2793
    %v2795 = vrot.slane %v2787, %v2794
    %v2797 = vunpack.c.l.s4 1983009808
    %v2798 = vunpack.c.0.s8 %v2797
    %v2799 = vlaneseq
    %v2800 = vshrl.u32 %v2799, 7
    %v2801 = vsub.s32 %v2798, %v2800
    %v2802 = vrot.slane %v2788, %v2801
    %v2803 = vcombine.low %v2779, %v2795
    %v2804 = vcombine.high %v2779, %v2795
    %v2806 = vunpack.c.l.s4 1934713408
    %v2807 = vunpack.c.0.s8 %v2806
    %v2808 = vlaneseq
    %v2809 = vshrl.u32 %v2808, 7
    %v2810 = vsub.s32 %v2807, %v2809
    %v2811 = vrot.slane %v2803, %v2810
    %v2813 = vunpack.c.l.s4 1934713408
    %v2814 = vunpack.c.0.s8 %v2813
    %v2815 = vlaneseq
    %v2816 = vshrl.u32 %v2815, 7
    %v2817 = vsub.s32 %v2814, %v2816
    %v2818 = vrot.slane %v2804, %v2817
    %v2819 = vcombine.low %v2786, %v2802
    %v2820 = vcombine.high %v2786, %v2802
    %v2822 = vunpack.c.l.s4 1934713408
    %v2823 = vunpack.c.0.s8 %v2822
    %v2824 = vlaneseq
    %v2825 = vshrl.u32 %v2824, 7
    %v2826 = vsub.s32 %v2823, %v2825
    %v2827 = vrot.slane %v2819, %v2826
    %v2829 = vunpack.c.l.s4 1934713408
    %v2830 = vunpack.c.0.s8 %v2829
    %v2831 = vlaneseq
    %v2832 = vshrl.u32 %v2831, 7
    %v2833 = vsub.s32 %v2830, %v2832
    %v2834 = vrot.slane %v2820, %v2833
    %v2835 = vcombine.high %v2811, 0.0
    %v2836 = vcombine.high %v2818, 0.0
    %v2837 = vcombine.high %v2827, 0.0
    %v2838 = vcombine.high %v2834, 0.0
    %v2839 = vcombine.low %v2750, %v2758
    %v2840 = vcombine.high %v2750, %v2758
    %v2842 = vunpack.c.l.s4 1983009808
    %v2843 = vunpack.c.0.s8 %v2842
    %v2844 = vlaneseq
    %v2845 = vshrl.u32 %v2844, 7
    %v2846 = vsub.s32 %v2843, %v2845
    %v2847 = vrot.slane %v2839, %v2846
    %v2849 = vunpack.c.l.s4 1983009808
    %v2850 = vunpack.c.0.s8 %v2849
    %v2851 = vlaneseq
    %v2852 = vshrl.u32 %v2851, 7
    %v2853 = vsub.s32 %v2850, %v2852
    %v2854 = vrot.slane %v2840, %v2853
    %v2855 = vcombine.low %v2754, %v2762
    %v2856 = vcombine.high %v2754, %v2762
    %v2858 = vunpack.c.l.s4 1983009808
    %v2859 = vunpack.c.0.s8 %v2858
    %v2860 = vlaneseq
    %v2861 = vshrl.u32 %v2860, 7
    %v2862 = vsub.s32 %v2859, %v2861
    %v2863 = vrot.slane %v2855, %v2862
    %v2865 = vunpack.c.l.s4 1983009808
    %v2866 = vunpack.c.0.s8 %v2865
    %v2867 = vlaneseq
    %v2868 = vshrl.u32 %v2867, 7
    %v2869 = vsub.s32 %v2866, %v2868
    %v2870 = vrot.slane %v2856, %v2869
    %v2871 = vcombine.low %v2847, %v2863
    %v2872 = vcombine.high %v2847, %v2863
    %v2874 = vunpack.c.l.s4 1934713408
    %v2875 = vunpack.c.0.s8 %v2874
    %v2876 = vlaneseq
    %v2877 = vshrl.u32 %v2876, 7
    %v2878 = vsub.s32 %v2875, %v2877
    %v2879 = vrot.slane %v2871, %v2878
    %v2881 = vunpack.c.l.s4 1934713408
    %v2882 = vunpack.c.0.s8 %v2881
    %v2883 = vlaneseq
    %v2884 = vshrl.u32 %v2883, 7
    %v2885 = vsub.s32 %v2882, %v2884
    %v2886 = vrot.slane %v2872, %v2885
    %v2887 = vcombine.low %v2854, %v2870
    %v2888 = vcombine.high %v2854, %v2870
    %v2890 = vunpack.c.l.s4 1934713408
    %v2891 = vunpack.c.0.s8 %v2890
    %v2892 = vlaneseq
    %v2893 = vshrl.u32 %v2892, 7
    %v2894 = vsub.s32 %v2891, %v2893
    %v2895 = vrot.slane %v2887, %v2894
    %v2897 = vunpack.c.l.s4 1934713408
    %v2898 = vunpack.c.0.s8 %v2897
    %v2899 = vlaneseq
    %v2900 = vshrl.u32 %v2899, 7
    %v2901 = vsub.s32 %v2898, %v2900
    %v2902 = vrot.slane %v2888, %v2901
    %v2903 = vcombine.high %v2879, 0.0
    %v2904 = vcombine.high %v2886, 0.0
    %v2905 = vcombine.high %v2895, 0.0
    %v2906 = vcombine.high %v2902, 0.0
    %v2907 = vcombine.low %v2491, %v2498
    %v2909 = vunpack.c.l.s4 1983009808
    %v2910 = vunpack.c.0.s8 %v2909
    %v2911 = vlaneseq
    %v2912 = vshrl.u32 %v2911, 7
    %v2913 = vsub.s32 %v2910, %v2912
    %v2914 = vrot.slane %v2907, %v2913
    %v2915 = vcombine.low %v2515, %v2516
    %v2917 = vunpack.c.l.s4 1983009808
    %v2918 = vunpack.c.0.s8 %v2917
    %v2919 = vlaneseq
    %v2920 = vshrl.u32 %v2919, 7
    %v2921 = vsub.s32 %v2918, %v2920
    %v2922 = vrot.slane %v2915, %v2921
    %v2923 = vcombine.low %v2507, %v2514
    %v2925 = vunpack.c.l.s4 1983009808
    %v2926 = vunpack.c.0.s8 %v2925
    %v2927 = vlaneseq
    %v2928 = vshrl.u32 %v2927, 7
    %v2929 = vsub.s32 %v2926, %v2928
    %v2930 = vrot.slane %v2923, %v2929
    %v2931 = vcombine.low %v2517, %v2518
    %v2933 = vunpack.c.l.s4 1983009808
    %v2934 = vunpack.c.0.s8 %v2933
    %v2935 = vlaneseq
    %v2936 = vshrl.u32 %v2935, 7
    %v2937 = vsub.s32 %v2934, %v2936
    %v2938 = vrot.slane %v2931, %v2937
    %v2939 = vcombine.low %v2914, %v2922
    %v2940 = vcombine.high %v2914, %v2922
    %v2942 = vunpack.c.l.s4 1934713408
    %v2943 = vunpack.c.0.s8 %v2942
    %v2944 = vlaneseq
    %v2945 = vshrl.u32 %v2944, 7
    %v2946 = vsub.s32 %v2943, %v2945
    %v2947 = vrot.slane %v2939, %v2946
    %v2949 = vunpack.c.l.s4 1934713408
    %v2950 = vunpack.c.0.s8 %v2949
    %v2951 = vlaneseq
    %v2952 = vshrl.u32 %v2951, 7
    %v2953 = vsub.s32 %v2950, %v2952
    %v2954 = vrot.slane %v2940, %v2953
    %v2955 = vcombine.low %v2930, %v2938
    %v2956 = vcombine.high %v2930, %v2938
    %v2958 = vunpack.c.l.s4 1934713408
    %v2959 = vunpack.c.0.s8 %v2958
    %v2960 = vlaneseq
    %v2961 = vshrl.u32 %v2960, 7
    %v2962 = vsub.s32 %v2959, %v2961
    %v2963 = vrot.slane %v2955, %v2962
    %v2965 = vunpack.c.l.s4 1934713408
    %v2966 = vunpack.c.0.s8 %v2965
    %v2967 = vlaneseq
    %v2968 = vshrl.u32 %v2967, 7
    %v2969 = vsub.s32 %v2966, %v2968
    %v2970 = vrot.slane %v2956, %v2969
    %v2971 = vcombine.low %v2947, %v2963
    %v2972 = vcombine.high %v2947, %v2963
    %v2973 = vcombine.low %v2954, %v2970
    %v2974 = vcombine.high %v2954, %v2970
    %v2975 = vcombine.low %v2559, %v2566
    %v2977 = vunpack.c.l.s4 1983009808
    %v2978 = vunpack.c.0.s8 %v2977
    %v2979 = vlaneseq
    %v2980 = vshrl.u32 %v2979, 7
    %v2981 = vsub.s32 %v2978, %v2980
    %v2982 = vrot.slane %v2975, %v2981
    %v2983 = vcombine.low %v2583, %v2584
    %v2985 = vunpack.c.l.s4 1983009808
    %v2986 = vunpack.c.0.s8 %v2985
    %v2987 = vlaneseq
    %v2988 = vshrl.u32 %v2987, 7
    %v2989 = vsub.s32 %v2986, %v2988
    %v2990 = vrot.slane %v2983, %v2989
    %v2991 = vcombine.low %v2575, %v2582
    %v2993 = vunpack.c.l.s4 1983009808
    %v2994 = vunpack.c.0.s8 %v2993
    %v2995 = vlaneseq
    %v2996 = vshrl.u32 %v2995, 7
    %v2997 = vsub.s32 %v2994, %v2996
    %v2998 = vrot.slane %v2991, %v2997
    %v2999 = vcombine.low %v2585, %v2586
    %v3001 = vunpack.c.l.s4 1983009808
    %v3002 = vunpack.c.0.s8 %v3001
    %v3003 = vlaneseq
    %v3004 = vshrl.u32 %v3003, 7
    %v3005 = vsub.s32 %v3002, %v3004
    %v3006 = vrot.slane %v2999, %v3005
    %v3007 = vcombine.low %v2982, %v2990
    %v3008 = vcombine.high %v2982, %v2990
    %v3010 = vunpack.c.l.s4 1934713408
    %v3011 = vunpack.c.0.s8 %v3010
    %v3012 = vlaneseq
    %v3013 = vshrl.u32 %v3012, 7
    %v3014 = vsub.s32 %v3011, %v3013
    %v3015 = vrot.slane %v3007, %v3014
    %v3017 = vunpack.c.l.s4 1934713408
    %v3018 = vunpack.c.0.s8 %v3017
    %v3019 = vlaneseq
    %v3020 = vshrl.u32 %v3019, 7
    %v3021 = vsub.s32 %v3018, %v3020
    %v3022 = vrot.slane %v3008, %v3021
    %v3023 = vcombine.low %v2998, %v3006
    %v3024 = vcombine.high %v2998, %v3006
    %v3026 = vunpack.c.l.s4 1934713408
    %v3027 = vunpack.c.0.s8 %v3026
    %v3028 = vlaneseq
    %v3029 = vshrl.u32 %v3028, 7
    %v3030 = vsub.s32 %v3027, %v3029
    %v3031 = vrot.slane %v3023, %v3030
    %v3033 = vunpack.c.l.s4 1934713408
    %v3034 = vunpack.c.0.s8 %v3033
    %v3035 = vlaneseq
    %v3036 = vshrl.u32 %v3035, 7
    %v3037 = vsub.s32 %v3034, %v3036
    %v3038 = vrot.slane %v3024, %v3037
    %v3039 = vcombine.low %v3015, %v3031
    %v3040 = vcombine.high %v3015, %v3031
    %v3041 = vcombine.low %v3022, %v3038
    %v3042 = vcombine.high %v3022, %v3038
    %v3043 = vpack.c.bf16 %v3039, %v2971
    %v3044 = vpack.c.bf16 %v3040, %v2972
    %v3045 = vpack.c.bf16 %v3041, %v2973
    %v3046 = vpack.c.bf16 %v3042, %v2974
    %v3047 = vcombine.low %v2651, %v2658
    %v3049 = vunpack.c.l.s4 1983009808
    %v3050 = vunpack.c.0.s8 %v3049
    %v3051 = vlaneseq
    %v3052 = vshrl.u32 %v3051, 7
    %v3053 = vsub.s32 %v3050, %v3052
    %v3054 = vrot.slane %v3047, %v3053
    %v3055 = vcombine.low %v2675, %v2676
    %v3057 = vunpack.c.l.s4 1983009808
    %v3058 = vunpack.c.0.s8 %v3057
    %v3059 = vlaneseq
    %v3060 = vshrl.u32 %v3059, 7
    %v3061 = vsub.s32 %v3058, %v3060
    %v3062 = vrot.slane %v3055, %v3061
    %v3063 = vcombine.low %v2667, %v2674
    %v3065 = vunpack.c.l.s4 1983009808
    %v3066 = vunpack.c.0.s8 %v3065
    %v3067 = vlaneseq
    %v3068 = vshrl.u32 %v3067, 7
    %v3069 = vsub.s32 %v3066, %v3068
    %v3070 = vrot.slane %v3063, %v3069
    %v3071 = vcombine.low %v2677, %v2678
    %v3073 = vunpack.c.l.s4 1983009808
    %v3074 = vunpack.c.0.s8 %v3073
    %v3075 = vlaneseq
    %v3076 = vshrl.u32 %v3075, 7
    %v3077 = vsub.s32 %v3074, %v3076
    %v3078 = vrot.slane %v3071, %v3077
    %v3079 = vcombine.low %v3054, %v3062
    %v3080 = vcombine.high %v3054, %v3062
    %v3082 = vunpack.c.l.s4 1934713408
    %v3083 = vunpack.c.0.s8 %v3082
    %v3084 = vlaneseq
    %v3085 = vshrl.u32 %v3084, 7
    %v3086 = vsub.s32 %v3083, %v3085
    %v3087 = vrot.slane %v3079, %v3086
    %v3089 = vunpack.c.l.s4 1934713408
    %v3090 = vunpack.c.0.s8 %v3089
    %v3091 = vlaneseq
    %v3092 = vshrl.u32 %v3091, 7
    %v3093 = vsub.s32 %v3090, %v3092
    %v3094 = vrot.slane %v3080, %v3093
    %v3095 = vcombine.low %v3070, %v3078
    %v3096 = vcombine.high %v3070, %v3078
    %v3098 = vunpack.c.l.s4 1934713408
    %v3099 = vunpack.c.0.s8 %v3098
    %v3100 = vlaneseq
    %v3101 = vshrl.u32 %v3100, 7
    %v3102 = vsub.s32 %v3099, %v3101
    %v3103 = vrot.slane %v3095, %v3102
    %v3105 = vunpack.c.l.s4 1934713408
    %v3106 = vunpack.c.0.s8 %v3105
    %v3107 = vlaneseq
    %v3108 = vshrl.u32 %v3107, 7
    %v3109 = vsub.s32 %v3106, %v3108
    %v3110 = vrot.slane %v3096, %v3109
    %v3111 = vcombine.low %v3087, %v3103
    %v3112 = vcombine.high %v3087, %v3103
    %v3113 = vcombine.low %v3094, %v3110
    %v3114 = vcombine.high %v3094, %v3110
    %v3115 = vcombine.low %v2719, %v2726
    %v3117 = vunpack.c.l.s4 1983009808
    %v3118 = vunpack.c.0.s8 %v3117
    %v3119 = vlaneseq
    %v3120 = vshrl.u32 %v3119, 7
    %v3121 = vsub.s32 %v3118, %v3120
    %v3122 = vrot.slane %v3115, %v3121
    %v3123 = vcombine.low %v2743, %v2744
    %v3125 = vunpack.c.l.s4 1983009808
    %v3126 = vunpack.c.0.s8 %v3125
    %v3127 = vlaneseq
    %v3128 = vshrl.u32 %v3127, 7
    %v3129 = vsub.s32 %v3126, %v3128
    %v3130 = vrot.slane %v3123, %v3129
    %v3131 = vcombine.low %v2735, %v2742
    %v3133 = vunpack.c.l.s4 1983009808
    %v3134 = vunpack.c.0.s8 %v3133
    %v3135 = vlaneseq
    %v3136 = vshrl.u32 %v3135, 7
    %v3137 = vsub.s32 %v3134, %v3136
    %v3138 = vrot.slane %v3131, %v3137
    %v3139 = vcombine.low %v2745, %v2746
    %v3141 = vunpack.c.l.s4 1983009808
    %v3142 = vunpack.c.0.s8 %v3141
    %v3143 = vlaneseq
    %v3144 = vshrl.u32 %v3143, 7
    %v3145 = vsub.s32 %v3142, %v3144
    %v3146 = vrot.slane %v3139, %v3145
    %v3147 = vcombine.low %v3122, %v3130
    %v3148 = vcombine.high %v3122, %v3130
    %v3150 = vunpack.c.l.s4 1934713408
    %v3151 = vunpack.c.0.s8 %v3150
    %v3152 = vlaneseq
    %v3153 = vshrl.u32 %v3152, 7
    %v3154 = vsub.s32 %v3151, %v3153
    %v3155 = vrot.slane %v3147, %v3154
    %v3157 = vunpack.c.l.s4 1934713408
    %v3158 = vunpack.c.0.s8 %v3157
    %v3159 = vlaneseq
    %v3160 = vshrl.u32 %v3159, 7
    %v3161 = vsub.s32 %v3158, %v3160
    %v3162 = vrot.slane %v3148, %v3161
    %v3163 = vcombine.low %v3138, %v3146
    %v3164 = vcombine.high %v3138, %v3146
    %v3166 = vunpack.c.l.s4 1934713408
    %v3167 = vunpack.c.0.s8 %v3166
    %v3168 = vlaneseq
    %v3169 = vshrl.u32 %v3168, 7
    %v3170 = vsub.s32 %v3167, %v3169
    %v3171 = vrot.slane %v3163, %v3170
    %v3173 = vunpack.c.l.s4 1934713408
    %v3174 = vunpack.c.0.s8 %v3173
    %v3175 = vlaneseq
    %v3176 = vshrl.u32 %v3175, 7
    %v3177 = vsub.s32 %v3174, %v3176
    %v3178 = vrot.slane %v3164, %v3177
    %v3179 = vcombine.low %v3155, %v3171
    %v3180 = vcombine.high %v3155, %v3171
    %v3181 = vcombine.low %v3162, %v3178
    %v3182 = vcombine.high %v3162, %v3178
    %v3183 = vpack.c.bf16 %v3179, %v3111
    %v3184 = vpack.c.bf16 %v3180, %v3112
    %v3185 = vpack.c.bf16 %v3181, %v3113
    %v3186 = vpack.c.bf16 %v3182, %v3114
    %v3187 = vcombine.low %v2811, %v2818
    %v3189 = vunpack.c.l.s4 1983009808
    %v3190 = vunpack.c.0.s8 %v3189
    %v3191 = vlaneseq
    %v3192 = vshrl.u32 %v3191, 7
    %v3193 = vsub.s32 %v3190, %v3192
    %v3194 = vrot.slane %v3187, %v3193
    %v3195 = vcombine.low %v2835, %v2836
    %v3197 = vunpack.c.l.s4 1983009808
    %v3198 = vunpack.c.0.s8 %v3197
    %v3199 = vlaneseq
    %v3200 = vshrl.u32 %v3199, 7
    %v3201 = vsub.s32 %v3198, %v3200
    %v3202 = vrot.slane %v3195, %v3201
    %v3203 = vcombine.low %v2827, %v2834
    %v3205 = vunpack.c.l.s4 1983009808
    %v3206 = vunpack.c.0.s8 %v3205
    %v3207 = vlaneseq
    %v3208 = vshrl.u32 %v3207, 7
    %v3209 = vsub.s32 %v3206, %v3208
    %v3210 = vrot.slane %v3203, %v3209
    %v3211 = vcombine.low %v2837, %v2838
    %v3213 = vunpack.c.l.s4 1983009808
    %v3214 = vunpack.c.0.s8 %v3213
    %v3215 = vlaneseq
    %v3216 = vshrl.u32 %v3215, 7
    %v3217 = vsub.s32 %v3214, %v3216
    %v3218 = vrot.slane %v3211, %v3217
    %v3219 = vcombine.low %v3194, %v3202
    %v3220 = vcombine.high %v3194, %v3202
    %v3222 = vunpack.c.l.s4 1934713408
    %v3223 = vunpack.c.0.s8 %v3222
    %v3224 = vlaneseq
    %v3225 = vshrl.u32 %v3224, 7
    %v3226 = vsub.s32 %v3223, %v3225
    %v3227 = vrot.slane %v3219, %v3226
    %v3229 = vunpack.c.l.s4 1934713408
    %v3230 = vunpack.c.0.s8 %v3229
    %v3231 = vlaneseq
    %v3232 = vshrl.u32 %v3231, 7
    %v3233 = vsub.s32 %v3230, %v3232
    %v3234 = vrot.slane %v3220, %v3233
    %v3235 = vcombine.low %v3210, %v3218
    %v3236 = vcombine.high %v3210, %v3218
    %v3238 = vunpack.c.l.s4 1934713408
    %v3239 = vunpack.c.0.s8 %v3238
    %v3240 = vlaneseq
    %v3241 = vshrl.u32 %v3240, 7
    %v3242 = vsub.s32 %v3239, %v3241
    %v3243 = vrot.slane %v3235, %v3242
    %v3245 = vunpack.c.l.s4 1934713408
    %v3246 = vunpack.c.0.s8 %v3245
    %v3247 = vlaneseq
    %v3248 = vshrl.u32 %v3247, 7
    %v3249 = vsub.s32 %v3246, %v3248
    %v3250 = vrot.slane %v3236, %v3249
    %v3251 = vcombine.low %v3227, %v3243
    %v3252 = vcombine.high %v3227, %v3243
    %v3253 = vcombine.low %v3234, %v3250
    %v3254 = vcombine.high %v3234, %v3250
    %v3255 = vcombine.low %v2879, %v2886
    %v3257 = vunpack.c.l.s4 1983009808
    %v3258 = vunpack.c.0.s8 %v3257
    %v3259 = vlaneseq
    %v3260 = vshrl.u32 %v3259, 7
    %v3261 = vsub.s32 %v3258, %v3260
    %v3262 = vrot.slane %v3255, %v3261
    %v3263 = vcombine.low %v2903, %v2904
    %v3265 = vunpack.c.l.s4 1983009808
    %v3266 = vunpack.c.0.s8 %v3265
    %v3267 = vlaneseq
    %v3268 = vshrl.u32 %v3267, 7
    %v3269 = vsub.s32 %v3266, %v3268
    %v3270 = vrot.slane %v3263, %v3269
    %v3271 = vcombine.low %v2895, %v2902
    %v3273 = vunpack.c.l.s4 1983009808
    %v3274 = vunpack.c.0.s8 %v3273
    %v3275 = vlaneseq
    %v3276 = vshrl.u32 %v3275, 7
    %v3277 = vsub.s32 %v3274, %v3276
    %v3278 = vrot.slane %v3271, %v3277
    %v3279 = vcombine.low %v2905, %v2906
    %v3281 = vunpack.c.l.s4 1983009808
    %v3282 = vunpack.c.0.s8 %v3281
    %v3283 = vlaneseq
    %v3284 = vshrl.u32 %v3283, 7
    %v3285 = vsub.s32 %v3282, %v3284
    %v3286 = vrot.slane %v3279, %v3285
    %v3287 = vcombine.low %v3262, %v3270
    %v3288 = vcombine.high %v3262, %v3270
    %v3290 = vunpack.c.l.s4 1934713408
    %v3291 = vunpack.c.0.s8 %v3290
    %v3292 = vlaneseq
    %v3293 = vshrl.u32 %v3292, 7
    %v3294 = vsub.s32 %v3291, %v3293
    %v3295 = vrot.slane %v3287, %v3294
    %v3297 = vunpack.c.l.s4 1934713408
    %v3298 = vunpack.c.0.s8 %v3297
    %v3299 = vlaneseq
    %v3300 = vshrl.u32 %v3299, 7
    %v3301 = vsub.s32 %v3298, %v3300
    %v3302 = vrot.slane %v3288, %v3301
    %v3303 = vcombine.low %v3278, %v3286
    %v3304 = vcombine.high %v3278, %v3286
    %v3306 = vunpack.c.l.s4 1934713408
    %v3307 = vunpack.c.0.s8 %v3306
    %v3308 = vlaneseq
    %v3309 = vshrl.u32 %v3308, 7
    %v3310 = vsub.s32 %v3307, %v3309
    %v3311 = vrot.slane %v3303, %v3310
    %v3313 = vunpack.c.l.s4 1934713408
    %v3314 = vunpack.c.0.s8 %v3313
    %v3315 = vlaneseq
    %v3316 = vshrl.u32 %v3315, 7
    %v3317 = vsub.s32 %v3314, %v3316
    %v3318 = vrot.slane %v3304, %v3317
    %v3319 = vcombine.low %v3295, %v3311
    %v3320 = vcombine.high %v3295, %v3311
    %v3321 = vcombine.low %v3302, %v3318
    %v3322 = vcombine.high %v3302, %v3318
    %v3323 = vpack.c.bf16 %v3319, %v3251
    %v3324 = vpack.c.bf16 %v3320, %v3252
    %v3325 = vpack.c.bf16 %v3321, %v3253
    %v3326 = vpack.c.bf16 %v3322, %v3254
    %v3328 = vsel %vm1259, %v3043, 0
    %v3331 = vsel %vm1259, %v3183, 0
    %3333 = vmatprep.subr.bf16.mxu0 0
    %3334 = vmatpush1.bf16.xpose.msra.mxu0 %v3331
    %3335 = vmatprep.subr.bf16.mxu0 0
    %3336 = vmatpush1.bf16.xpose.msra.mxu0 0
    %3337 = vmatprep.subr.bf16.mxu0 0
    %3338 = vmatpush1.bf16.xpose.msra.mxu0 0
    %3339 = vmatprep.subr.bf16.mxu0 0
    %3340 = vmatpush1.bf16.xpose.msra.mxu0 0
    %3341 = vmatprep.subr.bf16.mxu0 0
    %3342 = vmatpush1.bf16.xpose.msra.mxu0 0
    %3343 = vmatprep.subr.bf16.mxu0 0
    %3344 = vmatpush1.bf16.xpose.msra.mxu0 0
    %3345 = vmatprep.subr.bf16.mxu0 0
    %3346 = vmatpush1.bf16.xpose.msra.mxu0 0
    %3347 = vmatprep.subr.bf16.mxu0 0
    %3348 = vmatpush1.bf16.xpose.msra.mxu0 0
    %3349 = vmatprep.subr.bf16.mxu0 0
    %3350 = vmatpush1.bf16.xpose.msra.mxu0 0
    %3351 = vmatprep.subr.bf16.mxu0 0
    %3352 = vmatpush1.bf16.xpose.msra.mxu0 0
    %3353 = vmatprep.subr.bf16.mxu0 0
    %3354 = vmatpush1.bf16.xpose.msra.mxu0 0
    %3355 = vmatprep.subr.bf16.mxu0 0
    %3356 = vmatpush1.bf16.xpose.msra.mxu0 0
    %3357 = vmatprep.subr.bf16.mxu0 0
    %3358 = vmatpush1.bf16.xpose.msra.mxu0 0
    %3359 = vmatprep.subr.bf16.mxu0 0
    %3360 = vmatpush1.bf16.xpose.msra.mxu0 0
    %3361 = vmatprep.subr.bf16.mxu0 0
    %3362 = vmatpush1.bf16.xpose.msra.mxu0 0
    %3363 = vmatprep.subr.bf16.mxu0 0
    %3364 = vmatpush1.bf16.xpose.msra.mxu0 0
    %3365 = vmatprep.mubr.bf16.mxu0 0
    %3366 = vmatmul.mubr.bf16.gmra.mrb[0].mxu0 %v3328
    %v3367 = vpop.f32.mrb[0].mxu0
    %v3368 = vadd.f32 0.0, %v3367
    %v3369 = vpop.f32.mrb[0].mxu0
    %v3370 = vpop.f32.mrb[0].mxu0
    %v3371 = vadd.f32 0.0, %v3370
    %v3372 = vpop.f32.mrb[0].mxu0
    %3373 = vdwg.mxu0
    %v3375 = vsel %vm1259, %v3044, 0
    %v3378 = vsel %vm1259, %v3184, 0
    %3380 = vmatprep.subr.bf16.mxu0 0
    %3381 = vmatpush1.bf16.xpose.msra.mxu0 %v3378
    %3382 = vmatprep.subr.bf16.mxu0 0
    %3383 = vmatpush1.bf16.xpose.msra.mxu0 0
    %3384 = vmatprep.subr.bf16.mxu0 0
    %3385 = vmatpush1.bf16.xpose.msra.mxu0 0
    %3386 = vmatprep.subr.bf16.mxu0 0
    %3387 = vmatpush1.bf16.xpose.msra.mxu0 0
    %3388 = vmatprep.subr.bf16.mxu0 0
    %3389 = vmatpush1.bf16.xpose.msra.mxu0 0
    %3390 = vmatprep.subr.bf16.mxu0 0
    %3391 = vmatpush1.bf16.xpose.msra.mxu0 0
    %3392 = vmatprep.subr.bf16.mxu0 0
    %3393 = vmatpush1.bf16.xpose.msra.mxu0 0
    %3394 = vmatprep.subr.bf16.mxu0 0
    %3395 = vmatpush1.bf16.xpose.msra.mxu0 0
    %3396 = vmatprep.subr.bf16.mxu0 0
    %3397 = vmatpush1.bf16.xpose.msra.mxu0 0
    %3398 = vmatprep.subr.bf16.mxu0 0
    %3399 = vmatpush1.bf16.xpose.msra.mxu0 0
    %3400 = vmatprep.subr.bf16.mxu0 0
    %3401 = vmatpush1.bf16.xpose.msra.mxu0 0
    %3402 = vmatprep.subr.bf16.mxu0 0
    %3403 = vmatpush1.bf16.xpose.msra.mxu0 0
    %3404 = vmatprep.subr.bf16.mxu0 0
    %3405 = vmatpush1.bf16.xpose.msra.mxu0 0
    %3406 = vmatprep.subr.bf16.mxu0 0
    %3407 = vmatpush1.bf16.xpose.msra.mxu0 0
    %3408 = vmatprep.subr.bf16.mxu0 0
    %3409 = vmatpush1.bf16.xpose.msra.mxu0 0
    %3410 = vmatprep.subr.bf16.mxu0 0
    %3411 = vmatpush1.bf16.xpose.msra.mxu0 0
    %3412 = vmatprep.mubr.bf16.mxu0 0
    %3413 = vmatmul.mubr.bf16.gmra.mrb[0].mxu0 %v3375
    %v3414 = vpop.f32.mrb[0].mxu0
    %v3415 = vadd.f32 0.0, %v3414
    %v3416 = vpop.f32.mrb[0].mxu0
    %v3417 = vpop.f32.mrb[0].mxu0
    %v3418 = vadd.f32 0.0, %v3417
    %v3419 = vpop.f32.mrb[0].mxu0
    %3420 = vdwg.mxu0
    %v3422 = vsel %vm1259, %v3045, 0
    %v3425 = vsel %vm1259, %v3185, 0
    %3427 = vmatprep.subr.bf16.mxu0 0
    %3428 = vmatpush1.bf16.xpose.msra.mxu0 %v3425
    %3429 = vmatprep.subr.bf16.mxu0 0
    %3430 = vmatpush1.bf16.xpose.msra.mxu0 0
    %3431 = vmatprep.subr.bf16.mxu0 0
    %3432 = vmatpush1.bf16.xpose.msra.mxu0 0
    %3433 = vmatprep.subr.bf16.mxu0 0
    %3434 = vmatpush1.bf16.xpose.msra.mxu0 0
    %3435 = vmatprep.subr.bf16.mxu0 0
    %3436 = vmatpush1.bf16.xpose.msra.mxu0 0
    %3437 = vmatprep.subr.bf16.mxu0 0
    %3438 = vmatpush1.bf16.xpose.msra.mxu0 0
    %3439 = vmatprep.subr.bf16.mxu0 0
    %3440 = vmatpush1.bf16.xpose.msra.mxu0 0
    %3441 = vmatprep.subr.bf16.mxu0 0
    %3442 = vmatpush1.bf16.xpose.msra.mxu0 0
    %3443 = vmatprep.subr.bf16.mxu0 0
    %3444 = vmatpush1.bf16.xpose.msra.mxu0 0
    %3445 = vmatprep.subr.bf16.mxu0 0
    %3446 = vmatpush1.bf16.xpose.msra.mxu0 0
    %3447 = vmatprep.subr.bf16.mxu0 0
    %3448 = vmatpush1.bf16.xpose.msra.mxu0 0
    %3449 = vmatprep.subr.bf16.mxu0 0
    %3450 = vmatpush1.bf16.xpose.msra.mxu0 0
    %3451 = vmatprep.subr.bf16.mxu0 0
    %3452 = vmatpush1.bf16.xpose.msra.mxu0 0
    %3453 = vmatprep.subr.bf16.mxu0 0
    %3454 = vmatpush1.bf16.xpose.msra.mxu0 0
    %3455 = vmatprep.subr.bf16.mxu0 0
    %3456 = vmatpush1.bf16.xpose.msra.mxu0 0
    %3457 = vmatprep.subr.bf16.mxu0 0
    %3458 = vmatpush1.bf16.xpose.msra.mxu0 0
    %3459 = vmatprep.mubr.bf16.mxu0 0
    %3460 = vmatmul.mubr.bf16.gmra.mrb[0].mxu0 %v3422
    %v3461 = vpop.f32.mrb[0].mxu0
    %v3462 = vadd.f32 0.0, %v3461
    %v3463 = vpop.f32.mrb[0].mxu0
    %v3464 = vpop.f32.mrb[0].mxu0
    %v3465 = vadd.f32 0.0, %v3464
    %v3466 = vpop.f32.mrb[0].mxu0
    %3467 = vdwg.mxu0
    %v3469 = vsel %vm1259, %v3046, 0
    %v3472 = vsel %vm1259, %v3186, 0
    %3474 = vmatprep.subr.bf16.mxu0 0
    %3475 = vmatpush1.bf16.xpose.msra.mxu0 %v3472
    %3476 = vmatprep.subr.bf16.mxu0 0
    %3477 = vmatpush1.bf16.xpose.msra.mxu0 0
    %3478 = vmatprep.subr.bf16.mxu0 0
    %3479 = vmatpush1.bf16.xpose.msra.mxu0 0
    %3480 = vmatprep.subr.bf16.mxu0 0
    %3481 = vmatpush1.bf16.xpose.msra.mxu0 0
    %3482 = vmatprep.subr.bf16.mxu0 0
    %3483 = vmatpush1.bf16.xpose.msra.mxu0 0
    %3484 = vmatprep.subr.bf16.mxu0 0
    %3485 = vmatpush1.bf16.xpose.msra.mxu0 0
    %3486 = vmatprep.subr.bf16.mxu0 0
    %3487 = vmatpush1.bf16.xpose.msra.mxu0 0
    %3488 = vmatprep.subr.bf16.mxu0 0
    %3489 = vmatpush1.bf16.xpose.msra.mxu0 0
    %3490 = vmatprep.subr.bf16.mxu0 0
    %3491 = vmatpush1.bf16.xpose.msra.mxu0 0
    %3492 = vmatprep.subr.bf16.mxu0 0
    %3493 = vmatpush1.bf16.xpose.msra.mxu0 0
    %3494 = vmatprep.subr.bf16.mxu0 0
    %3495 = vmatpush1.bf16.xpose.msra.mxu0 0
    %3496 = vmatprep.subr.bf16.mxu0 0
    %3497 = vmatpush1.bf16.xpose.msra.mxu0 0
    %3498 = vmatprep.subr.bf16.mxu0 0
    %3499 = vmatpush1.bf16.xpose.msra.mxu0 0
    %3500 = vmatprep.subr.bf16.mxu0 0
    %3501 = vmatpush1.bf16.xpose.msra.mxu0 0
    %3502 = vmatprep.subr.bf16.mxu0 0
    %3503 = vmatpush1.bf16.xpose.msra.mxu0 0
    %3504 = vmatprep.subr.bf16.mxu0 0
    %3505 = vmatpush1.bf16.xpose.msra.mxu0 0
    %3506 = vmatprep.mubr.bf16.mxu0 0
    %3507 = vmatmul.mubr.bf16.gmra.mrb[0].mxu0 %v3469
    %v3508 = vpop.f32.mrb[0].mxu0
    %v3509 = vadd.f32 0.0, %v3508
    %v3510 = vpop.f32.mrb[0].mxu0
    %v3511 = vpop.f32.mrb[0].mxu0
    %v3512 = vadd.f32 0.0, %v3511
    %v3513 = vpop.f32.mrb[0].mxu0
    %3514 = vdwg.mxu0
    %v3515 = vmul.f32 %v3368, 0.35355338
    %v3516 = vmul.f32 %v3371, 0.35355338
    %v3517 = vmul.f32 %v3415, 0.35355338
    %v3518 = vmul.f32 %v3418, 0.35355338
    %v3519 = vmul.f32 %v3462, 0.35355338
    %v3520 = vmul.f32 %v3465, 0.35355338
    %v3521 = vmul.f32 %v3509, 0.35355338
    %v3522 = vmul.f32 %v3512, 0.35355338
    %v3523 = vsel %vm1458, %v3515, -1e+30
    %v3524 = vsel %vm1459, %v3516, -1e+30
    %v3525 = vsel %vm1458, %v3517, -1e+30
    %v3526 = vsel %vm1459, %v3518, -1e+30
    %v3527 = vsel %vm1458, %v3519, -1e+30
    %v3528 = vsel %vm1459, %v3520, -1e+30
    %v3529 = vsel %vm1458, %v3521, -1e+30
    %v3530 = vsel %vm1459, %v3522, -1e+30
    %v3531 = vsel %vm1468, %v3523, -inf
    %3532 = vmax.xlane.f32.xlu0 %v3531
    %v3533 = vpop.xlane.xlu0 %3532
    %v3534 = vsel %vm1468, %v3524, -inf
    %3535 = vmax.xlane.f32.xlu0 %v3534
    %v3536 = vpop.xlane.xlu0 %3535
    %v3537 = vsel %vm1468, %v3525, -inf
    %3538 = vmax.xlane.f32.xlu0 %v3537
    %v3539 = vpop.xlane.xlu0 %3538
    %v3540 = vsel %vm1468, %v3526, -inf
    %3541 = vmax.xlane.f32.xlu0 %v3540
    %v3542 = vpop.xlane.xlu0 %3541
    %v3543 = vsel %vm1468, %v3527, -inf
    %3544 = vmax.xlane.f32.xlu0 %v3543
    %v3545 = vpop.xlane.xlu0 %3544
    %v3546 = vsel %vm1468, %v3528, -inf
    %3547 = vmax.xlane.f32.xlu0 %v3546
    %v3548 = vpop.xlane.xlu0 %3547
    %v3549 = vsel %vm1468, %v3529, -inf
    %3550 = vmax.xlane.f32.xlu0 %v3549
    %v3551 = vpop.xlane.xlu0 %3550
    %v3552 = vsel %vm1468, %v3530, -inf
    %3553 = vmax.xlane.f32.xlu0 %v3552
    %v3554 = vpop.xlane.xlu0 %3553
    %v3555 = vsub.f32 %v3523, %v3533
    %v3556 = vsub.f32 %v3524, %v3536
    %v3557 = vsub.f32 %v3525, %v3539
    %v3558 = vsub.f32 %v3526, %v3542
    %v3559 = vsub.f32 %v3527, %v3545
    %v3560 = vsub.f32 %v3528, %v3548
    %v3561 = vsub.f32 %v3529, %v3551
    %v3562 = vsub.f32 %v3530, %v3554
    %v3563 = vmul.f32 %v3555, 1.442695
    %v3564 = vpow.pop %v3563
    %v3565 = vmul.f32 %v3556, 1.442695
    %v3566 = vpow.pop %v3565
    %v3567 = vmul.f32 %v3557, 1.442695
    %v3568 = vpow.pop %v3567
    %v3569 = vmul.f32 %v3558, 1.442695
    %v3570 = vpow.pop %v3569
    %v3571 = vmul.f32 %v3559, 1.442695
    %v3572 = vpow.pop %v3571
    %v3573 = vmul.f32 %v3560, 1.442695
    %v3574 = vpow.pop %v3573
    %v3575 = vmul.f32 %v3561, 1.442695
    %v3576 = vpow.pop %v3575
    %v3577 = vmul.f32 %v3562, 1.442695
    %v3578 = vpow.pop %v3577
    %v3579 = vsel %vm1468, %v3564, 0.0
    %3580 = vadd.xlane.f32.xlu0 %v3579
    %v3581 = vpop.xlane.xlu0 %3580
    %v3582 = vsel %vm1468, %v3566, 0.0
    %3583 = vadd.xlane.f32.xlu0 %v3582
    %v3584 = vpop.xlane.xlu0 %3583
    %v3585 = vsel %vm1468, %v3568, 0.0
    %3586 = vadd.xlane.f32.xlu0 %v3585
    %v3587 = vpop.xlane.xlu0 %3586
    %v3588 = vsel %vm1468, %v3570, 0.0
    %3589 = vadd.xlane.f32.xlu0 %v3588
    %v3590 = vpop.xlane.xlu0 %3589
    %v3591 = vsel %vm1468, %v3572, 0.0
    %3592 = vadd.xlane.f32.xlu0 %v3591
    %v3593 = vpop.xlane.xlu0 %3592
    %v3594 = vsel %vm1468, %v3574, 0.0
    %3595 = vadd.xlane.f32.xlu0 %v3594
    %v3596 = vpop.xlane.xlu0 %3595
    %v3597 = vsel %vm1468, %v3576, 0.0
    %3598 = vadd.xlane.f32.xlu0 %v3597
    %v3599 = vpop.xlane.xlu0 %3598
    %v3600 = vsel %vm1468, %v3578, 0.0
    %3601 = vadd.xlane.f32.xlu0 %v3600
    %v3602 = vpop.xlane.xlu0 %3601
    %v3603 = vrcp.pop %v3581
    %v3604 = vrcp.pop %v3584
    %v3605 = vrcp.pop %v3587
    %v3606 = vrcp.pop %v3590
    %v3607 = vrcp.pop %v3593
    %v3608 = vrcp.pop %v3596
    %v3609 = vrcp.pop %v3599
    %v3610 = vrcp.pop %v3602
    %v3611 = vmul.f32 %v3564, %v3603
    %v3612 = vmul.f32 %v3566, %v3604
    %v3613 = vmul.f32 %v3568, %v3605
    %v3614 = vmul.f32 %v3570, %v3606
    %v3615 = vmul.f32 %v3572, %v3607
    %v3616 = vmul.f32 %v3574, %v3608
    %v3617 = vmul.f32 %v3576, %v3609
    %v3618 = vmul.f32 %v3578, %v3610
    %v3619 = vpack.c.bf16 %v3612, %v3611
    %v3620 = vpack.c.bf16 %v3614, %v3613
    %v3621 = vpack.c.bf16 %v3616, %v3615
    %v3622 = vpack.c.bf16 %v3618, %v3617
    %v3624 = vsel %vm1468, %v3619, 0
    %3626 = vmatprep.subr.bf16.mxu0 0
    %3627 = vmatpush1.bf16.msra.mxu0 %v3323
    %3628 = vmatprep.subr.bf16.mxu0 0
    %3629 = vmatpush1.bf16.msra.mxu0 0
    %3630 = vmatprep.subr.bf16.mxu0 0
    %3631 = vmatpush1.bf16.msra.mxu0 0
    %3632 = vmatprep.subr.bf16.mxu0 0
    %3633 = vmatpush1.bf16.msra.mxu0 0
    %3634 = vmatprep.subr.bf16.mxu0 0
    %3635 = vmatpush1.bf16.msra.mxu0 0
    %3636 = vmatprep.subr.bf16.mxu0 0
    %3637 = vmatpush1.bf16.msra.mxu0 0
    %3638 = vmatprep.subr.bf16.mxu0 0
    %3639 = vmatpush1.bf16.msra.mxu0 0
    %3640 = vmatprep.subr.bf16.mxu0 0
    %3641 = vmatpush1.bf16.msra.mxu0 0
    %3642 = vmatprep.subr.bf16.mxu0 0
    %3643 = vmatpush1.bf16.msra.mxu0 0
    %3644 = vmatprep.subr.bf16.mxu0 0
    %3645 = vmatpush1.bf16.msra.mxu0 0
    %3646 = vmatprep.subr.bf16.mxu0 0
    %3647 = vmatpush1.bf16.msra.mxu0 0
    %3648 = vmatprep.subr.bf16.mxu0 0
    %3649 = vmatpush1.bf16.msra.mxu0 0
    %3650 = vmatprep.subr.bf16.mxu0 0
    %3651 = vmatpush1.bf16.msra.mxu0 0
    %3652 = vmatprep.subr.bf16.mxu0 0
    %3653 = vmatpush1.bf16.msra.mxu0 0
    %3654 = vmatprep.subr.bf16.mxu0 0
    %3655 = vmatpush1.bf16.msra.mxu0 0
    %3656 = vmatprep.subr.bf16.mxu0 0
    %3657 = vmatpush1.bf16.msra.mxu0 0
    %3658 = vmatprep.mubr.bf16.mxu0 0
    %3659 = vmatmul.mubr.bf16.gmra.mrb[0].mxu0 %v3624
    %v3660 = vpop.f32.mrb[0].mxu0
    %v3661 = vadd.f32 0.0, %v3660
    %v3662 = vpop.f32.mrb[0].mxu0
    %v3663 = vpop.f32.mrb[0].mxu0
    %v3664 = vadd.f32 0.0, %v3663
    %v3665 = vpop.f32.mrb[0].mxu0
    %3666 = vdwg.mxu0
    %v3668 = vsel %vm1468, %v3620, 0
    %3670 = vmatprep.subr.bf16.mxu0 0
    %3671 = vmatpush1.bf16.msra.mxu0 %v3324
    %3672 = vmatprep.subr.bf16.mxu0 0
    %3673 = vmatpush1.bf16.msra.mxu0 0
    %3674 = vmatprep.subr.bf16.mxu0 0
    %3675 = vmatpush1.bf16.msra.mxu0 0
    %3676 = vmatprep.subr.bf16.mxu0 0
    %3677 = vmatpush1.bf16.msra.mxu0 0
    %3678 = vmatprep.subr.bf16.mxu0 0
    %3679 = vmatpush1.bf16.msra.mxu0 0
    %3680 = vmatprep.subr.bf16.mxu0 0
    %3681 = vmatpush1.bf16.msra.mxu0 0
    %3682 = vmatprep.subr.bf16.mxu0 0
    %3683 = vmatpush1.bf16.msra.mxu0 0
    %3684 = vmatprep.subr.bf16.mxu0 0
    %3685 = vmatpush1.bf16.msra.mxu0 0
    %3686 = vmatprep.subr.bf16.mxu0 0
    %3687 = vmatpush1.bf16.msra.mxu0 0
    %3688 = vmatprep.subr.bf16.mxu0 0
    %3689 = vmatpush1.bf16.msra.mxu0 0
    %3690 = vmatprep.subr.bf16.mxu0 0
    %3691 = vmatpush1.bf16.msra.mxu0 0
    %3692 = vmatprep.subr.bf16.mxu0 0
    %3693 = vmatpush1.bf16.msra.mxu0 0
    %3694 = vmatprep.subr.bf16.mxu0 0
    %3695 = vmatpush1.bf16.msra.mxu0 0
    %3696 = vmatprep.subr.bf16.mxu0 0
    %3697 = vmatpush1.bf16.msra.mxu0 0
    %3698 = vmatprep.subr.bf16.mxu0 0
    %3699 = vmatpush1.bf16.msra.mxu0 0
    %3700 = vmatprep.subr.bf16.mxu0 0
    %3701 = vmatpush1.bf16.msra.mxu0 0
    %3702 = vmatprep.mubr.bf16.mxu0 0
    %3703 = vmatmul.mubr.bf16.gmra.mrb[0].mxu0 %v3668
    %v3704 = vpop.f32.mrb[0].mxu0
    %v3705 = vadd.f32 0.0, %v3704
    %v3706 = vpop.f32.mrb[0].mxu0
    %v3707 = vpop.f32.mrb[0].mxu0
    %v3708 = vadd.f32 0.0, %v3707
    %v3709 = vpop.f32.mrb[0].mxu0
    %3710 = vdwg.mxu0
    %v3712 = vsel %vm1468, %v3621, 0
    %3714 = vmatprep.subr.bf16.mxu0 0
    %3715 = vmatpush1.bf16.msra.mxu0 %v3325
    %3716 = vmatprep.subr.bf16.mxu0 0
    %3717 = vmatpush1.bf16.msra.mxu0 0
    %3718 = vmatprep.subr.bf16.mxu0 0
    %3719 = vmatpush1.bf16.msra.mxu0 0
    %3720 = vmatprep.subr.bf16.mxu0 0
    %3721 = vmatpush1.bf16.msra.mxu0 0
    %3722 = vmatprep.subr.bf16.mxu0 0
    %3723 = vmatpush1.bf16.msra.mxu0 0
    %3724 = vmatprep.subr.bf16.mxu0 0
    %3725 = vmatpush1.bf16.msra.mxu0 0
    %3726 = vmatprep.subr.bf16.mxu0 0
    %3727 = vmatpush1.bf16.msra.mxu0 0
    %3728 = vmatprep.subr.bf16.mxu0 0
    %3729 = vmatpush1.bf16.msra.mxu0 0
    %3730 = vmatprep.subr.bf16.mxu0 0
    %3731 = vmatpush1.bf16.msra.mxu0 0
    %3732 = vmatprep.subr.bf16.mxu0 0
    %3733 = vmatpush1.bf16.msra.mxu0 0
    %3734 = vmatprep.subr.bf16.mxu0 0
    %3735 = vmatpush1.bf16.msra.mxu0 0
    %3736 = vmatprep.subr.bf16.mxu0 0
    %3737 = vmatpush1.bf16.msra.mxu0 0
    %3738 = vmatprep.subr.bf16.mxu0 0
    %3739 = vmatpush1.bf16.msra.mxu0 0
    %3740 = vmatprep.subr.bf16.mxu0 0
    %3741 = vmatpush1.bf16.msra.mxu0 0
    %3742 = vmatprep.subr.bf16.mxu0 0
    %3743 = vmatpush1.bf16.msra.mxu0 0
    %3744 = vmatprep.subr.bf16.mxu0 0
    %3745 = vmatpush1.bf16.msra.mxu0 0
    %3746 = vmatprep.mubr.bf16.mxu0 0
    %3747 = vmatmul.mubr.bf16.gmra.mrb[0].mxu0 %v3712
    %v3748 = vpop.f32.mrb[0].mxu0
    %v3749 = vadd.f32 0.0, %v3748
    %v3750 = vpop.f32.mrb[0].mxu0
    %v3751 = vpop.f32.mrb[0].mxu0
    %v3752 = vadd.f32 0.0, %v3751
    %v3753 = vpop.f32.mrb[0].mxu0
    %3754 = vdwg.mxu0
    %v3756 = vsel %vm1468, %v3622, 0
    %3758 = vmatprep.subr.bf16.mxu0 0
    %3759 = vmatpush1.bf16.msra.mxu0 %v3326
    %3760 = vmatprep.subr.bf16.mxu0 0
    %3761 = vmatpush1.bf16.msra.mxu0 0
    %3762 = vmatprep.subr.bf16.mxu0 0
    %3763 = vmatpush1.bf16.msra.mxu0 0
    %3764 = vmatprep.subr.bf16.mxu0 0
    %3765 = vmatpush1.bf16.msra.mxu0 0
    %3766 = vmatprep.subr.bf16.mxu0 0
    %3767 = vmatpush1.bf16.msra.mxu0 0
    %3768 = vmatprep.subr.bf16.mxu0 0
    %3769 = vmatpush1.bf16.msra.mxu0 0
    %3770 = vmatprep.subr.bf16.mxu0 0
    %3771 = vmatpush1.bf16.msra.mxu0 0
    %3772 = vmatprep.subr.bf16.mxu0 0
    %3773 = vmatpush1.bf16.msra.mxu0 0
    %3774 = vmatprep.subr.bf16.mxu0 0
    %3775 = vmatpush1.bf16.msra.mxu0 0
    %3776 = vmatprep.subr.bf16.mxu0 0
    %3777 = vmatpush1.bf16.msra.mxu0 0
    %3778 = vmatprep.subr.bf16.mxu0 0
    %3779 = vmatpush1.bf16.msra.mxu0 0
    %3780 = vmatprep.subr.bf16.mxu0 0
    %3781 = vmatpush1.bf16.msra.mxu0 0
    %3782 = vmatprep.subr.bf16.mxu0 0
    %3783 = vmatpush1.bf16.msra.mxu0 0
    %3784 = vmatprep.subr.bf16.mxu0 0
    %3785 = vmatpush1.bf16.msra.mxu0 0
    %3786 = vmatprep.subr.bf16.mxu0 0
    %3787 = vmatpush1.bf16.msra.mxu0 0
    %3788 = vmatprep.subr.bf16.mxu0 0
    %3789 = vmatpush1.bf16.msra.mxu0 0
    %3790 = vmatprep.mubr.bf16.mxu0 0
    %3791 = vmatmul.mubr.bf16.gmra.mrb[0].mxu0 %v3756
    %v3792 = vpop.f32.mrb[0].mxu0
    %v3793 = vadd.f32 0.0, %v3792
    %v3794 = vpop.f32.mrb[0].mxu0
    %v3795 = vpop.f32.mrb[0].mxu0
    %v3796 = vadd.f32 0.0, %v3795
    %v3797 = vpop.f32.mrb[0].mxu0
    %3798 = vdwg.mxu0
    %v3799 = vcombine.low %v3661, %v3749
    %v3800 = vcombine.high %v3661, %v3749
    %v3802 = vunpack.c.l.s4 1983009808
    %v3803 = vunpack.c.0.s8 %v3802
    %v3804 = vlaneseq
    %v3805 = vshrl.u32 %v3804, 7
    %v3806 = vsub.s32 %v3803, %v3805
    %v3807 = vrot.slane %v3799, %v3806
    %v3809 = vunpack.c.l.s4 1983009808
    %v3810 = vunpack.c.0.s8 %v3809
    %v3811 = vlaneseq
    %v3812 = vshrl.u32 %v3811, 7
    %v3813 = vsub.s32 %v3810, %v3812
    %v3814 = vrot.slane %v3800, %v3813
    %v3815 = vcombine.low %v3705, %v3793
    %v3816 = vcombine.high %v3705, %v3793
    %v3818 = vunpack.c.l.s4 1983009808
    %v3819 = vunpack.c.0.s8 %v3818
    %v3820 = vlaneseq
    %v3821 = vshrl.u32 %v3820, 7
    %v3822 = vsub.s32 %v3819, %v3821
    %v3823 = vrot.slane %v3815, %v3822
    %v3825 = vunpack.c.l.s4 1983009808
    %v3826 = vunpack.c.0.s8 %v3825
    %v3827 = vlaneseq
    %v3828 = vshrl.u32 %v3827, 7
    %v3829 = vsub.s32 %v3826, %v3828
    %v3830 = vrot.slane %v3816, %v3829
    %v3831 = vcombine.low %v3807, %v3823
    %v3832 = vcombine.high %v3807, %v3823
    %v3834 = vunpack.c.l.s4 1934713408
    %v3835 = vunpack.c.0.s8 %v3834
    %v3836 = vlaneseq
    %v3837 = vshrl.u32 %v3836, 7
    %v3838 = vsub.s32 %v3835, %v3837
    %v3839 = vrot.slane %v3831, %v3838
    %v3841 = vunpack.c.l.s4 1934713408
    %v3842 = vunpack.c.0.s8 %v3841
    %v3843 = vlaneseq
    %v3844 = vshrl.u32 %v3843, 7
    %v3845 = vsub.s32 %v3842, %v3844
    %v3846 = vrot.slane %v3832, %v3845
    %v3847 = vcombine.low %v3814, %v3830
    %v3848 = vcombine.high %v3814, %v3830
    %v3850 = vunpack.c.l.s4 1934713408
    %v3851 = vunpack.c.0.s8 %v3850
    %v3852 = vlaneseq
    %v3853 = vshrl.u32 %v3852, 7
    %v3854 = vsub.s32 %v3851, %v3853
    %v3855 = vrot.slane %v3847, %v3854
    %v3857 = vunpack.c.l.s4 1934713408
    %v3858 = vunpack.c.0.s8 %v3857
    %v3859 = vlaneseq
    %v3860 = vshrl.u32 %v3859, 7
    %v3861 = vsub.s32 %v3858, %v3860
    %v3862 = vrot.slane %v3848, %v3861
    %v3863 = vcombine.high %v3839, 0.0
    %v3864 = vcombine.high %v3846, 0.0
    %v3865 = vcombine.high %v3855, 0.0
    %v3866 = vcombine.high %v3862, 0.0
    %v3867 = vcombine.low %v3664, %v3752
    %v3868 = vcombine.high %v3664, %v3752
    %v3870 = vunpack.c.l.s4 1983009808
    %v3871 = vunpack.c.0.s8 %v3870
    %v3872 = vlaneseq
    %v3873 = vshrl.u32 %v3872, 7
    %v3874 = vsub.s32 %v3871, %v3873
    %v3875 = vrot.slane %v3867, %v3874
    %v3877 = vunpack.c.l.s4 1983009808
    %v3878 = vunpack.c.0.s8 %v3877
    %v3879 = vlaneseq
    %v3880 = vshrl.u32 %v3879, 7
    %v3881 = vsub.s32 %v3878, %v3880
    %v3882 = vrot.slane %v3868, %v3881
    %v3883 = vcombine.low %v3708, %v3796
    %v3884 = vcombine.high %v3708, %v3796
    %v3886 = vunpack.c.l.s4 1983009808
    %v3887 = vunpack.c.0.s8 %v3886
    %v3888 = vlaneseq
    %v3889 = vshrl.u32 %v3888, 7
    %v3890 = vsub.s32 %v3887, %v3889
    %v3891 = vrot.slane %v3883, %v3890
    %v3893 = vunpack.c.l.s4 1983009808
    %v3894 = vunpack.c.0.s8 %v3893
    %v3895 = vlaneseq
    %v3896 = vshrl.u32 %v3895, 7
    %v3897 = vsub.s32 %v3894, %v3896
    %v3898 = vrot.slane %v3884, %v3897
    %v3899 = vcombine.low %v3875, %v3891
    %v3900 = vcombine.high %v3875, %v3891
    %v3902 = vunpack.c.l.s4 1934713408
    %v3903 = vunpack.c.0.s8 %v3902
    %v3904 = vlaneseq
    %v3905 = vshrl.u32 %v3904, 7
    %v3906 = vsub.s32 %v3903, %v3905
    %v3907 = vrot.slane %v3899, %v3906
    %v3909 = vunpack.c.l.s4 1934713408
    %v3910 = vunpack.c.0.s8 %v3909
    %v3911 = vlaneseq
    %v3912 = vshrl.u32 %v3911, 7
    %v3913 = vsub.s32 %v3910, %v3912
    %v3914 = vrot.slane %v3900, %v3913
    %v3915 = vcombine.low %v3882, %v3898
    %v3916 = vcombine.high %v3882, %v3898
    %v3918 = vunpack.c.l.s4 1934713408
    %v3919 = vunpack.c.0.s8 %v3918
    %v3920 = vlaneseq
    %v3921 = vshrl.u32 %v3920, 7
    %v3922 = vsub.s32 %v3919, %v3921
    %v3923 = vrot.slane %v3915, %v3922
    %v3925 = vunpack.c.l.s4 1934713408
    %v3926 = vunpack.c.0.s8 %v3925
    %v3927 = vlaneseq
    %v3928 = vshrl.u32 %v3927, 7
    %v3929 = vsub.s32 %v3926, %v3928
    %v3930 = vrot.slane %v3916, %v3929
    %v3931 = vcombine.high %v3907, 0.0
    %v3932 = vcombine.high %v3914, 0.0
    %v3933 = vcombine.high %v3923, 0.0
    %v3934 = vcombine.high %v3930, 0.0
    %v3935 = vcombine.low %v3839, %v3846
    %v3937 = vunpack.c.l.s4 1983009808
    %v3938 = vunpack.c.0.s8 %v3937
    %v3939 = vlaneseq
    %v3940 = vshrl.u32 %v3939, 7
    %v3941 = vsub.s32 %v3938, %v3940
    %v3942 = vrot.slane %v3935, %v3941
    %v3943 = vcombine.low %v3863, %v3864
    %v3945 = vunpack.c.l.s4 1983009808
    %v3946 = vunpack.c.0.s8 %v3945
    %v3947 = vlaneseq
    %v3948 = vshrl.u32 %v3947, 7
    %v3949 = vsub.s32 %v3946, %v3948
    %v3950 = vrot.slane %v3943, %v3949
    %v3951 = vcombine.low %v3855, %v3862
    %v3953 = vunpack.c.l.s4 1983009808
    %v3954 = vunpack.c.0.s8 %v3953
    %v3955 = vlaneseq
    %v3956 = vshrl.u32 %v3955, 7
    %v3957 = vsub.s32 %v3954, %v3956
    %v3958 = vrot.slane %v3951, %v3957
    %v3959 = vcombine.low %v3865, %v3866
    %v3961 = vunpack.c.l.s4 1983009808
    %v3962 = vunpack.c.0.s8 %v3961
    %v3963 = vlaneseq
    %v3964 = vshrl.u32 %v3963, 7
    %v3965 = vsub.s32 %v3962, %v3964
    %v3966 = vrot.slane %v3959, %v3965
    %v3967 = vcombine.low %v3942, %v3950
    %v3968 = vcombine.high %v3942, %v3950
    %v3970 = vunpack.c.l.s4 1934713408
    %v3971 = vunpack.c.0.s8 %v3970
    %v3972 = vlaneseq
    %v3973 = vshrl.u32 %v3972, 7
    %v3974 = vsub.s32 %v3971, %v3973
    %v3975 = vrot.slane %v3967, %v3974
    %v3977 = vunpack.c.l.s4 1934713408
    %v3978 = vunpack.c.0.s8 %v3977
    %v3979 = vlaneseq
    %v3980 = vshrl.u32 %v3979, 7
    %v3981 = vsub.s32 %v3978, %v3980
    %v3982 = vrot.slane %v3968, %v3981
    %v3983 = vcombine.low %v3958, %v3966
    %v3984 = vcombine.high %v3958, %v3966
    %v3986 = vunpack.c.l.s4 1934713408
    %v3987 = vunpack.c.0.s8 %v3986
    %v3988 = vlaneseq
    %v3989 = vshrl.u32 %v3988, 7
    %v3990 = vsub.s32 %v3987, %v3989
    %v3991 = vrot.slane %v3983, %v3990
    %v3993 = vunpack.c.l.s4 1934713408
    %v3994 = vunpack.c.0.s8 %v3993
    %v3995 = vlaneseq
    %v3996 = vshrl.u32 %v3995, 7
    %v3997 = vsub.s32 %v3994, %v3996
    %v3998 = vrot.slane %v3984, %v3997
    %v3999 = vcombine.low %v3975, %v3991
    %v4000 = vcombine.high %v3975, %v3991
    %v4001 = vcombine.low %v3982, %v3998
    %v4002 = vcombine.high %v3982, %v3998
    %v4003 = vcombine.low %v3907, %v3914
    %v4005 = vunpack.c.l.s4 1983009808
    %v4006 = vunpack.c.0.s8 %v4005
    %v4007 = vlaneseq
    %v4008 = vshrl.u32 %v4007, 7
    %v4009 = vsub.s32 %v4006, %v4008
    %v4010 = vrot.slane %v4003, %v4009
    %v4011 = vcombine.low %v3931, %v3932
    %v4013 = vunpack.c.l.s4 1983009808
    %v4014 = vunpack.c.0.s8 %v4013
    %v4015 = vlaneseq
    %v4016 = vshrl.u32 %v4015, 7
    %v4017 = vsub.s32 %v4014, %v4016
    %v4018 = vrot.slane %v4011, %v4017
    %v4019 = vcombine.low %v3923, %v3930
    %v4021 = vunpack.c.l.s4 1983009808
    %v4022 = vunpack.c.0.s8 %v4021
    %v4023 = vlaneseq
    %v4024 = vshrl.u32 %v4023, 7
    %v4025 = vsub.s32 %v4022, %v4024
    %v4026 = vrot.slane %v4019, %v4025
    %v4027 = vcombine.low %v3933, %v3934
    %v4029 = vunpack.c.l.s4 1983009808
    %v4030 = vunpack.c.0.s8 %v4029
    %v4031 = vlaneseq
    %v4032 = vshrl.u32 %v4031, 7
    %v4033 = vsub.s32 %v4030, %v4032
    %v4034 = vrot.slane %v4027, %v4033
    %v4035 = vcombine.low %v4010, %v4018
    %v4036 = vcombine.high %v4010, %v4018
    %v4038 = vunpack.c.l.s4 1934713408
    %v4039 = vunpack.c.0.s8 %v4038
    %v4040 = vlaneseq
    %v4041 = vshrl.u32 %v4040, 7
    %v4042 = vsub.s32 %v4039, %v4041
    %v4043 = vrot.slane %v4035, %v4042
    %v4045 = vunpack.c.l.s4 1934713408
    %v4046 = vunpack.c.0.s8 %v4045
    %v4047 = vlaneseq
    %v4048 = vshrl.u32 %v4047, 7
    %v4049 = vsub.s32 %v4046, %v4048
    %v4050 = vrot.slane %v4036, %v4049
    %v4051 = vcombine.low %v4026, %v4034
    %v4052 = vcombine.high %v4026, %v4034
    %v4054 = vunpack.c.l.s4 1934713408
    %v4055 = vunpack.c.0.s8 %v4054
    %v4056 = vlaneseq
    %v4057 = vshrl.u32 %v4056, 7
    %v4058 = vsub.s32 %v4055, %v4057
    %v4059 = vrot.slane %v4051, %v4058
    %v4061 = vunpack.c.l.s4 1934713408
    %v4062 = vunpack.c.0.s8 %v4061
    %v4063 = vlaneseq
    %v4064 = vshrl.u32 %v4063, 7
    %v4065 = vsub.s32 %v4062, %v4064
    %v4066 = vrot.slane %v4052, %v4065
    %v4067 = vcombine.low %v4043, %v4059
    %v4068 = vcombine.high %v4043, %v4059
    %v4069 = vcombine.low %v4050, %v4066
    %v4070 = vcombine.high %v4050, %v4066
    %4073 = vrot.lane.b32.xlu0 %v4000, 8
    %v4074 = vpop.permute.xlu0 %4073
    %4075 = vrot.lane.b32.xlu0 %v4068, 8
    %v4076 = vpop.permute.xlu0 %4075
    %4081 = vrot.lane.b32.xlu0 %v4001, 16
    %v4082 = vpop.permute.xlu0 %4081
    %4083 = vrot.lane.b32.xlu0 %v4069, 16
    %v4084 = vpop.permute.xlu0 %4083
    %4089 = vrot.lane.b32.xlu0 %v4002, 24
    %v4090 = vpop.permute.xlu0 %4089
    %4091 = vrot.lane.b32.xlu0 %v4070, 24
    %v4092 = vpop.permute.xlu0 %4091
    %v4095 = vsel %vm1259, %v3999, %v4074
    %v4096 = vsel %vm1259, %v4067, %v4076
    %v4097 = vsel %vm1468, %v4095, %v4082
    %v4098 = vsel %vm1468, %v4096, %v4084
    %v4099 = vsel %vm2037, %v4097, %v4090
    %v4100 = vsel %vm2037, %v4098, %v4092
    %v4101 = vpack.c.bf16 %v4100, %v4099
    %s4102 = scalar_lea.vmem %s7, 16
    %v4103 = vld [vmem:[%s4102] sm:$0xf]
    %v4104 = vld [vmem:[%s4102 + $0x4] sm:$0xf]
    %v4105 = vld [vmem:[%s4102 + $0x8] sm:$0xf]
    %v4106 = vld [vmem:[%s4102 + $0xc] sm:$0xf]
    %s4107 = scalar_lea.vmem %s8, 1
    %v4108 = vld [vmem:[%s4107] sm:$0x1]
    %v4110 = vlaneseq
    %v4111 = vshrl.u32 %v4110, 7
    %v4112 = vsub.s32 0, %v4111
    %v4113 = vrot.slane %v4108, %v4112
    %v4119 = vunpack.c.l.b16 %v4103
    %v4120 = vunpack.c.l.b16 %v4104
    %v4121 = vunpack.c.l.b16 %v4105
    %v4122 = vunpack.c.l.b16 %v4106
    %v4123 = vpack.c.b16 %v4120, %v4119
    %v4124 = vpack.c.b16 %v4122, %v4121
    %v4128 = vsel %vm209, %v4101, 0
    %4130 = vmatprep.subr.bf16.mxu0 0
    %4131 = vmatpush1.bf16.msra.mxu0 %v4123
    %4132 = vmatprep.subr.bf16.mxu0 0
    %4133 = vmatpush1.bf16.msra.mxu0 %v4124
    %4134 = vmatprep.subr.bf16.mxu0 0
    %4135 = vmatpush1.bf16.msra.mxu0 0
    %4136 = vmatprep.subr.bf16.mxu0 0
    %4137 = vmatpush1.bf16.msra.mxu0 0
    %4138 = vmatprep.subr.bf16.mxu0 0
    %4139 = vmatpush1.bf16.msra.mxu0 0
    %4140 = vmatprep.subr.bf16.mxu0 0
    %4141 = vmatpush1.bf16.msra.mxu0 0
    %4142 = vmatprep.subr.bf16.mxu0 0
    %4143 = vmatpush1.bf16.msra.mxu0 0
    %4144 = vmatprep.subr.bf16.mxu0 0
    %4145 = vmatpush1.bf16.msra.mxu0 0
    %4146 = vmatprep.subr.bf16.mxu0 0
    %4147 = vmatpush1.bf16.msra.mxu0 0
    %4148 = vmatprep.subr.bf16.mxu0 0
    %4149 = vmatpush1.bf16.msra.mxu0 0
    %4150 = vmatprep.subr.bf16.mxu0 0
    %4151 = vmatpush1.bf16.msra.mxu0 0
    %4152 = vmatprep.subr.bf16.mxu0 0
    %4153 = vmatpush1.bf16.msra.mxu0 0
    %4154 = vmatprep.subr.bf16.mxu0 0
    %4155 = vmatpush1.bf16.msra.mxu0 0
    %4156 = vmatprep.subr.bf16.mxu0 0
    %4157 = vmatpush1.bf16.msra.mxu0 0
    %4158 = vmatprep.subr.bf16.mxu0 0
    %4159 = vmatpush1.bf16.msra.mxu0 0
    %4160 = vmatprep.subr.bf16.mxu0 0
    %4161 = vmatpush1.bf16.msra.mxu0 0
    %4162 = vmatprep.mubr.bf16.mxu0 0
    %4163 = vmatmul.mubr.bf16.gmra.mrb[0].mxu0 %v4128
    %v4164 = vpop.f32.mrb[0].mxu0
    %v4165 = vadd.f32 %v4113, %v4164
    %v4166 = vpop.f32.mrb[0].mxu0
    %v4167 = vpop.f32.mrb[0].mxu0
    %v4168 = vadd.f32 %v4113, %v4167
    %v4169 = vpop.f32.mrb[0].mxu0
    %4170 = vdwg.mxu0
    %v4171 = vadd.f32 %v2333, %v4165
    %v4172 = vadd.f32 %v2334, %v4168
    %v4173 = vsel %vm209, %v4171, 0.0
    %4174 = vadd.xlane.f32.xlu0 %v4173
    %v4175 = vpop.xlane.xlu0 %4174
    %v4176 = vsel %vm209, %v4172, 0.0
    %4177 = vadd.xlane.f32.xlu0 %v4176
    %v4178 = vpop.xlane.xlu0 %4177
    %v4179 = vmul.f32 %v4175, %v216
    %v4180 = vmul.f32 %v4178, %v216
    %v4181 = vsub.f32 %v4171, %v4179
    %v4182 = vsub.f32 %v4172, %v4180
    %v4183 = vmul.f32 %v4181, %v4181
    %v4184 = vmul.f32 %v4182, %v4182
    %v4185 = vsel %vm209, %v4183, 0.0
    %4186 = vadd.xlane.f32.xlu0 %v4185
    %v4187 = vpop.xlane.xlu0 %4186
    %v4188 = vsel %vm209, %v4184, 0.0
    %4189 = vadd.xlane.f32.xlu0 %v4188
    %v4190 = vpop.xlane.xlu0 %4189
    %v4191 = vmul.f32 %v4187, %v216
    %v4192 = vmul.f32 %v4190, %v216
    %v4193 = vadd.f32 %v4191, 1e-05
    %v4194 = vadd.f32 %v4192, 1e-05
    %v4195 = vrsqrt.pop %v4193
    %v4196 = vrsqrt.pop %v4194
    %v4197 = vmul.f32 %v4181, %v4195
    %v4198 = vmul.f32 %v4182, %v4196
    %v4199 = vpack.c.bf16 %v4198, %v4197
    %s4200 = scalar_lea.vmem %s9, 16
    %v4201 = vld [vmem:[%s4200] sm:$0xf]
    %v4202 = vld [vmem:[%s4200 + $0x4] sm:$0xf]
    %v4203 = vld [vmem:[%s4200 + $0x8] sm:$0xf]
    %v4204 = vld [vmem:[%s4200 + $0xc] sm:$0xf]
    %s4205 = scalar_lea.vmem %s10, 1
    %v4206 = vld [vmem:[%s4205] sm:$0x1]
    %v4208 = vlaneseq
    %v4209 = vshrl.u32 %v4208, 7
    %v4210 = vsub.s32 0, %v4209
    %v4211 = vrot.slane %v4206, %v4210
    %v4217 = vunpack.c.l.b16 %v4201
    %v4218 = vunpack.c.l.b16 %v4202
    %v4219 = vunpack.c.l.b16 %v4203
    %v4220 = vunpack.c.l.b16 %v4204
    %v4221 = vpack.c.b16 %v4218, %v4217
    %v4222 = vpack.c.b16 %v4220, %v4219
    %v4226 = vsel %vm209, %v4199, 0
    %4228 = vmatprep.subr.bf16.mxu0 0
    %4229 = vmatpush1.bf16.msra.mxu0 %v4221
    %4230 = vmatprep.subr.bf16.mxu0 0
    %4231 = vmatpush1.bf16.msra.mxu0 %v4222
    %4232 = vmatprep.subr.bf16.mxu0 0
    %4233 = vmatpush1.bf16.msra.mxu0 0
    %4234 = vmatprep.subr.bf16.mxu0 0
    %4235 = vmatpush1.bf16.msra.mxu0 0
    %4236 = vmatprep.subr.bf16.mxu0 0
    %4237 = vmatpush1.bf16.msra.mxu0 0
    %4238 = vmatprep.subr.bf16.mxu0 0
    %4239 = vmatpush1.bf16.msra.mxu0 0
    %4240 = vmatprep.subr.bf16.mxu0 0
    %4241 = vmatpush1.bf16.msra.mxu0 0
    %4242 = vmatprep.subr.bf16.mxu0 0
    %4243 = vmatpush1.bf16.msra.mxu0 0
    %4244 = vmatprep.subr.bf16.mxu0 0
    %4245 = vmatpush1.bf16.msra.mxu0 0
    %4246 = vmatprep.subr.bf16.mxu0 0
    %4247 = vmatpush1.bf16.msra.mxu0 0
    %4248 = vmatprep.subr.bf16.mxu0 0
    %4249 = vmatpush1.bf16.msra.mxu0 0
    %4250 = vmatprep.subr.bf16.mxu0 0
    %4251 = vmatpush1.bf16.msra.mxu0 0
    %4252 = vmatprep.subr.bf16.mxu0 0
    %4253 = vmatpush1.bf16.msra.mxu0 0
    %4254 = vmatprep.subr.bf16.mxu0 0
    %4255 = vmatpush1.bf16.msra.mxu0 0
    %4256 = vmatprep.subr.bf16.mxu0 0
    %4257 = vmatpush1.bf16.msra.mxu0 0
    %4258 = vmatprep.subr.bf16.mxu0 0
    %4259 = vmatpush1.bf16.msra.mxu0 0
    %4260 = vmatprep.mubr.bf16.mxu0 0
    %4261 = vmatmul.mubr.bf16.gmra.mrb[0].mxu0 %v4226
    %v4262 = vpop.f32.mrb[0].mxu0
    %v4263 = vadd.f32 %v4211, %v4262
    %v4264 = vpop.f32.mrb[0].mxu0
    %v4265 = vpop.f32.mrb[0].mxu0
    %v4266 = vadd.f32 %v4211, %v4265
    %v4267 = vpop.f32.mrb[0].mxu0
    %4268 = vdwg.mxu0
    %v4269 = vmul.f32 %v4263, 1.702
    %v4270 = vmul.f32 %v4266, 1.702
    %v4271 = vxor.u32 %v4269, 2147483648
    %v4272 = vxor.u32 %v4270, 2147483648
    %v4273 = vmul.f32 %v4271, 1.442695
    %v4274 = vpow.pop %v4273
    %v4275 = vmul.f32 %v4272, 1.442695
    %v4276 = vpow.pop %v4275
    %v4277 = vadd.f32 %v4274, 1.0
    %v4278 = vadd.f32 %v4276, 1.0
    %v4279 = vrcp.pop %v4277
    %v4280 = vmul.f32 1.0, %v4279
    %v4281 = vrcp.pop %v4278
    %v4282 = vmul.f32 1.0, %v4281
    %v4283 = vmul.f32 %v4263, %v4280
    %v4284 = vmul.f32 %v4266, %v4282
    %v4285 = vpack.c.bf16 %v4284, %v4283
    %s4286 = scalar_lea.vmem %s11, 64
    %v4287 = vld [vmem:[%s4286] sm:$0xf]
    %v4288 = vld [vmem:[%s4286 + $0x4] sm:$0xf]
    %v4289 = vld [vmem:[%s4286 + $0x8] sm:$0xf]
    %v4290 = vld [vmem:[%s4286 + $0xc] sm:$0xf]
    %v4291 = vld [vmem:[%s4286 + $0x10] sm:$0xf]
    %v4292 = vld [vmem:[%s4286 + $0x14] sm:$0xf]
    %v4293 = vld [vmem:[%s4286 + $0x18] sm:$0xf]
    %v4294 = vld [vmem:[%s4286 + $0x1c] sm:$0xf]
    %v4295 = vld [vmem:[%s4286 + $0x20] sm:$0xf]
    %v4296 = vld [vmem:[%s4286 + $0x24] sm:$0xf]
    %v4297 = vld [vmem:[%s4286 + $0x28] sm:$0xf]
    %v4298 = vld [vmem:[%s4286 + $0x2c] sm:$0xf]
    %v4299 = vld [vmem:[%s4286 + $0x30] sm:$0xf]
    %v4300 = vld [vmem:[%s4286 + $0x34] sm:$0xf]
    %v4301 = vld [vmem:[%s4286 + $0x38] sm:$0xf]
    %v4302 = vld [vmem:[%s4286 + $0x3c] sm:$0xf]
    %s4303 = scalar_lea.vmem %s12, 1
    %v4304 = vld [vmem:[%s4303] sm:$0x1]
    %v4306 = vlaneseq
    %v4307 = vshrl.u32 %v4306, 7
    %v4308 = vsub.s32 0, %v4307
    %v4309 = vrot.slane %v4304, %v4308
    %v4327 = vunpack.c.l.b16 %v4287
    %v4328 = vunpack.c.l.b16 %v4288
    %v4329 = vunpack.c.l.b16 %v4289
    %v4330 = vunpack.c.l.b16 %v4290
    %v4331 = vunpack.c.l.b16 %v4291
    %v4332 = vunpack.c.l.b16 %v4292
    %v4333 = vunpack.c.l.b16 %v4293
    %v4334 = vunpack.c.l.b16 %v4294
    %v4335 = vunpack.c.l.b16 %v4295
    %v4336 = vunpack.c.l.b16 %v4296
    %v4337 = vunpack.c.l.b16 %v4297
    %v4338 = vunpack.c.l.b16 %v4298
    %v4339 = vunpack.c.l.b16 %v4299
    %v4340 = vunpack.c.l.b16 %v4300
    %v4341 = vunpack.c.l.b16 %v4301
    %v4342 = vunpack.c.l.b16 %v4302
    %v4343 = vpack.c.b16 %v4328, %v4327
    %v4344 = vpack.c.b16 %v4330, %v4329
    %v4345 = vpack.c.b16 %v4332, %v4331
    %v4346 = vpack.c.b16 %v4334, %v4333
    %v4347 = vpack.c.b16 %v4336, %v4335
    %v4348 = vpack.c.b16 %v4338, %v4337
    %v4349 = vpack.c.b16 %v4340, %v4339
    %v4350 = vpack.c.b16 %v4342, %v4341
    %4359 = vmatprep.subr.bf16.mxu0 0
    %4360 = vmatpush1.bf16.msra.mxu0 %v4343
    %4361 = vmatprep.subr.bf16.mxu0 0
    %4362 = vmatpush1.bf16.msra.mxu0 %v4344
    %4363 = vmatprep.subr.bf16.mxu0 0
    %4364 = vmatpush1.bf16.msra.mxu0 %v4345
    %4365 = vmatprep.subr.bf16.mxu0 0
    %4366 = vmatpush1.bf16.msra.mxu0 %v4346
    %4367 = vmatprep.subr.bf16.mxu0 0
    %4368 = vmatpush1.bf16.msra.mxu0 %v4347
    %4369 = vmatprep.subr.bf16.mxu0 0
    %4370 = vmatpush1.bf16.msra.mxu0 %v4348
    %4371 = vmatprep.subr.bf16.mxu0 0
    %4372 = vmatpush1.bf16.msra.mxu0 %v4349
    %4373 = vmatprep.subr.bf16.mxu0 0
    %4374 = vmatpush1.bf16.msra.mxu0 %v4350
    %4375 = vmatprep.subr.bf16.mxu0 0
    %4376 = vmatpush1.bf16.msra.mxu0 0
    %4377 = vmatprep.subr.bf16.mxu0 0
    %4378 = vmatpush1.bf16.msra.mxu0 0
    %4379 = vmatprep.subr.bf16.mxu0 0
    %4380 = vmatpush1.bf16.msra.mxu0 0
    %4381 = vmatprep.subr.bf16.mxu0 0
    %4382 = vmatpush1.bf16.msra.mxu0 0
    %4383 = vmatprep.subr.bf16.mxu0 0
    %4384 = vmatpush1.bf16.msra.mxu0 0
    %4385 = vmatprep.subr.bf16.mxu0 0
    %4386 = vmatpush1.bf16.msra.mxu0 0
    %4387 = vmatprep.subr.bf16.mxu0 0
    %4388 = vmatpush1.bf16.msra.mxu0 0
    %4389 = vmatprep.subr.bf16.mxu0 0
    %4390 = vmatpush1.bf16.msra.mxu0 0
    %4391 = vmatprep.mubr.bf16.mxu0 0
    %4392 = vmatmul.mubr.bf16.gmra.mrb[0].mxu0 %v4285
    %v4393 = vpop.f32.mrb[0].mxu0
    %v4394 = vadd.f32 %v4309, %v4393
    %v4395 = vpop.f32.mrb[0].mxu0
    %v4396 = vpop.f32.mrb[0].mxu0
    %v4397 = vadd.f32 %v4309, %v4396
    %v4398 = vpop.f32.mrb[0].mxu0
    %4399 = vdwg.mxu0
    %v4400 = vadd.f32 %v4171, %v4394
    %v4401 = vadd.f32 %v4172, %v4397
    %v4404 = vrot.slane %v4401, 7
    %vm4405 = vcmask 1041409
    %v4406 = vsel %vm4405, %v4404, %v4400
    %vm4408 = vcmask 254976
    %v4409 = vsel %vm4408, %v4406, 0.0
    %4410 = vadd.xlane.f32.xlu0 %v4409
    %v4411 = vpop.xlane.xlu0 %4410
    %v4412 = vmul.f32 %v4411, %v216
    %v4414 = vrot.slane %v4412, 1
    %v4417 = vsub.f32 %v4400, %v4412
    %v4418 = vsub.f32 %v4401, %v4414
    %v4419 = vmul.f32 %v4417, %v4417
    %v4420 = vmul.f32 %v4418, %v4418
    %v4423 = vrot.slane %v4420, 7
    %v4424 = vsel %vm4405, %v4423, %v4419
    %v4426 = vsel %vm4408, %v4424, 0.0
    %4427 = vadd.xlane.f32.xlu0 %v4426
    %v4428 = vpop.xlane.xlu0 %4427
    %v4429 = vmul.f32 %v4428, %v216
    %v4430 = vadd.f32 %v4429, 1e-05
    %v4431 = vrsqrt.pop %v4430
    %v4433 = vrot.slane %v4431, 1
    %v4436 = vmul.f32 %v4417, %v4431
    %v4437 = vmul.f32 %v4418, %v4433
    %v4438 = vpack.c.bf16 %v4436, %v4436
    %v4439 = vpack.c.bf16 %v4437, %v4437
    %v4440 = vld [vmem:[%s13] sm:$0xf]
    %v4441 = vld [vmem:[%s13 + $0x4] sm:$0xf]
    %v4442 = vld [vmem:[%s13 + $0x8] sm:$0xf]
    %v4443 = vld [vmem:[%s13 + $0xc] sm:$0xf]
    %v4444 = vld [vmem:[%s14] sm:$0x1]
    %v4446 = vlaneseq
    %v4447 = vshrl.u32 %v4446, 7
    %v4448 = vsub.s32 0, %v4447
    %v4449 = vrot.slane %v4444, %v4448
    %v4453 = vunpack.c.l.b16 %v4438
    %v4454 = vunpack.c.l.b16 %v4439
    %v4455 = vrot.slane %v4454, 7
    %v4456 = vsel %vm4405, %v4455, %v4453
    %v4457 = vpack.c.b16 %v4456, %v4456
    %v4462 = vunpack.c.l.b16 %v4440
    %v4463 = vunpack.c.l.b16 %v4441
    %v4464 = vunpack.c.l.b16 %v4442
    %v4465 = vunpack.c.l.b16 %v4443
    %v4466 = vpack.c.b16 %v4463, %v4462
    %v4467 = vpack.c.b16 %v4465, %v4464
    %v4471 = vsel %vm209, %v4457, 0
    %4473 = vmatprep.subr.bf16.mxu0 0
    %4474 = vmatpush1.bf16.msra.mxu0 %v4466
    %4475 = vmatprep.subr.bf16.mxu0 0
    %4476 = vmatpush1.bf16.msra.mxu0 %v4467
    %4477 = vmatprep.subr.bf16.mxu0 0
    %4478 = vmatpush1.bf16.msra.mxu0 0
    %4479 = vmatprep.subr.bf16.mxu0 0
    %4480 = vmatpush1.bf16.msra.mxu0 0
    %4481 = vmatprep.subr.bf16.mxu0 0
    %4482 = vmatpush1.bf16.msra.mxu0 0
    %4483 = vmatprep.subr.bf16.mxu0 0
    %4484 = vmatpush1.bf16.msra.mxu0 0
    %4485 = vmatprep.subr.bf16.mxu0 0
    %4486 = vmatpush1.bf16.msra.mxu0 0
    %4487 = vmatprep.subr.bf16.mxu0 0
    %4488 = vmatpush1.bf16.msra.mxu0 0
    %4489 = vmatprep.subr.bf16.mxu0 0
    %4490 = vmatpush1.bf16.msra.mxu0 0
    %4491 = vmatprep.subr.bf16.mxu0 0
    %4492 = vmatpush1.bf16.msra.mxu0 0
    %4493 = vmatprep.subr.bf16.mxu0 0
    %4494 = vmatpush1.bf16.msra.mxu0 0
    %4495 = vmatprep.subr.bf16.mxu0 0
    %4496 = vmatpush1.bf16.msra.mxu0 0
    %4497 = vmatprep.subr.bf16.mxu0 0
    %4498 = vmatpush1.bf16.msra.mxu0 0
    %4499 = vmatprep.subr.bf16.mxu0 0
    %4500 = vmatpush1.bf16.msra.mxu0 0
    %4501 = vmatprep.subr.bf16.mxu0 0
    %4502 = vmatpush1.bf16.msra.mxu0 0
    %4503 = vmatprep.subr.bf16.mxu0 0
    %4504 = vmatpush1.bf16.msra.mxu0 0
    %4505 = vmatprep.mubr.bf16.mxu0 0
    %4506 = vmatmul.mubr.bf16.gmra.mrb[0].mxu0 %v4471
    %v4507 = vpop.f32.mrb[0].mxu0
    %v4508 = vadd.f32 %v4449, %v4507
    %v4509 = vpop.f32.mrb[0].mxu0
    %v4510 = vpop.f32.mrb[0].mxu0
    %v4511 = vpop.f32.mrb[0].mxu0
    %4512 = vdwg.mxu0
    %v4513 = vmul.f32 %v4508, %v4508
    %v4514 = vsel %vm4408, %v4513, 0.0
    %4515 = vadd.xlane.f32.xlu0 %v4514
    %v4516 = vpop.xlane.xlu0 %4515
    %v4517 = vrsqrt.pop %v4516
    %v4518 = vmul.f32 %v4508, %v4517
    %v4519 = vpack.c.bf16 %v4518, %v4518
    %v4520 = vld [vmem:[%s15] sm:$0xf]
    %v4521 = vld [vmem:[%s15 + $0x4] sm:$0xf]
    %v4522 = vld [vmem:[%s15 + $0x8] sm:$0xf]
    %v4523 = vld [vmem:[%s15 + $0xc] sm:$0xf]
    %v4528 = vunpack.c.l.b16 %v4520
    %v4529 = vunpack.c.l.b16 %v4521
    %v4530 = vunpack.c.l.b16 %v4522
    %v4531 = vunpack.c.l.b16 %v4523
    %v4532 = vpack.c.b16 %v4529, %v4528
    %v4533 = vpack.c.b16 %v4531, %v4530
    %v4537 = vsel %vm209, %v4519, 0
    %4539 = vmatprep.subr.bf16.mxu0 0
    %4540 = vmatpush1.bf16.msra.mxu0 %v4532
    %4541 = vmatprep.subr.bf16.mxu0 0
    %4542 = vmatpush1.bf16.msra.mxu0 %v4533
    %4543 = vmatprep.subr.bf16.mxu0 0
    %4544 = vmatpush1.bf16.msra.mxu0 0
    %4545 = vmatprep.subr.bf16.mxu0 0
    %4546 = vmatpush1.bf16.msra.mxu0 0
    %4547 = vmatprep.subr.bf16.mxu0 0
    %4548 = vmatpush1.bf16.msra.mxu0 0
    %4549 = vmatprep.subr.bf16.mxu0 0
    %4550 = vmatpush1.bf16.msra.mxu0 0
    %4551 = vmatprep.subr.bf16.mxu0 0
    %4552 = vmatpush1.bf16.msra.mxu0 0
    %4553 = vmatprep.subr.bf16.mxu0 0
    %4554 = vmatpush1.bf16.msra.mxu0 0
    %4555 = vmatprep.subr.bf16.mxu0 0
    %4556 = vmatpush1.bf16.msra.mxu0 0
    %4557 = vmatprep.subr.bf16.mxu0 0
    %4558 = vmatpush1.bf16.msra.mxu0 0
    %4559 = vmatprep.subr.bf16.mxu0 0
    %4560 = vmatpush1.bf16.msra.mxu0 0
    %4561 = vmatprep.subr.bf16.mxu0 0
    %4562 = vmatpush1.bf16.msra.mxu0 0
    %4563 = vmatprep.subr.bf16.mxu0 0
    %4564 = vmatpush1.bf16.msra.mxu0 0
    %4565 = vmatprep.subr.bf16.mxu0 0
    %4566 = vmatpush1.bf16.msra.mxu0 0
    %4567 = vmatprep.subr.bf16.mxu0 0
    %4568 = vmatpush1.bf16.msra.mxu0 0
    %4569 = vmatprep.subr.bf16.mxu0 0
    %4570 = vmatpush1.bf16.msra.mxu0 0
    %4571 = vmatprep.mubr.bf16.mxu0 0
    %4572 = vmatmul.mubr.bf16.gmra.mrb[0].mxu0 %v4537
    %v4573 = vpop.f32.mrb[0].mxu0
    %v4574 = vadd.f32 0.0, %v4573
    %v4575 = vpop.f32.mrb[0].mxu0
    %v4576 = vpop.f32.mrb[0].mxu0
    %v4577 = vpop.f32.mrb[0].mxu0
    %4578 = vdwg.mxu0
    %vm4579 = vcmask 58368
    %4580 = vst.msk [vmem:[#allocation2] sm:$0x3] %vm4579, %v4574
    // Predicated region
    $region66: #{myclip_forward.1} parent=1 // pred_check
      _
    $region67: #{myclip_forward.1} parent=1 // pred_check_branch
      %4582 = sbr.rel (0) target = $region69
    $region68: #{myclip_forward.1} parent=1 // pred_region
      %s4584 = ssub.s32 32, 32
      %4585 = vsyncadd [#allocation3], %s4584
      %s4587 = sshll.u32 [#allocation2], 4
      %s4588 = int_to_ptr.vmem [resolvable:$true] %s4587
      %4590 = dma.vmem_to_hbm [thread:$0]  %s4588, 32, %s16, [#allocation3]
    $region69: #{myclip_forward.1} parent=1 // pred_fallthru
      _
    // Predicated region
    $region70: #{myclip_forward.1} parent=1 // pred_check
      _
    $region71: #{myclip_forward.1} parent=1 // pred_check_branch
      %4592 = sbr.rel (0) target = $region73
    $region72: #{myclip_forward.1} parent=1 // pred_region
      %4593 = dma.done [#allocation3], 32
    $region73: #{myclip_forward.1} parent=1 // pred_fallthru
      _
    %4594 = vsyncpa [#allocation3], 1

</llo_original>
